<compile_context>
chip_gen: v7x
topology: tpu7x:2x2x1
jax: 0.10.0
libtpu: 0.0.40
codegen_flags: <defaults>
</compile_context>

<pallas_src>
import functools

import jax
import jax.numpy as jnp
from jax.experimental import pallas as pl
from jax.experimental.pallas import tpu as pltpu

# Keep f32 matmul precision so the kernel can be validated against the
# pure-JAX reference at a tight tolerance (review: 1e-2 was far too loose).
jax.config.update("jax_default_matmul_precision", "highest")

OBS_DIM = 32
ACT_DIM = 8
HID_DIM = 32
GAMMA = 0.99
N_RANDOM = 8          # random actions per obs for the conservative term
TEMPERATURE = 1.0
SCALES = {"critic": 1.0, "conservative": 1.0}

# ---- packed-slab layout constants (shared by host packing and kernel) -------
_H2 = 2 * HID_DIM                       # twin hidden width
_ACT_LANE = 2 * OBS_DIM                 # data slab: action lane offset
_REW_LANE = 2 * OBS_DIM + ACT_DIM       # data slab: reward lane
_DONE_LANE = _REW_LANE + 1              # data slab: done lane
_AW2_ROW = OBS_DIM + ACT_DIM            # param slab: actor w2 rows
_QW2_ROW = _AW2_ROW + HID_DIM           # param slab: block-diag twin-head rows
_BIAS_ROW = _QW2_ROW + _H2              # param slab: bias block (8-row aligned)
_PARAM_ROWS = _BIAS_ROW + 8             # total param rows (multiple of 8)


# -----------------------------------------------------------------------------
# Fused kernel: actor + stacked twin-Q + TD loss + CQL loss + final scaling.
#
# Q-row stacking (Mq = 2*Br + 3*Bd + Bd*N rows), obs contribution per segment:
#   A [0        , Br      ) (obs_r , act_r)          c_obs rows 0:Br
#   C [Br       , Br+Bd   ) (obs_d , act_d)          c_obs rows Br:Br+Bd
#   B [Br+Bd    , 2Br+Bd  ) (nobs_r, a'(nobs_r))     c_obs rows Br+Bd:2Br+Bd
#   D [2Br+Bd   , Mobs    ) (nobs_d, a'(nobs_d))     c_obs rows 2Br+Bd:Mobs
#   E [Mobs     , Mobs+Bd ) (obs_d , pi(obs_d))      c_obs rows Br:Br+Bd
#   F [Mobs+Bd  , Mq      ) (obs_d broadcast, rand)  c_obs rows Br:Br+Bd, x N
# -----------------------------------------------------------------------------
def _combo_kernel(data_ref, p_ref, out_ref, *,
                  b_real, b_dream, n_random, gamma, temperature,
                  scale_critic, scale_cons):
  f32 = jnp.float32
  Br, Bd, N = b_real, b_dream, n_random
  OBS, ACT, HID, H2 = OBS_DIM, ACT_DIM, HID_DIM, _H2
  Mobs = 2 * (Br + Bd)                    # unique obs rows [obs_r; obs_d; nobs_r; nobs_d]

  # ---------------- static parameter slices (packed slab) -------------------
  w1 = p_ref[0:OBS, 0:HID + H2]                        # [actor.w1 | q1.w1_obs | q2.w1_obs]
  w1a = p_ref[OBS:OBS + ACT, 0:H2]                     # [q1.w1_act | q2.w1_act]
  aw2 = p_ref[_AW2_ROW:_AW2_ROW + HID, 0:ACT]          # actor layer-2 weight
  qw2 = p_ref[_QW2_ROW:_QW2_ROW + H2, 0:2]             # block-diagonal twin heads
  bias_blk = p_ref[_BIAS_ROW:_BIAS_ROW + 8, :]         # one aligned (8,128) load
  ab1 = bias_blk[0:1, 0:HID]
  ab2 = bias_blk[1:2, 0:ACT]
  qb1 = bias_blk[2:3, 0:H2]
  qb2 = bias_blk[3:4, 0:2]

  # ---------------- batch slices (packed slab) ------------------------------
  bd = data_ref[0:Br + Bd, :]                          # rows: [real ; dream]
  rand = data_ref[Br + Bd:, 0:ACT]                     # (Bd*N, ACT) random actions
  rew = bd[:, _REW_LANE:_REW_LANE + 1]
  done = bd[:, _DONE_LANE:_DONE_LANE + 1]

  # unique obs rows: [obs_r; obs_d; nobs_r; nobs_d]
  obs_stack = jnp.concatenate([bd[:, 0:OBS], bd[:, OBS:2 * OBS]], axis=0)

  # -------- fused actor layer-1 + Q obs projection (one MXU push) -----------
  proj = jnp.dot(obs_stack, w1, preferred_element_type=f32)   # (Mobs, HID+2H)
  c_obs = proj[:, HID:]                                       # (Mobs, 2H)

  # actor MLP on rows [obs_d; nobs_r; nobs_d] (= obs_stack[Br:]); the torch
  # module uses these actions under no_grad -> forward value identical.
  a_h = jnp.maximum(proj[Br:, 0:HID] + ab1, 0.0)
  actor_out = jnp.tanh(jnp.dot(a_h, aw2, preferred_element_type=f32) + ab2)
  #   actor_out rows: [0:Bd)  pi(obs_d)              -> segment E
  #                   [Bd:)   a'(nobs_r), a'(nobs_d) -> segments B, D

  # ---------------- stacked twin-Q pass over rows A,C | B,D | E | F ---------
  act_all = jnp.concatenate(
      [bd[:, _ACT_LANE:_ACT_LANE + ACT],    # A, C: dataset actions
       actor_out[Bd:],                      # B, D: next-state actor actions
       actor_out[0:Bd],                     # E   : pi actions
       rand],                               # F   : random actions
      axis=0)                               # (Mq, ACT)

  c_obs_e = c_obs[Br:Br + Bd]                                        # obs_d rows
  c_obs_f = jnp.broadcast_to(c_obs_e[:, None, :],
                             (Bd, N, H2)).reshape(Bd * N, H2)        # row i repeated N times
  obs_contrib = jnp.concatenate([c_obs, c_obs_e, c_obs_f], axis=0)   # (Mq, 2H)

  h = jnp.maximum(
      jnp.dot(act_all, w1a, preferred_element_type=f32) + obs_contrib + qb1,
      0.0)                                                           # (Mq, 2H)

  q = jnp.dot(h, qw2, preferred_element_type=f32) + qb2              # (Mq, 2) = [q1 | q2]

  # ---------------- TD loss (real + dream), both heads at once --------------
  q_data = q[0:Br + Bd]                                              # A, C  (both heads)
  q_next = jnp.minimum(q[Br + Bd:Mobs, 0:1], q[Br + Bd:Mobs, 1:2])   # min over heads (B, D)
  tgt = rew + gamma * (1.0 - done) * q_next                          # (Br+Bd, 1)
  err2 = (q_data - tgt) ** 2                                         # (Br+Bd, 2)
  td_error = (jnp.sum(err2[0:Br]) * (1.0 / Br) +
              jnp.sum(err2[Br:]) * (1.0 / Bd))

  # ---------------- conservative (CQL) loss, both heads at once -------------
  q_dat_d = q[Br:Br + Bd]                                            # C
  q_pi = q[Mobs:Mobs + Bd]                                           # E
  q_rand = q[Mobs + Bd:].reshape(Bd, N, 2)                           # F
  inv_t = 1.0 / temperature
  qr = q_rand * inv_t
  qp = q_pi * inv_t
  m = jnp.maximum(jnp.max(qr, axis=1), qp)                           # (Bd, 2)
  lse = m + jnp.log(jnp.sum(jnp.exp(qr - m[:, None, :]), axis=1) + jnp.exp(qp - m))
  conservative = (temperature * jnp.sum(lse) - jnp.sum(q_dat_d)) / float(Bd)

  loss = scale_critic * td_error + scale_cons * conservative
  out_ref[0] = loss
  out_ref[1] = td_error
  out_ref[2] = conservative


# -----------------------------------------------------------------------------
# Host-side slab packing (tiny, done once per call; in a real trainer the
# parameter slab would be maintained in packed form).
# -----------------------------------------------------------------------------
def _pack_params(params):
  a, q1, q2 = params["actor"], params["q1"], params["q2"]
  w1 = jnp.concatenate(
      [a["w1"], q1["w1"][:OBS_DIM], q2["w1"][:OBS_DIM]], axis=1)      # (OBS, HID+2H)
  w1a = jnp.concatenate(
      [q1["w1"][OBS_DIM:], q2["w1"][OBS_DIM:]], axis=1)               # (ACT, 2H)
  slab = jnp.zeros((_PARAM_ROWS, 128), jnp.float32)
  slab = slab.at[0:OBS_DIM, 0:HID_DIM + _H2].set(w1)
  slab = slab.at[OBS_DIM:OBS_DIM + ACT_DIM, 0:_H2].set(w1a)
  slab = slab.at[_AW2_ROW:_AW2_ROW + HID_DIM, 0:ACT_DIM].set(a["w2"])
  slab = slab.at[_QW2_ROW:_QW2_ROW + HID_DIM, 0:1].set(q1["w2"])      # block-diag col 0
  slab = slab.at[_QW2_ROW + HID_DIM:_QW2_ROW + _H2, 1:2].set(q2["w2"])  # block-diag col 1
  slab = slab.at[_BIAS_ROW + 0, 0:HID_DIM].set(a["b1"][0])
  slab = slab.at[_BIAS_ROW + 1, 0:ACT_DIM].set(a["b2"][0])
  slab = slab.at[_BIAS_ROW + 2, 0:_H2].set(
      jnp.concatenate([q1["b1"], q2["b1"]], axis=1)[0])
  slab = slab.at[_BIAS_ROW + 3, 0:2].set(
      jnp.concatenate([q1["b2"], q2["b2"]], axis=1)[0])
  return slab


def _pack_data(r, d, rand):
  br, bd = r["obs"].shape[0], d["obs"].shape[0]
  rows = br + bd + rand.shape[0]

  def put(slab, rows_sl, b):
    slab = slab.at[rows_sl, 0:OBS_DIM].set(b["obs"])
    slab = slab.at[rows_sl, OBS_DIM:2 * OBS_DIM].set(b["next_obs"])
    slab = slab.at[rows_sl, _ACT_LANE:_ACT_LANE + ACT_DIM].set(b["action"])
    slab = slab.at[rows_sl, _REW_LANE:_REW_LANE + 1].set(b["reward"])
    slab = slab.at[rows_sl, _DONE_LANE:_DONE_LANE + 1].set(b["done"])
    return slab

  slab = jnp.zeros((rows, 128), jnp.float32)
  slab = put(slab, slice(0, br), r)
  slab = put(slab, slice(br, br + bd), d)
  slab = slab.at[br + bd:, 0:ACT_DIM].set(rand)
  return slab


def combo_objective_forward(params, batch, *, scales=SCALES,
                            temperature=TEMPERATURE, gamma=GAMMA):
  def flat(b):
    bs = b["_batch_shape"]
    return {k: v.reshape((-1,) + v.shape[len(bs):])
            for k, v in b.items() if k != "_batch_shape"}

  r = flat(batch["real"])
  d = flat(batch["dream"])
  br, bd = r["obs"].shape[0], d["obs"].shape[0]
  # static sublane-aligned slicing inside the fused kernel (Bd*N_RANDOM follows)
  assert br % 8 == 0 and bd % 8 == 0

  rand = batch["_dream_random_actions"].reshape(bd * N_RANDOM, ACT_DIM)
  data_slab = _pack_data(r, d, rand)        # (Br+Bd+Bd*N, 128) -> one DMA
  param_slab = _pack_params(params)         # (_PARAM_ROWS, 128) -> one DMA

  kernel = functools.partial(
      _combo_kernel, b_real=br, b_dream=bd, n_random=N_RANDOM,
      gamma=float(gamma), temperature=float(temperature),
      scale_critic=float(scales["critic"]),
      scale_cons=float(scales["conservative"]))

  vmem = pl.BlockSpec(memory_space=pltpu.MemorySpace.VMEM)
  out = pl.pallas_call(
      kernel,
      out_shape=jax.ShapeDtypeStruct((3,), jnp.float32),
      in_specs=[vmem, vmem],
      out_specs=pl.BlockSpec(memory_space=pltpu.MemorySpace.SMEM),
  )(data_slab, param_slab)

  loss, td_error, conservative = out[0], out[1], out[2]
  return loss, dict(loss=loss, td_error=td_error, conservative=conservative)


# -----------------------------------------------------------------------------
# Deterministic parameter init (synthetic actor + twin-Q critic)
# -----------------------------------------------------------------------------
def init_params():
  keys = jax.random.split(jax.random.PRNGKey(42), 12)

  def lin(k, i, o, scale=0.1):
    return scale * jax.random.normal(k, (i, o), jnp.float32)

  return {
      "actor": {
          "w1": lin(keys[0], OBS_DIM, HID_DIM),
          "b1": jnp.zeros((1, HID_DIM), jnp.float32),
          "w2": lin(keys[1], HID_DIM, ACT_DIM),
          "b2": jnp.zeros((1, ACT_DIM), jnp.float32),
      },
      "q1": {
          "w1": lin(keys[2], OBS_DIM + ACT_DIM, HID_DIM),
          "b1": jnp.zeros((1, HID_DIM), jnp.float32),
          "w2": lin(keys[3], HID_DIM, 1),
          "b2": jnp.zeros((1, 1), jnp.float32),
      },
      "q2": {
          "w1": lin(keys[4], OBS_DIM + ACT_DIM, HID_DIM),
          "b1": jnp.zeros((1, HID_DIM), jnp.float32),
          "w2": lin(keys[5], HID_DIM, 1),
          "b2": jnp.zeros((1, 1), jnp.float32),
      },
  }


# -----------------------------------------------------------------------------
# Pure-JAX reference (mirrors the original module composition) for validation
# -----------------------------------------------------------------------------
def _reference_forward(params, batch, *, scales=SCALES, temperature=TEMPERATURE,
                       gamma=GAMMA):
  a = params["actor"]

  def mlp(x, p, tanh_out):
    h = jnp.maximum(x @ p["w1"] + p["b1"], 0.0)
    y = h @ p["w2"] + p["b2"]
    return jnp.tanh(y) if tanh_out else y

  def qv(name, obs, act):
    return mlp(jnp.concatenate([obs, act], axis=-1), params[name], False)

  def flat(b):
    bs = b["_batch_shape"]
    return {k: v.reshape((-1,) + v.shape[len(bs):])
            for k, v in b.items() if k != "_batch_shape"}

  def td(b):
    na = mlp(b["next_obs"], a, True)
    q1n = qv("q1", b["next_obs"], na)
    q2n = qv("q2", b["next_obs"], na)
    tgt = b["reward"] + gamma * (1.0 - b["done"]) * jnp.minimum(q1n, q2n)
    q1 = qv("q1", b["obs"], b["action"])
    q2 = qv("q2", b["obs"], b["action"])
    return (jnp.sum((q1 - tgt) ** 2) + jnp.sum((q2 - tgt) ** 2)) / q1.size

  r, d = flat(batch["real"]), flat(batch["dream"])
  td_error = td(r) + td(d)

  obs = d["obs"]
  B = obs.shape[0]
  pi = mlp(obs, a, True)
  rand = batch["_dream_random_actions"].reshape(B * N_RANDOM, ACT_DIM)
  obs_rep = jnp.repeat(obs, N_RANDOM, axis=0)

  def cql(name):
    qp = qv(name, obs, pi) / temperature
    qd = qv(name, obs, d["action"])
    qr = qv(name, obs_rep, rand).reshape(B, N_RANDOM) / temperature
    m = jnp.maximum(jnp.max(qr, axis=1, keepdims=True), qp)
    lse = m + jnp.log(jnp.sum(jnp.exp(qr - m), axis=1, keepdims=True) + jnp.exp(qp - m))
    return temperature * jnp.mean(lse) - jnp.mean(qd)

  conservative = cql("q1") + cql("q2")
  loss = scales["critic"] * td_error + scales["conservative"] * conservative
  return loss, td_error, conservative


# -----------------------------------------------------------------------------
# Example inputs + run
# -----------------------------------------------------------------------------
def make_batch():
  ks = jax.random.split(jax.random.PRNGKey(0), 16)
  B_real = 8
  B_dream, T = 4, 2    # dream batch has (B, T) leading dims -> flattened to 8

  def transitions(keys, shape):
    return {
        "obs":      jax.random.normal(keys[0], shape + (OBS_DIM,), jnp.float32),
        "action":   jnp.tanh(jax.random.normal(keys[1], shape + (ACT_DIM,), jnp.float32)),
        "reward":   jax.random.normal(keys[2], shape + (1,), jnp.float32),
        "next_obs": jax.random.normal(keys[3], shape + (OBS_DIM,), jnp.float32),
        "done":     (jax.random.uniform(keys[4], shape + (1,)) < 0.1).astype(jnp.float32),
        "_batch_shape": shape,
    }

  real = transitions(ks[0:5], (B_real,))
  dream = transitions(ks[5:10], (B_dream, T))
  rand_actions = jax.random.uniform(
      ks[10], (B_dream * T, N_RANDOM, ACT_DIM), jnp.float32, minval=-1.0, maxval=1.0)
  return {"real": real, "dream": dream, "_dream_random_actions": rand_actions}


if __name__ == "__main__":
  params = init_params()
  batch = make_batch()

  loss, info = combo_objective_forward(params, batch)
  loss = jax.block_until_ready(loss)

  ref_loss, ref_td, ref_cons = _reference_forward(params, batch)
  assert jnp.isfinite(loss)
  assert jnp.allclose(loss, ref_loss, rtol=1e-4, atol=1e-4), (loss, ref_loss)
  assert jnp.allclose(info["td_error"], ref_td, rtol=1e-4, atol=1e-4), (info["td_error"], ref_td)
  assert jnp.allclose(info["conservative"], ref_cons, rtol=1e-4, atol=1e-4), (
      info["conservative"], ref_cons)
  print("KERNEL_OK")
</pallas_src>

<mosaic_0001>
module attributes {stable_mosaic.version = 11 : i64} {
  func.func @_combo_kernel(%arg0: memref<80x128xf32, #tpu.memory_space<vmem>>, %arg1: memref<144x128xf32, #tpu.memory_space<vmem>>, %arg2: memref<3xf32, #tpu.memory_space<smem>>) attributes {dimension_semantics = [], scalar_prefetch = 0 : i64, scratch_operands = 0 : i64, tpu.core_type = #tpu.core_type<tc>} {
    %c0 = arith.constant 0 : index
    %c0_0 = arith.constant 0 : index
    %0 = vector.load %arg1[%c0, %c0_0] : memref<144x128xf32, #tpu.memory_space<vmem>>, vector<32x96xf32>
    %c32 = arith.constant 32 : index
    %c0_1 = arith.constant 0 : index
    %1 = vector.load %arg1[%c32, %c0_1] : memref<144x128xf32, #tpu.memory_space<vmem>>, vector<8x64xf32>
    %c40 = arith.constant 40 : index
    %c0_2 = arith.constant 0 : index
    %2 = vector.load %arg1[%c40, %c0_2] : memref<144x128xf32, #tpu.memory_space<vmem>>, vector<32x8xf32>
    %c72 = arith.constant 72 : index
    %c0_3 = arith.constant 0 : index
    %3 = vector.load %arg1[%c72, %c0_3] : memref<144x128xf32, #tpu.memory_space<vmem>>, vector<64x2xf32>
    %c136 = arith.constant 136 : index
    %c0_4 = arith.constant 0 : index
    %4 = vector.load %arg1[%c136, %c0_4] : memref<144x128xf32, #tpu.memory_space<vmem>>, vector<8x128xf32>
    %5 = vector.extract_strided_slice %4 {offsets = [0, 0], sizes = [1, 32], strides = [1, 1]} : vector<8x128xf32> to vector<1x32xf32>
    %6 = vector.extract_strided_slice %4 {offsets = [1, 0], sizes = [1, 8], strides = [1, 1]} : vector<8x128xf32> to vector<1x8xf32>
    %7 = vector.extract_strided_slice %4 {offsets = [2, 0], sizes = [1, 64], strides = [1, 1]} : vector<8x128xf32> to vector<1x64xf32>
    %8 = vector.extract_strided_slice %4 {offsets = [3, 0], sizes = [1, 2], strides = [1, 1]} : vector<8x128xf32> to vector<1x2xf32>
    %c0_5 = arith.constant 0 : index
    %c0_6 = arith.constant 0 : index
    %9 = vector.load %arg0[%c0_5, %c0_6] : memref<80x128xf32, #tpu.memory_space<vmem>>, vector<16x128xf32>
    %c16 = arith.constant 16 : index
    %c0_7 = arith.constant 0 : index
    %10 = vector.load %arg0[%c16, %c0_7] : memref<80x128xf32, #tpu.memory_space<vmem>>, vector<64x8xf32>
    %11 = vector.extract_strided_slice %9 {offsets = [0, 72], sizes = [16, 1], strides = [1, 1]} : vector<16x128xf32> to vector<16x1xf32>
    %12 = vector.extract_strided_slice %9 {offsets = [0, 73], sizes = [16, 1], strides = [1, 1]} : vector<16x128xf32> to vector<16x1xf32>
    %13 = vector.extract_strided_slice %9 {offsets = [0, 0], sizes = [16, 32], strides = [1, 1]} : vector<16x128xf32> to vector<16x32xf32>
    %14 = vector.extract_strided_slice %9 {offsets = [0, 32], sizes = [16, 32], strides = [1, 1]} : vector<16x128xf32> to vector<16x32xf32>
    %15 = tpu.concatenate %13, %14 in 0 : vector<16x32xf32>, vector<16x32xf32> -> vector<32x32xf32>
    %cst = arith.constant dense<0.000000e+00> : vector<32x96xf32>
    %16 = tpu.matmul %15, %0, %cst {dimension_numbers = #tpu.dot_dimension_numbers<[1], [0], [0], [1], [0, 0, 1, 1], [], []>, precision = #tpu.contract_precision<fp32>} : vector<32x32xf32>, vector<32x96xf32>, vector<32x96xf32> -> vector<32x96xf32>
    %17 = vector.extract_strided_slice %16 {offsets = [0, 32], sizes = [32, 64], strides = [1, 1]} : vector<32x96xf32> to vector<32x64xf32>
    %18 = vector.extract_strided_slice %16 {offsets = [8, 0], sizes = [24, 32], strides = [1, 1]} : vector<32x96xf32> to vector<24x32xf32>
    %19 = vector.broadcast %5 : vector<1x32xf32> to vector<24x32xf32>
    %20 = arith.addf %18, %19 : vector<24x32xf32>
    %cst_8 = arith.constant 0.000000e+00 : f32
    %21 = vector.broadcast %cst_8 : f32 to vector<24x32xf32>
    %22 = arith.maximumf %20, %21 : vector<24x32xf32>
    %cst_9 = arith.constant dense<0.000000e+00> : vector<24x8xf32>
    %23 = tpu.matmul %22, %2, %cst_9 {dimension_numbers = #tpu.dot_dimension_numbers<[1], [0], [0], [1], [0, 0, 1, 1], [], []>, precision = #tpu.contract_precision<fp32>} : vector<24x32xf32>, vector<32x8xf32>, vector<24x8xf32> -> vector<24x8xf32>
    %24 = vector.broadcast %6 : vector<1x8xf32> to vector<24x8xf32>
    %25 = arith.addf %23, %24 : vector<24x8xf32>
    %26 = math.tanh %25 : vector<24x8xf32>
    %27 = vector.extract_strided_slice %9 {offsets = [0, 64], sizes = [16, 8], strides = [1, 1]} : vector<16x128xf32> to vector<16x8xf32>
    %28 = vector.extract_strided_slice %26 {offsets = [8, 0], sizes = [16, 8], strides = [1, 1]} : vector<24x8xf32> to vector<16x8xf32>
    %29 = vector.extract_strided_slice %26 {offsets = [0, 0], sizes = [8, 8], strides = [1, 1]} : vector<24x8xf32> to vector<8x8xf32>
    %30 = tpu.concatenate %27, %28, %29, %10 in 0 : vector<16x8xf32>, vector<16x8xf32>, vector<8x8xf32>, vector<64x8xf32> -> vector<104x8xf32>
    %31 = vector.extract_strided_slice %17 {offsets = [8, 0], sizes = [8, 64], strides = [1, 1]} : vector<32x64xf32> to vector<8x64xf32>
    %32 = vector.shape_cast %31 : vector<8x64xf32> to vector<8x1x64xf32>
    %33 = vector.shape_cast %32 : vector<8x1x64xf32> to vector<8x1x64xf32>
    %34 = vector.broadcast %33 : vector<8x1x64xf32> to vector<8x8x64xf32>
    %35 = vector.shape_cast %34 : vector<8x8x64xf32> to vector<64x64xf32>
    %36 = tpu.concatenate %17, %31, %35 in 0 : vector<32x64xf32>, vector<8x64xf32>, vector<64x64xf32> -> vector<104x64xf32>
    %cst_10 = arith.constant dense<0.000000e+00> : vector<104x64xf32>
    %37 = tpu.matmul %30, %1, %cst_10 {dimension_numbers = #tpu.dot_dimension_numbers<[1], [0], [0], [1], [0, 0, 1, 1], [], []>, precision = #tpu.contract_precision<fp32>} : vector<104x8xf32>, vector<8x64xf32>, vector<104x64xf32> -> vector<104x64xf32>
    %38 = arith.addf %37, %36 : vector<104x64xf32>
    %39 = vector.broadcast %7 : vector<1x64xf32> to vector<104x64xf32>
    %40 = arith.addf %38, %39 : vector<104x64xf32>
    %cst_11 = arith.constant 0.000000e+00 : f32
    %41 = vector.broadcast %cst_11 : f32 to vector<104x64xf32>
    %42 = arith.maximumf %40, %41 : vector<104x64xf32>
    %cst_12 = arith.constant dense<0.000000e+00> : vector<104x2xf32>
    %43 = tpu.matmul %42, %3, %cst_12 {dimension_numbers = #tpu.dot_dimension_numbers<[1], [0], [0], [1], [0, 0, 1, 1], [], []>, precision = #tpu.contract_precision<fp32>} : vector<104x64xf32>, vector<64x2xf32>, vector<104x2xf32> -> vector<104x2xf32>
    %44 = vector.broadcast %8 : vector<1x2xf32> to vector<104x2xf32>
    %45 = arith.addf %43, %44 : vector<104x2xf32>
    %46 = vector.extract_strided_slice %45 {offsets = [0, 0], sizes = [16, 2], strides = [1, 1]} : vector<104x2xf32> to vector<16x2xf32>
    %47 = vector.extract_strided_slice %45 {offsets = [16, 0], sizes = [16, 1], strides = [1, 1]} : vector<104x2xf32> to vector<16x1xf32>
    %48 = vector.extract_strided_slice %45 {offsets = [16, 1], sizes = [16, 1], strides = [1, 1]} : vector<104x2xf32> to vector<16x1xf32>
    %49 = arith.minimumf %47, %48 : vector<16x1xf32>
    %cst_13 = arith.constant 1.000000e+00 : f32
    %50 = vector.broadcast %cst_13 : f32 to vector<16x1xf32>
    %51 = arith.subf %50, %12 : vector<16x1xf32>
    %cst_14 = arith.constant 9.900000e-01 : f32
    %52 = vector.broadcast %cst_14 : f32 to vector<16x1xf32>
    %53 = arith.mulf %52, %51 : vector<16x1xf32>
    %54 = arith.mulf %53, %49 : vector<16x1xf32>
    %55 = arith.addf %11, %54 : vector<16x1xf32>
    %56 = vector.broadcast %55 : vector<16x1xf32> to vector<16x2xf32>
    %57 = arith.subf %46, %56 : vector<16x2xf32>
    %58 = arith.mulf %57, %57 : vector<16x2xf32>
    %59 = vector.extract_strided_slice %58 {offsets = [0, 0], sizes = [8, 2], strides = [1, 1]} : vector<16x2xf32> to vector<8x2xf32>
    %60 = vector.shape_cast %59 : vector<8x2xf32> to vector<1x8x2xf32>
    %cst_15 = arith.constant dense<0.000000e+00> : vector<1xf32>
    %61 = vector.multi_reduction <add>, %60, %cst_15 [1, 2] : vector<1x8x2xf32> to vector<1xf32>
    %62 = vector.shape_cast %61 : vector<1xf32> to vector<1x1x1xf32>
    %63 = vector.extract %62[0, 0, 0] : f32 from vector<1x1x1xf32>
    %cst_16 = arith.constant 1.250000e-01 : f32
    %64 = arith.mulf %63, %cst_16 : f32
    %65 = vector.extract_strided_slice %58 {offsets = [8, 0], sizes = [8, 2], strides = [1, 1]} : vector<16x2xf32> to vector<8x2xf32>
    %66 = vector.shape_cast %65 : vector<8x2xf32> to vector<1x8x2xf32>
    %cst_17 = arith.constant dense<0.000000e+00> : vector<1xf32>
    %67 = vector.multi_reduction <add>, %66, %cst_17 [1, 2] : vector<1x8x2xf32> to vector<1xf32>
    %68 = vector.shape_cast %67 : vector<1xf32> to vector<1x1x1xf32>
    %69 = vector.extract %68[0, 0, 0] : f32 from vector<1x1x1xf32>
    %cst_18 = arith.constant 1.250000e-01 : f32
    %70 = arith.mulf %69, %cst_18 : f32
    %71 = arith.addf %64, %70 : f32
    %72 = vector.extract_strided_slice %45 {offsets = [8, 0], sizes = [8, 2], strides = [1, 1]} : vector<104x2xf32> to vector<8x2xf32>
    %73 = vector.extract_strided_slice %45 {offsets = [32, 0], sizes = [8, 2], strides = [1, 1]} : vector<104x2xf32> to vector<8x2xf32>
    %74 = vector.extract_strided_slice %45 {offsets = [40, 0], sizes = [64, 2], strides = [1, 1]} : vector<104x2xf32> to vector<64x2xf32>
    %75 = vector.shape_cast %74 : vector<64x2xf32> to vector<8x8x2xf32>
    %cst_19 = arith.constant 1.000000e+00 : f32
    %76 = vector.broadcast %cst_19 : f32 to vector<8x8x2xf32>
    %77 = arith.mulf %75, %76 : vector<8x8x2xf32>
    %cst_20 = arith.constant 1.000000e+00 : f32
    %78 = vector.broadcast %cst_20 : f32 to vector<8x2xf32>
    %79 = arith.mulf %73, %78 : vector<8x2xf32>
    %cst_21 = arith.constant dense<0xFF800000> : vector<8x2xf32>
    %80 = vector.multi_reduction <maximumf>, %77, %cst_21 [1] : vector<8x8x2xf32> to vector<8x2xf32>
    %81 = arith.maximumf %80, %79 : vector<8x2xf32>
    %82 = vector.shape_cast %81 : vector<8x2xf32> to vector<8x1x2xf32>
    %83 = vector.broadcast %82 : vector<8x1x2xf32> to vector<8x8x2xf32>
    %84 = arith.subf %77, %83 : vector<8x8x2xf32>
    %85 = math.exp %84 : vector<8x8x2xf32>
    %cst_22 = arith.constant dense<0.000000e+00> : vector<8x2xf32>
    %86 = vector.multi_reduction <add>, %85, %cst_22 [1] : vector<8x8x2xf32> to vector<8x2xf32>
    %87 = arith.subf %79, %81 : vector<8x2xf32>
    %88 = math.exp %87 : vector<8x2xf32>
    %89 = arith.addf %86, %88 : vector<8x2xf32>
    %90 = math.log %89 : vector<8x2xf32>
    %91 = arith.addf %81, %90 : vector<8x2xf32>
    %92 = vector.shape_cast %91 : vector<8x2xf32> to vector<1x8x2xf32>
    %cst_23 = arith.constant dense<0.000000e+00> : vector<1xf32>
    %93 = vector.multi_reduction <add>, %92, %cst_23 [1, 2] : vector<1x8x2xf32> to vector<1xf32>
    %94 = vector.shape_cast %93 : vector<1xf32> to vector<1x1x1xf32>
    %95 = vector.extract %94[0, 0, 0] : f32 from vector<1x1x1xf32>
    %cst_24 = arith.constant 1.000000e+00 : f32
    %96 = arith.mulf %cst_24, %95 : f32
    %97 = vector.shape_cast %72 : vector<8x2xf32> to vector<1x8x2xf32>
    %cst_25 = arith.constant dense<0.000000e+00> : vector<1xf32>
    %98 = vector.multi_reduction <add>, %97, %cst_25 [1, 2] : vector<1x8x2xf32> to vector<1xf32>
    %99 = vector.shape_cast %98 : vector<1xf32> to vector<1x1x1xf32>
    %100 = vector.extract %99[0, 0, 0] : f32 from vector<1x1x1xf32>
    %101 = arith.subf %96, %100 : f32
    %cst_26 = arith.constant 8.000000e+00 : f32
    %102 = arith.divf %101, %cst_26 : f32
    %cst_27 = arith.constant 1.000000e+00 : f32
    %103 = arith.mulf %cst_27, %71 : f32
    %cst_28 = arith.constant 1.000000e+00 : f32
    %104 = arith.mulf %cst_28, %102 : f32
    %105 = arith.addf %103, %104 : f32
    %c0_29 = arith.constant 0 : index
    %106 = memref.load %arg2[%c0_29] : memref<3xf32, #tpu.memory_space<smem>>
    memref.store %105, %arg2[%c0_29] : memref<3xf32, #tpu.memory_space<smem>>
    %c1 = arith.constant 1 : index
    %107 = memref.load %arg2[%c1] : memref<3xf32, #tpu.memory_space<smem>>
    memref.store %71, %arg2[%c1] : memref<3xf32, #tpu.memory_space<smem>>
    %c2 = arith.constant 2 : index
    %108 = memref.load %arg2[%c2] : memref<3xf32, #tpu.memory_space<smem>>
    memref.store %102, %arg2[%c2] : memref<3xf32, #tpu.memory_space<smem>>
    return
  }
}

</mosaic_0001>

<llo_original>
// kernel: tpu_custom_call.1
$region0: #{tpu_custom_call.1}
  #allocation0 [shape = 'u32[]', space=smem, size = 0x4, offset = 0x4, fixed_abs, tag = 'smem constant byte address 0x4 - core index']
  #allocation1 [shape = 'u32[144,128]{1,0:T(1,128)}', space=vmem, size = 0x12000, scoped, tag = 'internal scratch']
  %s0 = inlined_call_operand.hbm [shape: f32[80,128], index: 0, kind: input, shape index: {}]
  %s1 = inlined_call_operand.hbm [shape: f32[144,128], index: 1, kind: input, shape index: {}]
  %s2 = inlined_call_operand.hbm [shape: f32[3], index: 2, kind: output, shape index: {}]
  %s3 = sld [smem:[#allocation0]]
  $region26: #{tpu_custom_call.1} parent=0
    _
  %s5 = ssub.s32 1, %s3
  %s6 = scalar_select 0, %s5, %s3
  $region1: #{tpu_custom_call.1} parent=0
    #allocation2 [shape = 'u8[40960]{0}', space=vmem, size = 0xa000, scoped, tag = 'input window, operand 0, single buffered']
    #allocation3 [shape = 's32[1]{0}', space=sflag, size = 0x4, scoped, tag = 'scoped memory for tpu_custom_call.1']
    #allocation4 [shape = 's32[1]{0}', space=sflag, size = 0x4, scoped, tag = 'scoped memory for tpu_custom_call.1']
    #allocation5 [shape = 'u8[73728]{0}', space=vmem, size = 0x12000, scoped, tag = 'input window, operand 1, single buffered']
    #allocation6 [shape = 's32[1]{0}', space=sflag, size = 0x4, scoped, tag = 'scoped memory for tpu_custom_call.1']
    #allocation7 [shape = 'u8[512]{0}', space=smem, size = 0x200, scoped, tag = 'output window, operand 0, single buffered']
    %7 = vsyncpa [#allocation3], 0
    %8 = vsyncpa [#allocation6], 0
    %9 = vsyncpa [#allocation4], 0
    // Predicated region
    $region2: #{tpu_custom_call.1} parent=1 // pred_check
      _
    $region3: #{tpu_custom_call.1} parent=1 // pred_check_branch
      %11 = sbr.rel (0) target = $region5
    $region4: #{tpu_custom_call.1} parent=1 // pred_region
      %s13 = ssub.s32 1280, 1280
      %14 = vsyncadd [#allocation3], %s13
      %s15 = sshll.u32 [#allocation2], 4
      %s16 = int_to_ptr.vmem [resolvable:$true] %s15
      %21 = dma.hbm_to_vmem [thread:$0]  %s0, 1280, %s16, [#allocation3], 128, 128, 8
    $region5: #{tpu_custom_call.1} parent=1 // pred_fallthru
      _
    // Predicated region
    $region6: #{tpu_custom_call.1} parent=1 // pred_check
      _
    $region7: #{tpu_custom_call.1} parent=1 // pred_check_branch
      %23 = sbr.rel (0) target = $region9
    $region8: #{tpu_custom_call.1} parent=1 // pred_region
      %s25 = ssub.s32 2304, 2304
      %26 = vsyncadd [#allocation6], %s25
      %s27 = sshll.u32 [#allocation5], 4
      %s28 = int_to_ptr.vmem [resolvable:$true] %s27
      %33 = dma.hbm_to_vmem [thread:$0]  %s1, 2304, %s28, [#allocation6], 128, 128, 8
    $region9: #{tpu_custom_call.1} parent=1 // pred_fallthru
      _
    // Predicated region
    $region10: #{tpu_custom_call.1} parent=1 // pred_check
      _
    $region11: #{tpu_custom_call.1} parent=1 // pred_check_branch
      %35 = sbr.rel (0) target = $region13
    $region12: #{tpu_custom_call.1} parent=1 // pred_region
      %36 = dma.done [#allocation3], 1280
    $region13: #{tpu_custom_call.1} parent=1 // pred_fallthru
      _
    // Predicated region
    $region14: #{tpu_custom_call.1} parent=1 // pred_check
      _
    $region15: #{tpu_custom_call.1} parent=1 // pred_check_branch
      %38 = sbr.rel (0) target = $region17
    $region16: #{tpu_custom_call.1} parent=1 // pred_region
      %39 = dma.done [#allocation6], 2304
    $region17: #{tpu_custom_call.1} parent=1 // pred_fallthru
      _
    %v40 = vld [vmem:[#allocation5] sm:$0xff]
    %v41 = vld [vmem:[#allocation5 + $0x8] sm:$0xff]
    %v42 = vld [vmem:[#allocation5 + $0x10] sm:$0xff]
    %v43 = vld [vmem:[#allocation5 + $0x18] sm:$0xff]
    %v44 = vld [vmem:[#allocation5 + $0x20] sm:$0xff]
    %v45 = vld [vmem:[#allocation5 + $0x28] sm:$0xff]
    %v46 = vld [vmem:[#allocation5 + $0x30] sm:$0xff]
    %v47 = vld [vmem:[#allocation5 + $0x38] sm:$0xff]
    %v48 = vld [vmem:[#allocation5 + $0x40] sm:$0xff]
    %v49 = vld [vmem:[#allocation5 + $0x48] sm:$0xff]
    %v50 = vld [vmem:[#allocation5 + $0x50] sm:$0xff]
    %v51 = vld [vmem:[#allocation5 + $0x58] sm:$0xff]
    %v52 = vld [vmem:[#allocation5 + $0x60] sm:$0xff]
    %v53 = vld [vmem:[#allocation5 + $0x68] sm:$0xff]
    %v54 = vld [vmem:[#allocation5 + $0x70] sm:$0xff]
    %v55 = vld [vmem:[#allocation5 + $0x78] sm:$0xff]
    %v56 = vld [vmem:[#allocation5 + $0x80] sm:$0xff]
    %v57 = vld [vmem:[#allocation5 + $0x88] sm:$0xff]
    %v58 = vld [vmem:[#allocation2] sm:$0xff]
    %v59 = vld [vmem:[#allocation2 + $0x8] sm:$0xff]
    %v60 = vld [vmem:[#allocation2 + $0x10] sm:$0xff]
    %v61 = vld [vmem:[#allocation2 + $0x18] sm:$0xff]
    %v62 = vld [vmem:[#allocation2 + $0x20] sm:$0xff]
    %v63 = vld [vmem:[#allocation2 + $0x28] sm:$0xff]
    %v64 = vld [vmem:[#allocation2 + $0x30] sm:$0xff]
    %v65 = vld [vmem:[#allocation2 + $0x38] sm:$0xff]
    %v66 = vld [vmem:[#allocation2 + $0x40] sm:$0xff]
    %v67 = vld [vmem:[#allocation2 + $0x48] sm:$0xff]
    %70 = vrot.lane.b32.xlu0 %v58, 96
    %v71 = vpop.permute.xlu0 %70
    %72 = vrot.lane.b32.xlu0 %v59, 96
    %v73 = vpop.permute.xlu0 %72
    %vm74 = vcmask 261120
    %v75 = vsel %vm74, %v58, 0
    %v77 = vsel %vm74, %v59, 0
    %v79 = vsel %vm74, %v71, 0
    %v81 = vsel %vm74, %v73, 0
    %83 = vmatprep.subr.mxu0 0.0
    %v84 = vand.u32 %v40, 4294901760
    %85 = vmatpush1.msra.mxu0 %v84
    %86 = vmatprep.subr.mxu0 0.0
    %v87 = vand.u32 %v41, 4294901760
    %88 = vmatpush1.msra.mxu0 %v87
    %89 = vmatprep.subr.mxu0 0.0
    %v90 = vand.u32 %v42, 4294901760
    %91 = vmatpush1.msra.mxu0 %v90
    %92 = vmatprep.subr.mxu0 0.0
    %v93 = vand.u32 %v43, 4294901760
    %94 = vmatpush1.msra.mxu0 %v93
    %95 = vmatprep.subr.mxu0 0.0
    %96 = vmatpush1.msra.mxu0 0.0
    %97 = vmatprep.subr.mxu0 0.0
    %98 = vmatpush1.msra.mxu0 0.0
    %99 = vmatprep.subr.mxu0 0.0
    %100 = vmatpush1.msra.mxu0 0.0
    %101 = vmatprep.subr.mxu0 0.0
    %102 = vmatpush1.msra.mxu0 0.0
    %103 = vmatprep.subr.mxu0 0.0
    %104 = vmatpush1.msra.mxu0 0.0
    %105 = vmatprep.subr.mxu0 0.0
    %106 = vmatpush1.msra.mxu0 0.0
    %107 = vmatprep.subr.mxu0 0.0
    %108 = vmatpush1.msra.mxu0 0.0
    %109 = vmatprep.subr.mxu0 0.0
    %110 = vmatpush1.msra.mxu0 0.0
    %111 = vmatprep.subr.mxu0 0.0
    %112 = vmatpush1.msra.mxu0 0.0
    %113 = vmatprep.subr.mxu0 0.0
    %114 = vmatpush1.msra.mxu0 0.0
    %115 = vmatprep.subr.mxu0 0.0
    %116 = vmatpush1.msra.mxu0 0.0
    %117 = vmatprep.subr.mxu0 0.0
    %118 = vmatpush1.msra.mxu0 0.0
    %119 = vmatprep.subr.mxu0 0.0
    %120 = vmatpush1.msra.mxu0 0.0
    %121 = vmatprep.subr.mxu0 0.0
    %122 = vmatpush1.msra.mxu0 0.0
    %123 = vmatprep.subr.mxu0 0.0
    %124 = vmatpush1.msra.mxu0 0.0
    %125 = vmatprep.subr.mxu0 0.0
    %126 = vmatpush1.msra.mxu0 0.0
    %127 = vmatprep.subr.mxu0 0.0
    %128 = vmatpush1.msra.mxu0 0.0
    %129 = vmatprep.subr.mxu0 0.0
    %130 = vmatpush1.msra.mxu0 0.0
    %131 = vmatprep.subr.mxu0 0.0
    %132 = vmatpush1.msra.mxu0 0.0
    %133 = vmatprep.subr.mxu0 0.0
    %134 = vmatpush1.msra.mxu0 0.0
    %135 = vmatprep.subr.mxu0 0.0
    %136 = vmatpush1.msra.mxu0 0.0
    %137 = vmatprep.subr.mxu0 0.0
    %138 = vmatpush1.msra.mxu0 0.0
    %139 = vmatprep.subr.mxu0 0.0
    %140 = vmatpush1.msra.mxu0 0.0
    %141 = vmatprep.subr.mxu0 0.0
    %142 = vmatpush1.msra.mxu0 0.0
    %143 = vmatprep.subr.mxu0 0.0
    %144 = vmatpush1.msra.mxu0 0.0
    %145 = vmatprep.subr.mxu0 0.0
    %146 = vmatpush1.msra.mxu0 0.0
    %147 = vmatprep.subr.mxu0 0.0
    %148 = vmatpush1.msra.mxu0 0.0
    %149 = vmatprep.subr.mxu0 0.0
    %150 = vmatpush1.msra.mxu0 0.0
    %151 = vmatprep.mubr.f32.mxu0 0.0
    %v152 = vand.u32 %v75, 4294901760
    %v153 = vsub.f32 %v75, %v152
    %v154 = vand.u32 %v153, 4294901760
    %v155 = vsub.f32 %v153, %v154
    %v156 = vand.u32 %v155, 4294901760
    %157 = vmatmul.mubr.f32.gmra.mrb[0].mxu0 %v156
    %v158 = vpop.f32.mrb[0].mxu0
    %v159 = vadd.f32 0.0, %v158
    %v160 = vpop.f32.mrb[0].mxu0
    %161 = vmatprep.mubr.f32.mxu0 0.0
    %v162 = vand.u32 %v77, 4294901760
    %v163 = vsub.f32 %v77, %v162
    %v164 = vand.u32 %v163, 4294901760
    %v165 = vsub.f32 %v163, %v164
    %v166 = vand.u32 %v165, 4294901760
    %167 = vmatmul.mubr.f32.gmra.mrb[0].mxu0 %v166
    %v168 = vpop.f32.mrb[0].mxu0
    %v169 = vadd.f32 0.0, %v168
    %v170 = vpop.f32.mrb[0].mxu0
    %171 = vmatprep.mubr.f32.mxu0 0.0
    %v172 = vand.u32 %v79, 4294901760
    %v173 = vsub.f32 %v79, %v172
    %v174 = vand.u32 %v173, 4294901760
    %v175 = vsub.f32 %v173, %v174
    %v176 = vand.u32 %v175, 4294901760
    %177 = vmatmul.mubr.f32.gmra.mrb[0].mxu0 %v176
    %v178 = vpop.f32.mrb[0].mxu0
    %v179 = vadd.f32 0.0, %v178
    %v180 = vpop.f32.mrb[0].mxu0
    %181 = vmatprep.mubr.f32.mxu0 0.0
    %v182 = vand.u32 %v81, 4294901760
    %v183 = vsub.f32 %v81, %v182
    %v184 = vand.u32 %v183, 4294901760
    %v185 = vsub.f32 %v183, %v184
    %v186 = vand.u32 %v185, 4294901760
    %187 = vmatmul.mubr.f32.gmra.mrb[0].mxu0 %v186
    %v188 = vpop.f32.mrb[0].mxu0
    %v189 = vadd.f32 0.0, %v188
    %v190 = vpop.f32.mrb[0].mxu0
    %191 = vdwg.mxu0
    %192 = vmatprep.subr.mxu0 0.0
    %v193 = vand.u32 %v40, 4294901760
    %v194 = vsub.f32 %v40, %v193
    %v195 = vand.u32 %v194, 4294901760
    %v196 = vsub.f32 %v194, %v195
    %v197 = vand.u32 %v196, 4294901760
    %198 = vmatpush1.msra.mxu0 %v197
    %199 = vmatprep.subr.mxu0 0.0
    %v200 = vand.u32 %v41, 4294901760
    %v201 = vsub.f32 %v41, %v200
    %v202 = vand.u32 %v201, 4294901760
    %v203 = vsub.f32 %v201, %v202
    %v204 = vand.u32 %v203, 4294901760
    %205 = vmatpush1.msra.mxu0 %v204
    %206 = vmatprep.subr.mxu0 0.0
    %v207 = vand.u32 %v42, 4294901760
    %v208 = vsub.f32 %v42, %v207
    %v209 = vand.u32 %v208, 4294901760
    %v210 = vsub.f32 %v208, %v209
    %v211 = vand.u32 %v210, 4294901760
    %212 = vmatpush1.msra.mxu0 %v211
    %213 = vmatprep.subr.mxu0 0.0
    %v214 = vand.u32 %v43, 4294901760
    %v215 = vsub.f32 %v43, %v214
    %v216 = vand.u32 %v215, 4294901760
    %v217 = vsub.f32 %v215, %v216
    %v218 = vand.u32 %v217, 4294901760
    %219 = vmatpush1.msra.mxu0 %v218
    %220 = vmatprep.subr.mxu0 0.0
    %221 = vmatpush1.msra.mxu0 0.0
    %222 = vmatprep.subr.mxu0 0.0
    %223 = vmatpush1.msra.mxu0 0.0
    %224 = vmatprep.subr.mxu0 0.0
    %225 = vmatpush1.msra.mxu0 0.0
    %226 = vmatprep.subr.mxu0 0.0
    %227 = vmatpush1.msra.mxu0 0.0
    %228 = vmatprep.subr.mxu0 0.0
    %229 = vmatpush1.msra.mxu0 0.0
    %230 = vmatprep.subr.mxu0 0.0
    %231 = vmatpush1.msra.mxu0 0.0
    %232 = vmatprep.subr.mxu0 0.0
    %233 = vmatpush1.msra.mxu0 0.0
    %234 = vmatprep.subr.mxu0 0.0
    %235 = vmatpush1.msra.mxu0 0.0
    %236 = vmatprep.subr.mxu0 0.0
    %237 = vmatpush1.msra.mxu0 0.0
    %238 = vmatprep.subr.mxu0 0.0
    %239 = vmatpush1.msra.mxu0 0.0
    %240 = vmatprep.subr.mxu0 0.0
    %241 = vmatpush1.msra.mxu0 0.0
    %242 = vmatprep.subr.mxu0 0.0
    %243 = vmatpush1.msra.mxu0 0.0
    %244 = vmatprep.subr.mxu0 0.0
    %245 = vmatpush1.msra.mxu0 0.0
    %246 = vmatprep.subr.mxu0 0.0
    %247 = vmatpush1.msra.mxu0 0.0
    %248 = vmatprep.subr.mxu0 0.0
    %249 = vmatpush1.msra.mxu0 0.0
    %250 = vmatprep.subr.mxu0 0.0
    %251 = vmatpush1.msra.mxu0 0.0
    %252 = vmatprep.subr.mxu0 0.0
    %253 = vmatpush1.msra.mxu0 0.0
    %254 = vmatprep.subr.mxu0 0.0
    %255 = vmatpush1.msra.mxu0 0.0
    %256 = vmatprep.subr.mxu0 0.0
    %257 = vmatpush1.msra.mxu0 0.0
    %258 = vmatprep.subr.mxu0 0.0
    %259 = vmatpush1.msra.mxu0 0.0
    %260 = vmatprep.subr.mxu0 0.0
    %261 = vmatpush1.msra.mxu0 0.0
    %262 = vmatprep.subr.mxu0 0.0
    %263 = vmatpush1.msra.mxu0 0.0
    %264 = vmatprep.subr.mxu0 0.0
    %265 = vmatpush1.msra.mxu0 0.0
    %266 = vmatprep.subr.mxu0 0.0
    %267 = vmatpush1.msra.mxu0 0.0
    %268 = vmatprep.subr.mxu0 0.0
    %269 = vmatpush1.msra.mxu0 0.0
    %270 = vmatprep.subr.mxu0 0.0
    %271 = vmatpush1.msra.mxu0 0.0
    %272 = vmatprep.subr.mxu0 0.0
    %273 = vmatpush1.msra.mxu0 0.0
    %274 = vmatprep.subr.mxu0 0.0
    %275 = vmatpush1.msra.mxu0 0.0
    %276 = vmatprep.mubr.f32.mxu0 0.0
    %v277 = vand.u32 %v75, 4294901760
    %278 = vmatmul.mubr.f32.gmra.mrb[0].mxu0 %v277
    %v279 = vpop.f32.mrb[0].mxu0
    %v280 = vadd.f32 %v159, %v279
    %v281 = vpop.f32.mrb[0].mxu0
    %282 = vmatprep.mubr.f32.mxu0 0.0
    %v283 = vand.u32 %v77, 4294901760
    %284 = vmatmul.mubr.f32.gmra.mrb[0].mxu0 %v283
    %v285 = vpop.f32.mrb[0].mxu0
    %v286 = vadd.f32 %v169, %v285
    %v287 = vpop.f32.mrb[0].mxu0
    %288 = vmatprep.mubr.f32.mxu0 0.0
    %v289 = vand.u32 %v79, 4294901760
    %290 = vmatmul.mubr.f32.gmra.mrb[0].mxu0 %v289
    %v291 = vpop.f32.mrb[0].mxu0
    %v292 = vadd.f32 %v179, %v291
    %v293 = vpop.f32.mrb[0].mxu0
    %294 = vmatprep.mubr.f32.mxu0 0.0
    %v295 = vand.u32 %v81, 4294901760
    %296 = vmatmul.mubr.f32.gmra.mrb[0].mxu0 %v295
    %v297 = vpop.f32.mrb[0].mxu0
    %v298 = vadd.f32 %v189, %v297
    %v299 = vpop.f32.mrb[0].mxu0
    %300 = vdwg.mxu0
    %301 = vmatprep.subr.mxu0 0.0
    %v302 = vand.u32 %v40, 4294901760
    %v303 = vsub.f32 %v40, %v302
    %304 = vmatpush1.msra.mxu0 %v303
    %305 = vmatprep.subr.mxu0 0.0
    %v306 = vand.u32 %v41, 4294901760
    %v307 = vsub.f32 %v41, %v306
    %308 = vmatpush1.msra.mxu0 %v307
    %309 = vmatprep.subr.mxu0 0.0
    %v310 = vand.u32 %v42, 4294901760
    %v311 = vsub.f32 %v42, %v310
    %312 = vmatpush1.msra.mxu0 %v311
    %313 = vmatprep.subr.mxu0 0.0
    %v314 = vand.u32 %v43, 4294901760
    %v315 = vsub.f32 %v43, %v314
    %316 = vmatpush1.msra.mxu0 %v315
    %317 = vmatprep.subr.mxu0 0.0
    %318 = vmatpush1.msra.mxu0 0.0
    %319 = vmatprep.subr.mxu0 0.0
    %320 = vmatpush1.msra.mxu0 0.0
    %321 = vmatprep.subr.mxu0 0.0
    %322 = vmatpush1.msra.mxu0 0.0
    %323 = vmatprep.subr.mxu0 0.0
    %324 = vmatpush1.msra.mxu0 0.0
    %325 = vmatprep.subr.mxu0 0.0
    %326 = vmatpush1.msra.mxu0 0.0
    %327 = vmatprep.subr.mxu0 0.0
    %328 = vmatpush1.msra.mxu0 0.0
    %329 = vmatprep.subr.mxu0 0.0
    %330 = vmatpush1.msra.mxu0 0.0
    %331 = vmatprep.subr.mxu0 0.0
    %332 = vmatpush1.msra.mxu0 0.0
    %333 = vmatprep.subr.mxu0 0.0
    %334 = vmatpush1.msra.mxu0 0.0
    %335 = vmatprep.subr.mxu0 0.0
    %336 = vmatpush1.msra.mxu0 0.0
    %337 = vmatprep.subr.mxu0 0.0
    %338 = vmatpush1.msra.mxu0 0.0
    %339 = vmatprep.subr.mxu0 0.0
    %340 = vmatpush1.msra.mxu0 0.0
    %341 = vmatprep.subr.mxu0 0.0
    %342 = vmatpush1.msra.mxu0 0.0
    %343 = vmatprep.subr.mxu0 0.0
    %344 = vmatpush1.msra.mxu0 0.0
    %345 = vmatprep.subr.mxu0 0.0
    %346 = vmatpush1.msra.mxu0 0.0
    %347 = vmatprep.subr.mxu0 0.0
    %348 = vmatpush1.msra.mxu0 0.0
    %349 = vmatprep.subr.mxu0 0.0
    %350 = vmatpush1.msra.mxu0 0.0
    %351 = vmatprep.subr.mxu0 0.0
    %352 = vmatpush1.msra.mxu0 0.0
    %353 = vmatprep.subr.mxu0 0.0
    %354 = vmatpush1.msra.mxu0 0.0
    %355 = vmatprep.subr.mxu0 0.0
    %356 = vmatpush1.msra.mxu0 0.0
    %357 = vmatprep.subr.mxu0 0.0
    %358 = vmatpush1.msra.mxu0 0.0
    %359 = vmatprep.subr.mxu0 0.0
    %360 = vmatpush1.msra.mxu0 0.0
    %361 = vmatprep.subr.mxu0 0.0
    %362 = vmatpush1.msra.mxu0 0.0
    %363 = vmatprep.subr.mxu0 0.0
    %364 = vmatpush1.msra.mxu0 0.0
    %365 = vmatprep.subr.mxu0 0.0
    %366 = vmatpush1.msra.mxu0 0.0
    %367 = vmatprep.subr.mxu0 0.0
    %368 = vmatpush1.msra.mxu0 0.0
    %369 = vmatprep.subr.mxu0 0.0
    %370 = vmatpush1.msra.mxu0 0.0
    %371 = vmatprep.subr.mxu0 0.0
    %372 = vmatpush1.msra.mxu0 0.0
    %373 = vmatprep.mubr.f32.mxu0 0.0
    %v374 = vand.u32 %v75, 4294901760
    %v375 = vsub.f32 %v75, %v374
    %376 = vmatmul.mubr.f32.gmra.mrb[0].mxu0 %v375
    %v377 = vpop.f32.mrb[0].mxu0
    %v378 = vadd.f32 %v280, %v377
    %v379 = vpop.f32.mrb[0].mxu0
    %380 = vmatprep.mubr.f32.mxu0 0.0
    %v381 = vand.u32 %v77, 4294901760
    %v382 = vsub.f32 %v77, %v381
    %383 = vmatmul.mubr.f32.gmra.mrb[0].mxu0 %v382
    %v384 = vpop.f32.mrb[0].mxu0
    %v385 = vadd.f32 %v286, %v384
    %v386 = vpop.f32.mrb[0].mxu0
    %387 = vmatprep.mubr.f32.mxu0 0.0
    %v388 = vand.u32 %v79, 4294901760
    %v389 = vsub.f32 %v79, %v388
    %390 = vmatmul.mubr.f32.gmra.mrb[0].mxu0 %v389
    %v391 = vpop.f32.mrb[0].mxu0
    %v392 = vadd.f32 %v292, %v391
    %v393 = vpop.f32.mrb[0].mxu0
    %394 = vmatprep.mubr.f32.mxu0 0.0
    %v395 = vand.u32 %v81, 4294901760
    %v396 = vsub.f32 %v81, %v395
    %397 = vmatmul.mubr.f32.gmra.mrb[0].mxu0 %v396
    %v398 = vpop.f32.mrb[0].mxu0
    %v399 = vadd.f32 %v298, %v398
    %v400 = vpop.f32.mrb[0].mxu0
    %401 = vdwg.mxu0
    %402 = vmatprep.subr.mxu0 0.0
    %v403 = vand.u32 %v40, 4294901760
    %404 = vmatpush1.msra.mxu0 %v403
    %405 = vmatprep.subr.mxu0 0.0
    %v406 = vand.u32 %v41, 4294901760
    %407 = vmatpush1.msra.mxu0 %v406
    %408 = vmatprep.subr.mxu0 0.0
    %v409 = vand.u32 %v42, 4294901760
    %410 = vmatpush1.msra.mxu0 %v409
    %411 = vmatprep.subr.mxu0 0.0
    %v412 = vand.u32 %v43, 4294901760
    %413 = vmatpush1.msra.mxu0 %v412
    %414 = vmatprep.subr.mxu0 0.0
    %415 = vmatpush1.msra.mxu0 0.0
    %416 = vmatprep.subr.mxu0 0.0
    %417 = vmatpush1.msra.mxu0 0.0
    %418 = vmatprep.subr.mxu0 0.0
    %419 = vmatpush1.msra.mxu0 0.0
    %420 = vmatprep.subr.mxu0 0.0
    %421 = vmatpush1.msra.mxu0 0.0
    %422 = vmatprep.subr.mxu0 0.0
    %423 = vmatpush1.msra.mxu0 0.0
    %424 = vmatprep.subr.mxu0 0.0
    %425 = vmatpush1.msra.mxu0 0.0
    %426 = vmatprep.subr.mxu0 0.0
    %427 = vmatpush1.msra.mxu0 0.0
    %428 = vmatprep.subr.mxu0 0.0
    %429 = vmatpush1.msra.mxu0 0.0
    %430 = vmatprep.subr.mxu0 0.0
    %431 = vmatpush1.msra.mxu0 0.0
    %432 = vmatprep.subr.mxu0 0.0
    %433 = vmatpush1.msra.mxu0 0.0
    %434 = vmatprep.subr.mxu0 0.0
    %435 = vmatpush1.msra.mxu0 0.0
    %436 = vmatprep.subr.mxu0 0.0
    %437 = vmatpush1.msra.mxu0 0.0
    %438 = vmatprep.subr.mxu0 0.0
    %439 = vmatpush1.msra.mxu0 0.0
    %440 = vmatprep.subr.mxu0 0.0
    %441 = vmatpush1.msra.mxu0 0.0
    %442 = vmatprep.subr.mxu0 0.0
    %443 = vmatpush1.msra.mxu0 0.0
    %444 = vmatprep.subr.mxu0 0.0
    %445 = vmatpush1.msra.mxu0 0.0
    %446 = vmatprep.subr.mxu0 0.0
    %447 = vmatpush1.msra.mxu0 0.0
    %448 = vmatprep.subr.mxu0 0.0
    %449 = vmatpush1.msra.mxu0 0.0
    %450 = vmatprep.subr.mxu0 0.0
    %451 = vmatpush1.msra.mxu0 0.0
    %452 = vmatprep.subr.mxu0 0.0
    %453 = vmatpush1.msra.mxu0 0.0
    %454 = vmatprep.subr.mxu0 0.0
    %455 = vmatpush1.msra.mxu0 0.0
    %456 = vmatprep.subr.mxu0 0.0
    %457 = vmatpush1.msra.mxu0 0.0
    %458 = vmatprep.subr.mxu0 0.0
    %459 = vmatpush1.msra.mxu0 0.0
    %460 = vmatprep.subr.mxu0 0.0
    %461 = vmatpush1.msra.mxu0 0.0
    %462 = vmatprep.subr.mxu0 0.0
    %463 = vmatpush1.msra.mxu0 0.0
    %464 = vmatprep.subr.mxu0 0.0
    %465 = vmatpush1.msra.mxu0 0.0
    %466 = vmatprep.subr.mxu0 0.0
    %467 = vmatpush1.msra.mxu0 0.0
    %468 = vmatprep.subr.mxu0 0.0
    %469 = vmatpush1.msra.mxu0 0.0
    %470 = vmatprep.mubr.f32.mxu0 0.0
    %v471 = vand.u32 %v75, 4294901760
    %v472 = vsub.f32 %v75, %v471
    %v473 = vand.u32 %v472, 4294901760
    %474 = vmatmul.mubr.f32.gmra.mrb[0].mxu0 %v473
    %v475 = vpop.f32.mrb[0].mxu0
    %v476 = vadd.f32 %v378, %v475
    %v477 = vpop.f32.mrb[0].mxu0
    %478 = vmatprep.mubr.f32.mxu0 0.0
    %v479 = vand.u32 %v77, 4294901760
    %v480 = vsub.f32 %v77, %v479
    %v481 = vand.u32 %v480, 4294901760
    %482 = vmatmul.mubr.f32.gmra.mrb[0].mxu0 %v481
    %v483 = vpop.f32.mrb[0].mxu0
    %v484 = vadd.f32 %v385, %v483
    %v485 = vpop.f32.mrb[0].mxu0
    %486 = vmatprep.mubr.f32.mxu0 0.0
    %v487 = vand.u32 %v79, 4294901760
    %v488 = vsub.f32 %v79, %v487
    %v489 = vand.u32 %v488, 4294901760
    %490 = vmatmul.mubr.f32.gmra.mrb[0].mxu0 %v489
    %v491 = vpop.f32.mrb[0].mxu0
    %v492 = vadd.f32 %v392, %v491
    %v493 = vpop.f32.mrb[0].mxu0
    %494 = vmatprep.mubr.f32.mxu0 0.0
    %v495 = vand.u32 %v81, 4294901760
    %v496 = vsub.f32 %v81, %v495
    %v497 = vand.u32 %v496, 4294901760
    %498 = vmatmul.mubr.f32.gmra.mrb[0].mxu0 %v497
    %v499 = vpop.f32.mrb[0].mxu0
    %v500 = vadd.f32 %v399, %v499
    %v501 = vpop.f32.mrb[0].mxu0
    %502 = vdwg.mxu0
    %503 = vmatprep.subr.mxu0 0.0
    %v504 = vand.u32 %v40, 4294901760
    %v505 = vsub.f32 %v40, %v504
    %v506 = vand.u32 %v505, 4294901760
    %507 = vmatpush1.msra.mxu0 %v506
    %508 = vmatprep.subr.mxu0 0.0
    %v509 = vand.u32 %v41, 4294901760
    %v510 = vsub.f32 %v41, %v509
    %v511 = vand.u32 %v510, 4294901760
    %512 = vmatpush1.msra.mxu0 %v511
    %513 = vmatprep.subr.mxu0 0.0
    %v514 = vand.u32 %v42, 4294901760
    %v515 = vsub.f32 %v42, %v514
    %v516 = vand.u32 %v515, 4294901760
    %517 = vmatpush1.msra.mxu0 %v516
    %518 = vmatprep.subr.mxu0 0.0
    %v519 = vand.u32 %v43, 4294901760
    %v520 = vsub.f32 %v43, %v519
    %v521 = vand.u32 %v520, 4294901760
    %522 = vmatpush1.msra.mxu0 %v521
    %523 = vmatprep.subr.mxu0 0.0
    %524 = vmatpush1.msra.mxu0 0.0
    %525 = vmatprep.subr.mxu0 0.0
    %526 = vmatpush1.msra.mxu0 0.0
    %527 = vmatprep.subr.mxu0 0.0
    %528 = vmatpush1.msra.mxu0 0.0
    %529 = vmatprep.subr.mxu0 0.0
    %530 = vmatpush1.msra.mxu0 0.0
    %531 = vmatprep.subr.mxu0 0.0
    %532 = vmatpush1.msra.mxu0 0.0
    %533 = vmatprep.subr.mxu0 0.0
    %534 = vmatpush1.msra.mxu0 0.0
    %535 = vmatprep.subr.mxu0 0.0
    %536 = vmatpush1.msra.mxu0 0.0
    %537 = vmatprep.subr.mxu0 0.0
    %538 = vmatpush1.msra.mxu0 0.0
    %539 = vmatprep.subr.mxu0 0.0
    %540 = vmatpush1.msra.mxu0 0.0
    %541 = vmatprep.subr.mxu0 0.0
    %542 = vmatpush1.msra.mxu0 0.0
    %543 = vmatprep.subr.mxu0 0.0
    %544 = vmatpush1.msra.mxu0 0.0
    %545 = vmatprep.subr.mxu0 0.0
    %546 = vmatpush1.msra.mxu0 0.0
    %547 = vmatprep.subr.mxu0 0.0
    %548 = vmatpush1.msra.mxu0 0.0
    %549 = vmatprep.subr.mxu0 0.0
    %550 = vmatpush1.msra.mxu0 0.0
    %551 = vmatprep.subr.mxu0 0.0
    %552 = vmatpush1.msra.mxu0 0.0
    %553 = vmatprep.subr.mxu0 0.0
    %554 = vmatpush1.msra.mxu0 0.0
    %555 = vmatprep.subr.mxu0 0.0
    %556 = vmatpush1.msra.mxu0 0.0
    %557 = vmatprep.subr.mxu0 0.0
    %558 = vmatpush1.msra.mxu0 0.0
    %559 = vmatprep.subr.mxu0 0.0
    %560 = vmatpush1.msra.mxu0 0.0
    %561 = vmatprep.subr.mxu0 0.0
    %562 = vmatpush1.msra.mxu0 0.0
    %563 = vmatprep.subr.mxu0 0.0
    %564 = vmatpush1.msra.mxu0 0.0
    %565 = vmatprep.subr.mxu0 0.0
    %566 = vmatpush1.msra.mxu0 0.0
    %567 = vmatprep.subr.mxu0 0.0
    %568 = vmatpush1.msra.mxu0 0.0
    %569 = vmatprep.subr.mxu0 0.0
    %570 = vmatpush1.msra.mxu0 0.0
    %571 = vmatprep.subr.mxu0 0.0
    %572 = vmatpush1.msra.mxu0 0.0
    %573 = vmatprep.subr.mxu0 0.0
    %574 = vmatpush1.msra.mxu0 0.0
    %575 = vmatprep.subr.mxu0 0.0
    %576 = vmatpush1.msra.mxu0 0.0
    %577 = vmatprep.subr.mxu0 0.0
    %578 = vmatpush1.msra.mxu0 0.0
    %579 = vmatprep.mubr.f32.mxu0 0.0
    %v580 = vand.u32 %v75, 4294901760
    %581 = vmatmul.mubr.f32.gmra.mrb[0].mxu0 %v580
    %v582 = vpop.f32.mrb[0].mxu0
    %v583 = vadd.f32 %v476, %v582
    %v584 = vpop.f32.mrb[0].mxu0
    %585 = vmatprep.mubr.f32.mxu0 0.0
    %v586 = vand.u32 %v77, 4294901760
    %587 = vmatmul.mubr.f32.gmra.mrb[0].mxu0 %v586
    %v588 = vpop.f32.mrb[0].mxu0
    %v589 = vadd.f32 %v484, %v588
    %v590 = vpop.f32.mrb[0].mxu0
    %591 = vmatprep.mubr.f32.mxu0 0.0
    %v592 = vand.u32 %v79, 4294901760
    %593 = vmatmul.mubr.f32.gmra.mrb[0].mxu0 %v592
    %v594 = vpop.f32.mrb[0].mxu0
    %v595 = vadd.f32 %v492, %v594
    %v596 = vpop.f32.mrb[0].mxu0
    %597 = vmatprep.mubr.f32.mxu0 0.0
    %v598 = vand.u32 %v81, 4294901760
    %599 = vmatmul.mubr.f32.gmra.mrb[0].mxu0 %v598
    %v600 = vpop.f32.mrb[0].mxu0
    %v601 = vadd.f32 %v500, %v600
    %v602 = vpop.f32.mrb[0].mxu0
    %603 = vdwg.mxu0
    %604 = vmatprep.subr.mxu0 0.0
    %v605 = vand.u32 %v40, 4294901760
    %606 = vmatpush1.msra.mxu0 %v605
    %607 = vmatprep.subr.mxu0 0.0
    %v608 = vand.u32 %v41, 4294901760
    %609 = vmatpush1.msra.mxu0 %v608
    %610 = vmatprep.subr.mxu0 0.0
    %v611 = vand.u32 %v42, 4294901760
    %612 = vmatpush1.msra.mxu0 %v611
    %613 = vmatprep.subr.mxu0 0.0
    %v614 = vand.u32 %v43, 4294901760
    %615 = vmatpush1.msra.mxu0 %v614
    %616 = vmatprep.subr.mxu0 0.0
    %617 = vmatpush1.msra.mxu0 0.0
    %618 = vmatprep.subr.mxu0 0.0
    %619 = vmatpush1.msra.mxu0 0.0
    %620 = vmatprep.subr.mxu0 0.0
    %621 = vmatpush1.msra.mxu0 0.0
    %622 = vmatprep.subr.mxu0 0.0
    %623 = vmatpush1.msra.mxu0 0.0
    %624 = vmatprep.subr.mxu0 0.0
    %625 = vmatpush1.msra.mxu0 0.0
    %626 = vmatprep.subr.mxu0 0.0
    %627 = vmatpush1.msra.mxu0 0.0
    %628 = vmatprep.subr.mxu0 0.0
    %629 = vmatpush1.msra.mxu0 0.0
    %630 = vmatprep.subr.mxu0 0.0
    %631 = vmatpush1.msra.mxu0 0.0
    %632 = vmatprep.subr.mxu0 0.0
    %633 = vmatpush1.msra.mxu0 0.0
    %634 = vmatprep.subr.mxu0 0.0
    %635 = vmatpush1.msra.mxu0 0.0
    %636 = vmatprep.subr.mxu0 0.0
    %637 = vmatpush1.msra.mxu0 0.0
    %638 = vmatprep.subr.mxu0 0.0
    %639 = vmatpush1.msra.mxu0 0.0
    %640 = vmatprep.subr.mxu0 0.0
    %641 = vmatpush1.msra.mxu0 0.0
    %642 = vmatprep.subr.mxu0 0.0
    %643 = vmatpush1.msra.mxu0 0.0
    %644 = vmatprep.subr.mxu0 0.0
    %645 = vmatpush1.msra.mxu0 0.0
    %646 = vmatprep.subr.mxu0 0.0
    %647 = vmatpush1.msra.mxu0 0.0
    %648 = vmatprep.subr.mxu0 0.0
    %649 = vmatpush1.msra.mxu0 0.0
    %650 = vmatprep.subr.mxu0 0.0
    %651 = vmatpush1.msra.mxu0 0.0
    %652 = vmatprep.subr.mxu0 0.0
    %653 = vmatpush1.msra.mxu0 0.0
    %654 = vmatprep.subr.mxu0 0.0
    %655 = vmatpush1.msra.mxu0 0.0
    %656 = vmatprep.subr.mxu0 0.0
    %657 = vmatpush1.msra.mxu0 0.0
    %658 = vmatprep.subr.mxu0 0.0
    %659 = vmatpush1.msra.mxu0 0.0
    %660 = vmatprep.subr.mxu0 0.0
    %661 = vmatpush1.msra.mxu0 0.0
    %662 = vmatprep.subr.mxu0 0.0
    %663 = vmatpush1.msra.mxu0 0.0
    %664 = vmatprep.subr.mxu0 0.0
    %665 = vmatpush1.msra.mxu0 0.0
    %666 = vmatprep.subr.mxu0 0.0
    %667 = vmatpush1.msra.mxu0 0.0
    %668 = vmatprep.subr.mxu0 0.0
    %669 = vmatpush1.msra.mxu0 0.0
    %670 = vmatprep.subr.mxu0 0.0
    %671 = vmatpush1.msra.mxu0 0.0
    %672 = vmatprep.mubr.f32.mxu0 0.0
    %v673 = vand.u32 %v75, 4294901760
    %674 = vmatmul.mubr.f32.gmra.mrb[0].mxu0 %v673
    %v675 = vpop.f32.mrb[0].mxu0
    %v676 = vadd.f32 %v583, %v675
    %v677 = vpop.f32.mrb[0].mxu0
    %678 = vmatprep.mubr.f32.mxu0 0.0
    %v679 = vand.u32 %v77, 4294901760
    %680 = vmatmul.mubr.f32.gmra.mrb[0].mxu0 %v679
    %v681 = vpop.f32.mrb[0].mxu0
    %v682 = vadd.f32 %v589, %v681
    %v683 = vpop.f32.mrb[0].mxu0
    %684 = vmatprep.mubr.f32.mxu0 0.0
    %v685 = vand.u32 %v79, 4294901760
    %686 = vmatmul.mubr.f32.gmra.mrb[0].mxu0 %v685
    %v687 = vpop.f32.mrb[0].mxu0
    %v688 = vadd.f32 %v595, %v687
    %v689 = vpop.f32.mrb[0].mxu0
    %690 = vmatprep.mubr.f32.mxu0 0.0
    %v691 = vand.u32 %v81, 4294901760
    %692 = vmatmul.mubr.f32.gmra.mrb[0].mxu0 %v691
    %v693 = vpop.f32.mrb[0].mxu0
    %v694 = vadd.f32 %v601, %v693
    %v695 = vpop.f32.mrb[0].mxu0
    %696 = vdwg.mxu0
    %v697 = vlaneseq
    %v698 = vshrl.u32 %v697, 7
    %v699 = vsub.s32 0, %v698
    %v700 = vrot.slane %v57, %v699
    %v701 = vadd.f32 %v682, %v700
    %v702 = vadd.f32 %v688, %v700
    %v703 = vadd.f32 %v694, %v700
    %v704 = vmax.f32 %v701, 0.0
    %v705 = vmax.f32 %v702, 0.0
    %v706 = vmax.f32 %v703, 0.0
    %v707 = vlaneseq
    %v708 = vshrl.u32 %v707, 7
    %v709 = vsub.s32 1, %v708
    %v710 = vrot.slane %v57, %v709
    %v712 = vsel %vm74, %v704, 0
    %v715 = vsel %vm74, %v705, 0
    %v718 = vsel %vm74, %v706, 0
    %720 = vmatprep.subr.mxu0 0.0
    %v721 = vand.u32 %v45, 4294901760
    %722 = vmatpush1.msra.mxu0 %v721
    %723 = vmatprep.subr.mxu0 0.0
    %v724 = vand.u32 %v46, 4294901760
    %725 = vmatpush1.msra.mxu0 %v724
    %726 = vmatprep.subr.mxu0 0.0
    %v727 = vand.u32 %v47, 4294901760
    %728 = vmatpush1.msra.mxu0 %v727
    %729 = vmatprep.subr.mxu0 0.0
    %v730 = vand.u32 %v48, 4294901760
    %731 = vmatpush1.msra.mxu0 %v730
    %732 = vmatprep.subr.mxu0 0.0
    %733 = vmatpush1.msra.mxu0 0.0
    %734 = vmatprep.subr.mxu0 0.0
    %735 = vmatpush1.msra.mxu0 0.0
    %736 = vmatprep.subr.mxu0 0.0
    %737 = vmatpush1.msra.mxu0 0.0
    %738 = vmatprep.subr.mxu0 0.0
    %739 = vmatpush1.msra.mxu0 0.0
    %740 = vmatprep.subr.mxu0 0.0
    %741 = vmatpush1.msra.mxu0 0.0
    %742 = vmatprep.subr.mxu0 0.0
    %743 = vmatpush1.msra.mxu0 0.0
    %744 = vmatprep.subr.mxu0 0.0
    %745 = vmatpush1.msra.mxu0 0.0
    %746 = vmatprep.subr.mxu0 0.0
    %747 = vmatpush1.msra.mxu0 0.0
    %748 = vmatprep.subr.mxu0 0.0
    %749 = vmatpush1.msra.mxu0 0.0
    %750 = vmatprep.subr.mxu0 0.0
    %751 = vmatpush1.msra.mxu0 0.0
    %752 = vmatprep.subr.mxu0 0.0
    %753 = vmatpush1.msra.mxu0 0.0
    %754 = vmatprep.subr.mxu0 0.0
    %755 = vmatpush1.msra.mxu0 0.0
    %756 = vmatprep.subr.mxu0 0.0
    %757 = vmatpush1.msra.mxu0 0.0
    %758 = vmatprep.subr.mxu0 0.0
    %759 = vmatpush1.msra.mxu0 0.0
    %760 = vmatprep.subr.mxu0 0.0
    %761 = vmatpush1.msra.mxu0 0.0
    %762 = vmatprep.subr.mxu0 0.0
    %763 = vmatpush1.msra.mxu0 0.0
    %764 = vmatprep.subr.mxu0 0.0
    %765 = vmatpush1.msra.mxu0 0.0
    %766 = vmatprep.subr.mxu0 0.0
    %767 = vmatpush1.msra.mxu0 0.0
    %768 = vmatprep.subr.mxu0 0.0
    %769 = vmatpush1.msra.mxu0 0.0
    %770 = vmatprep.subr.mxu0 0.0
    %771 = vmatpush1.msra.mxu0 0.0
    %772 = vmatprep.subr.mxu0 0.0
    %773 = vmatpush1.msra.mxu0 0.0
    %774 = vmatprep.subr.mxu0 0.0
    %775 = vmatpush1.msra.mxu0 0.0
    %776 = vmatprep.subr.mxu0 0.0
    %777 = vmatpush1.msra.mxu0 0.0
    %778 = vmatprep.subr.mxu0 0.0
    %779 = vmatpush1.msra.mxu0 0.0
    %780 = vmatprep.subr.mxu0 0.0
    %781 = vmatpush1.msra.mxu0 0.0
    %782 = vmatprep.subr.mxu0 0.0
    %783 = vmatpush1.msra.mxu0 0.0
    %784 = vmatprep.subr.mxu0 0.0
    %785 = vmatpush1.msra.mxu0 0.0
    %786 = vmatprep.subr.mxu0 0.0
    %787 = vmatpush1.msra.mxu0 0.0
    %788 = vmatprep.mubr.f32.mxu0 0.0
    %v789 = vand.u32 %v712, 4294901760
    %v790 = vsub.f32 %v712, %v789
    %v791 = vand.u32 %v790, 4294901760
    %v792 = vsub.f32 %v790, %v791
    %v793 = vand.u32 %v792, 4294901760
    %794 = vmatmul.mubr.f32.gmra.mrb[0].mxu0 %v793
    %v795 = vpop.f32.mrb[0].mxu0
    %v796 = vadd.f32 %v710, %v795
    %v797 = vpop.f32.mrb[0].mxu0
    %798 = vmatprep.mubr.f32.mxu0 0.0
    %v799 = vand.u32 %v715, 4294901760
    %v800 = vsub.f32 %v715, %v799
    %v801 = vand.u32 %v800, 4294901760
    %v802 = vsub.f32 %v800, %v801
    %v803 = vand.u32 %v802, 4294901760
    %804 = vmatmul.mubr.f32.gmra.mrb[0].mxu0 %v803
    %v805 = vpop.f32.mrb[0].mxu0
    %v806 = vadd.f32 %v710, %v805
    %v807 = vpop.f32.mrb[0].mxu0
    %808 = vmatprep.mubr.f32.mxu0 0.0
    %v809 = vand.u32 %v718, 4294901760
    %v810 = vsub.f32 %v718, %v809
    %v811 = vand.u32 %v810, 4294901760
    %v812 = vsub.f32 %v810, %v811
    %v813 = vand.u32 %v812, 4294901760
    %814 = vmatmul.mubr.f32.gmra.mrb[0].mxu0 %v813
    %v815 = vpop.f32.mrb[0].mxu0
    %v816 = vadd.f32 %v710, %v815
    %v817 = vpop.f32.mrb[0].mxu0
    %818 = vdwg.mxu0
    %819 = vmatprep.subr.mxu0 0.0
    %v820 = vand.u32 %v45, 4294901760
    %v821 = vsub.f32 %v45, %v820
    %v822 = vand.u32 %v821, 4294901760
    %v823 = vsub.f32 %v821, %v822
    %v824 = vand.u32 %v823, 4294901760
    %825 = vmatpush1.msra.mxu0 %v824
    %826 = vmatprep.subr.mxu0 0.0
    %v827 = vand.u32 %v46, 4294901760
    %v828 = vsub.f32 %v46, %v827
    %v829 = vand.u32 %v828, 4294901760
    %v830 = vsub.f32 %v828, %v829
    %v831 = vand.u32 %v830, 4294901760
    %832 = vmatpush1.msra.mxu0 %v831
    %833 = vmatprep.subr.mxu0 0.0
    %v834 = vand.u32 %v47, 4294901760
    %v835 = vsub.f32 %v47, %v834
    %v836 = vand.u32 %v835, 4294901760
    %v837 = vsub.f32 %v835, %v836
    %v838 = vand.u32 %v837, 4294901760
    %839 = vmatpush1.msra.mxu0 %v838
    %840 = vmatprep.subr.mxu0 0.0
    %v841 = vand.u32 %v48, 4294901760
    %v842 = vsub.f32 %v48, %v841
    %v843 = vand.u32 %v842, 4294901760
    %v844 = vsub.f32 %v842, %v843
    %v845 = vand.u32 %v844, 4294901760
    %846 = vmatpush1.msra.mxu0 %v845
    %847 = vmatprep.subr.mxu0 0.0
    %848 = vmatpush1.msra.mxu0 0.0
    %849 = vmatprep.subr.mxu0 0.0
    %850 = vmatpush1.msra.mxu0 0.0
    %851 = vmatprep.subr.mxu0 0.0
    %852 = vmatpush1.msra.mxu0 0.0
    %853 = vmatprep.subr.mxu0 0.0
    %854 = vmatpush1.msra.mxu0 0.0
    %855 = vmatprep.subr.mxu0 0.0
    %856 = vmatpush1.msra.mxu0 0.0
    %857 = vmatprep.subr.mxu0 0.0
    %858 = vmatpush1.msra.mxu0 0.0
    %859 = vmatprep.subr.mxu0 0.0
    %860 = vmatpush1.msra.mxu0 0.0
    %861 = vmatprep.subr.mxu0 0.0
    %862 = vmatpush1.msra.mxu0 0.0
    %863 = vmatprep.subr.mxu0 0.0
    %864 = vmatpush1.msra.mxu0 0.0
    %865 = vmatprep.subr.mxu0 0.0
    %866 = vmatpush1.msra.mxu0 0.0
    %867 = vmatprep.subr.mxu0 0.0
    %868 = vmatpush1.msra.mxu0 0.0
    %869 = vmatprep.subr.mxu0 0.0
    %870 = vmatpush1.msra.mxu0 0.0
    %871 = vmatprep.subr.mxu0 0.0
    %872 = vmatpush1.msra.mxu0 0.0
    %873 = vmatprep.subr.mxu0 0.0
    %874 = vmatpush1.msra.mxu0 0.0
    %875 = vmatprep.subr.mxu0 0.0
    %876 = vmatpush1.msra.mxu0 0.0
    %877 = vmatprep.subr.mxu0 0.0
    %878 = vmatpush1.msra.mxu0 0.0
    %879 = vmatprep.subr.mxu0 0.0
    %880 = vmatpush1.msra.mxu0 0.0
    %881 = vmatprep.subr.mxu0 0.0
    %882 = vmatpush1.msra.mxu0 0.0
    %883 = vmatprep.subr.mxu0 0.0
    %884 = vmatpush1.msra.mxu0 0.0
    %885 = vmatprep.subr.mxu0 0.0
    %886 = vmatpush1.msra.mxu0 0.0
    %887 = vmatprep.subr.mxu0 0.0
    %888 = vmatpush1.msra.mxu0 0.0
    %889 = vmatprep.subr.mxu0 0.0
    %890 = vmatpush1.msra.mxu0 0.0
    %891 = vmatprep.subr.mxu0 0.0
    %892 = vmatpush1.msra.mxu0 0.0
    %893 = vmatprep.subr.mxu0 0.0
    %894 = vmatpush1.msra.mxu0 0.0
    %895 = vmatprep.subr.mxu0 0.0
    %896 = vmatpush1.msra.mxu0 0.0
    %897 = vmatprep.subr.mxu0 0.0
    %898 = vmatpush1.msra.mxu0 0.0
    %899 = vmatprep.subr.mxu0 0.0
    %900 = vmatpush1.msra.mxu0 0.0
    %901 = vmatprep.subr.mxu0 0.0
    %902 = vmatpush1.msra.mxu0 0.0
    %903 = vmatprep.mubr.f32.mxu0 0.0
    %v904 = vand.u32 %v712, 4294901760
    %905 = vmatmul.mubr.f32.gmra.mrb[0].mxu0 %v904
    %v906 = vpop.f32.mrb[0].mxu0
    %v907 = vadd.f32 %v796, %v906
    %v908 = vpop.f32.mrb[0].mxu0
    %909 = vmatprep.mubr.f32.mxu0 0.0
    %v910 = vand.u32 %v715, 4294901760
    %911 = vmatmul.mubr.f32.gmra.mrb[0].mxu0 %v910
    %v912 = vpop.f32.mrb[0].mxu0
    %v913 = vadd.f32 %v806, %v912
    %v914 = vpop.f32.mrb[0].mxu0
    %915 = vmatprep.mubr.f32.mxu0 0.0
    %v916 = vand.u32 %v718, 4294901760
    %917 = vmatmul.mubr.f32.gmra.mrb[0].mxu0 %v916
    %v918 = vpop.f32.mrb[0].mxu0
    %v919 = vadd.f32 %v816, %v918
    %v920 = vpop.f32.mrb[0].mxu0
    %921 = vdwg.mxu0
    %922 = vmatprep.subr.mxu0 0.0
    %v923 = vand.u32 %v45, 4294901760
    %v924 = vsub.f32 %v45, %v923
    %925 = vmatpush1.msra.mxu0 %v924
    %926 = vmatprep.subr.mxu0 0.0
    %v927 = vand.u32 %v46, 4294901760
    %v928 = vsub.f32 %v46, %v927
    %929 = vmatpush1.msra.mxu0 %v928
    %930 = vmatprep.subr.mxu0 0.0
    %v931 = vand.u32 %v47, 4294901760
    %v932 = vsub.f32 %v47, %v931
    %933 = vmatpush1.msra.mxu0 %v932
    %934 = vmatprep.subr.mxu0 0.0
    %v935 = vand.u32 %v48, 4294901760
    %v936 = vsub.f32 %v48, %v935
    %937 = vmatpush1.msra.mxu0 %v936
    %938 = vmatprep.subr.mxu0 0.0
    %939 = vmatpush1.msra.mxu0 0.0
    %940 = vmatprep.subr.mxu0 0.0
    %941 = vmatpush1.msra.mxu0 0.0
    %942 = vmatprep.subr.mxu0 0.0
    %943 = vmatpush1.msra.mxu0 0.0
    %944 = vmatprep.subr.mxu0 0.0
    %945 = vmatpush1.msra.mxu0 0.0
    %946 = vmatprep.subr.mxu0 0.0
    %947 = vmatpush1.msra.mxu0 0.0
    %948 = vmatprep.subr.mxu0 0.0
    %949 = vmatpush1.msra.mxu0 0.0
    %950 = vmatprep.subr.mxu0 0.0
    %951 = vmatpush1.msra.mxu0 0.0
    %952 = vmatprep.subr.mxu0 0.0
    %953 = vmatpush1.msra.mxu0 0.0
    %954 = vmatprep.subr.mxu0 0.0
    %955 = vmatpush1.msra.mxu0 0.0
    %956 = vmatprep.subr.mxu0 0.0
    %957 = vmatpush1.msra.mxu0 0.0
    %958 = vmatprep.subr.mxu0 0.0
    %959 = vmatpush1.msra.mxu0 0.0
    %960 = vmatprep.subr.mxu0 0.0
    %961 = vmatpush1.msra.mxu0 0.0
    %962 = vmatprep.subr.mxu0 0.0
    %963 = vmatpush1.msra.mxu0 0.0
    %964 = vmatprep.subr.mxu0 0.0
    %965 = vmatpush1.msra.mxu0 0.0
    %966 = vmatprep.subr.mxu0 0.0
    %967 = vmatpush1.msra.mxu0 0.0
    %968 = vmatprep.subr.mxu0 0.0
    %969 = vmatpush1.msra.mxu0 0.0
    %970 = vmatprep.subr.mxu0 0.0
    %971 = vmatpush1.msra.mxu0 0.0
    %972 = vmatprep.subr.mxu0 0.0
    %973 = vmatpush1.msra.mxu0 0.0
    %974 = vmatprep.subr.mxu0 0.0
    %975 = vmatpush1.msra.mxu0 0.0
    %976 = vmatprep.subr.mxu0 0.0
    %977 = vmatpush1.msra.mxu0 0.0
    %978 = vmatprep.subr.mxu0 0.0
    %979 = vmatpush1.msra.mxu0 0.0
    %980 = vmatprep.subr.mxu0 0.0
    %981 = vmatpush1.msra.mxu0 0.0
    %982 = vmatprep.subr.mxu0 0.0
    %983 = vmatpush1.msra.mxu0 0.0
    %984 = vmatprep.subr.mxu0 0.0
    %985 = vmatpush1.msra.mxu0 0.0
    %986 = vmatprep.subr.mxu0 0.0
    %987 = vmatpush1.msra.mxu0 0.0
    %988 = vmatprep.subr.mxu0 0.0
    %989 = vmatpush1.msra.mxu0 0.0
    %990 = vmatprep.subr.mxu0 0.0
    %991 = vmatpush1.msra.mxu0 0.0
    %992 = vmatprep.subr.mxu0 0.0
    %993 = vmatpush1.msra.mxu0 0.0
    %994 = vmatprep.mubr.f32.mxu0 0.0
    %v995 = vand.u32 %v712, 4294901760
    %v996 = vsub.f32 %v712, %v995
    %997 = vmatmul.mubr.f32.gmra.mrb[0].mxu0 %v996
    %v998 = vpop.f32.mrb[0].mxu0
    %v999 = vadd.f32 %v907, %v998
    %v1000 = vpop.f32.mrb[0].mxu0
    %1001 = vmatprep.mubr.f32.mxu0 0.0
    %v1002 = vand.u32 %v715, 4294901760
    %v1003 = vsub.f32 %v715, %v1002
    %1004 = vmatmul.mubr.f32.gmra.mrb[0].mxu0 %v1003
    %v1005 = vpop.f32.mrb[0].mxu0
    %v1006 = vadd.f32 %v913, %v1005
    %v1007 = vpop.f32.mrb[0].mxu0
    %1008 = vmatprep.mubr.f32.mxu0 0.0
    %v1009 = vand.u32 %v718, 4294901760
    %v1010 = vsub.f32 %v718, %v1009
    %1011 = vmatmul.mubr.f32.gmra.mrb[0].mxu0 %v1010
    %v1012 = vpop.f32.mrb[0].mxu0
    %v1013 = vadd.f32 %v919, %v1012
    %v1014 = vpop.f32.mrb[0].mxu0
    %1015 = vdwg.mxu0
    %1016 = vmatprep.subr.mxu0 0.0
    %v1017 = vand.u32 %v45, 4294901760
    %1018 = vmatpush1.msra.mxu0 %v1017
    %1019 = vmatprep.subr.mxu0 0.0
    %v1020 = vand.u32 %v46, 4294901760
    %1021 = vmatpush1.msra.mxu0 %v1020
    %1022 = vmatprep.subr.mxu0 0.0
    %v1023 = vand.u32 %v47, 4294901760
    %1024 = vmatpush1.msra.mxu0 %v1023
    %1025 = vmatprep.subr.mxu0 0.0
    %v1026 = vand.u32 %v48, 4294901760
    %1027 = vmatpush1.msra.mxu0 %v1026
    %1028 = vmatprep.subr.mxu0 0.0
    %1029 = vmatpush1.msra.mxu0 0.0
    %1030 = vmatprep.subr.mxu0 0.0
    %1031 = vmatpush1.msra.mxu0 0.0
    %1032 = vmatprep.subr.mxu0 0.0
    %1033 = vmatpush1.msra.mxu0 0.0
    %1034 = vmatprep.subr.mxu0 0.0
    %1035 = vmatpush1.msra.mxu0 0.0
    %1036 = vmatprep.subr.mxu0 0.0
    %1037 = vmatpush1.msra.mxu0 0.0
    %1038 = vmatprep.subr.mxu0 0.0
    %1039 = vmatpush1.msra.mxu0 0.0
    %1040 = vmatprep.subr.mxu0 0.0
    %1041 = vmatpush1.msra.mxu0 0.0
    %1042 = vmatprep.subr.mxu0 0.0
    %1043 = vmatpush1.msra.mxu0 0.0
    %1044 = vmatprep.subr.mxu0 0.0
    %1045 = vmatpush1.msra.mxu0 0.0
    %1046 = vmatprep.subr.mxu0 0.0
    %1047 = vmatpush1.msra.mxu0 0.0
    %1048 = vmatprep.subr.mxu0 0.0
    %1049 = vmatpush1.msra.mxu0 0.0
    %1050 = vmatprep.subr.mxu0 0.0
    %1051 = vmatpush1.msra.mxu0 0.0
    %1052 = vmatprep.subr.mxu0 0.0
    %1053 = vmatpush1.msra.mxu0 0.0
    %1054 = vmatprep.subr.mxu0 0.0
    %1055 = vmatpush1.msra.mxu0 0.0
    %1056 = vmatprep.subr.mxu0 0.0
    %1057 = vmatpush1.msra.mxu0 0.0
    %1058 = vmatprep.subr.mxu0 0.0
    %1059 = vmatpush1.msra.mxu0 0.0
    %1060 = vmatprep.subr.mxu0 0.0
    %1061 = vmatpush1.msra.mxu0 0.0
    %1062 = vmatprep.subr.mxu0 0.0
    %1063 = vmatpush1.msra.mxu0 0.0
    %1064 = vmatprep.subr.mxu0 0.0
    %1065 = vmatpush1.msra.mxu0 0.0
    %1066 = vmatprep.subr.mxu0 0.0
    %1067 = vmatpush1.msra.mxu0 0.0
    %1068 = vmatprep.subr.mxu0 0.0
    %1069 = vmatpush1.msra.mxu0 0.0
    %1070 = vmatprep.subr.mxu0 0.0
    %1071 = vmatpush1.msra.mxu0 0.0
    %1072 = vmatprep.subr.mxu0 0.0
    %1073 = vmatpush1.msra.mxu0 0.0
    %1074 = vmatprep.subr.mxu0 0.0
    %1075 = vmatpush1.msra.mxu0 0.0
    %1076 = vmatprep.subr.mxu0 0.0
    %1077 = vmatpush1.msra.mxu0 0.0
    %1078 = vmatprep.subr.mxu0 0.0
    %1079 = vmatpush1.msra.mxu0 0.0
    %1080 = vmatprep.subr.mxu0 0.0
    %1081 = vmatpush1.msra.mxu0 0.0
    %1082 = vmatprep.subr.mxu0 0.0
    %1083 = vmatpush1.msra.mxu0 0.0
    %1084 = vmatprep.mubr.f32.mxu0 0.0
    %v1085 = vand.u32 %v712, 4294901760
    %v1086 = vsub.f32 %v712, %v1085
    %v1087 = vand.u32 %v1086, 4294901760
    %1088 = vmatmul.mubr.f32.gmra.mrb[0].mxu0 %v1087
    %v1089 = vpop.f32.mrb[0].mxu0
    %v1090 = vadd.f32 %v999, %v1089
    %v1091 = vpop.f32.mrb[0].mxu0
    %1092 = vmatprep.mubr.f32.mxu0 0.0
    %v1093 = vand.u32 %v715, 4294901760
    %v1094 = vsub.f32 %v715, %v1093
    %v1095 = vand.u32 %v1094, 4294901760
    %1096 = vmatmul.mubr.f32.gmra.mrb[0].mxu0 %v1095
    %v1097 = vpop.f32.mrb[0].mxu0
    %v1098 = vadd.f32 %v1006, %v1097
    %v1099 = vpop.f32.mrb[0].mxu0
    %1100 = vmatprep.mubr.f32.mxu0 0.0
    %v1101 = vand.u32 %v718, 4294901760
    %v1102 = vsub.f32 %v718, %v1101
    %v1103 = vand.u32 %v1102, 4294901760
    %1104 = vmatmul.mubr.f32.gmra.mrb[0].mxu0 %v1103
    %v1105 = vpop.f32.mrb[0].mxu0
    %v1106 = vadd.f32 %v1013, %v1105
    %v1107 = vpop.f32.mrb[0].mxu0
    %1108 = vdwg.mxu0
    %1109 = vmatprep.subr.mxu0 0.0
    %v1110 = vand.u32 %v45, 4294901760
    %v1111 = vsub.f32 %v45, %v1110
    %v1112 = vand.u32 %v1111, 4294901760
    %1113 = vmatpush1.msra.mxu0 %v1112
    %1114 = vmatprep.subr.mxu0 0.0
    %v1115 = vand.u32 %v46, 4294901760
    %v1116 = vsub.f32 %v46, %v1115
    %v1117 = vand.u32 %v1116, 4294901760
    %1118 = vmatpush1.msra.mxu0 %v1117
    %1119 = vmatprep.subr.mxu0 0.0
    %v1120 = vand.u32 %v47, 4294901760
    %v1121 = vsub.f32 %v47, %v1120
    %v1122 = vand.u32 %v1121, 4294901760
    %1123 = vmatpush1.msra.mxu0 %v1122
    %1124 = vmatprep.subr.mxu0 0.0
    %v1125 = vand.u32 %v48, 4294901760
    %v1126 = vsub.f32 %v48, %v1125
    %v1127 = vand.u32 %v1126, 4294901760
    %1128 = vmatpush1.msra.mxu0 %v1127
    %1129 = vmatprep.subr.mxu0 0.0
    %1130 = vmatpush1.msra.mxu0 0.0
    %1131 = vmatprep.subr.mxu0 0.0
    %1132 = vmatpush1.msra.mxu0 0.0
    %1133 = vmatprep.subr.mxu0 0.0
    %1134 = vmatpush1.msra.mxu0 0.0
    %1135 = vmatprep.subr.mxu0 0.0
    %1136 = vmatpush1.msra.mxu0 0.0
    %1137 = vmatprep.subr.mxu0 0.0
    %1138 = vmatpush1.msra.mxu0 0.0
    %1139 = vmatprep.subr.mxu0 0.0
    %1140 = vmatpush1.msra.mxu0 0.0
    %1141 = vmatprep.subr.mxu0 0.0
    %1142 = vmatpush1.msra.mxu0 0.0
    %1143 = vmatprep.subr.mxu0 0.0
    %1144 = vmatpush1.msra.mxu0 0.0
    %1145 = vmatprep.subr.mxu0 0.0
    %1146 = vmatpush1.msra.mxu0 0.0
    %1147 = vmatprep.subr.mxu0 0.0
    %1148 = vmatpush1.msra.mxu0 0.0
    %1149 = vmatprep.subr.mxu0 0.0
    %1150 = vmatpush1.msra.mxu0 0.0
    %1151 = vmatprep.subr.mxu0 0.0
    %1152 = vmatpush1.msra.mxu0 0.0
    %1153 = vmatprep.subr.mxu0 0.0
    %1154 = vmatpush1.msra.mxu0 0.0
    %1155 = vmatprep.subr.mxu0 0.0
    %1156 = vmatpush1.msra.mxu0 0.0
    %1157 = vmatprep.subr.mxu0 0.0
    %1158 = vmatpush1.msra.mxu0 0.0
    %1159 = vmatprep.subr.mxu0 0.0
    %1160 = vmatpush1.msra.mxu0 0.0
    %1161 = vmatprep.subr.mxu0 0.0
    %1162 = vmatpush1.msra.mxu0 0.0
    %1163 = vmatprep.subr.mxu0 0.0
    %1164 = vmatpush1.msra.mxu0 0.0
    %1165 = vmatprep.subr.mxu0 0.0
    %1166 = vmatpush1.msra.mxu0 0.0
    %1167 = vmatprep.subr.mxu0 0.0
    %1168 = vmatpush1.msra.mxu0 0.0
    %1169 = vmatprep.subr.mxu0 0.0
    %1170 = vmatpush1.msra.mxu0 0.0
    %1171 = vmatprep.subr.mxu0 0.0
    %1172 = vmatpush1.msra.mxu0 0.0
    %1173 = vmatprep.subr.mxu0 0.0
    %1174 = vmatpush1.msra.mxu0 0.0
    %1175 = vmatprep.subr.mxu0 0.0
    %1176 = vmatpush1.msra.mxu0 0.0
    %1177 = vmatprep.subr.mxu0 0.0
    %1178 = vmatpush1.msra.mxu0 0.0
    %1179 = vmatprep.subr.mxu0 0.0
    %1180 = vmatpush1.msra.mxu0 0.0
    %1181 = vmatprep.subr.mxu0 0.0
    %1182 = vmatpush1.msra.mxu0 0.0
    %1183 = vmatprep.subr.mxu0 0.0
    %1184 = vmatpush1.msra.mxu0 0.0
    %1185 = vmatprep.mubr.f32.mxu0 0.0
    %v1186 = vand.u32 %v712, 4294901760
    %1187 = vmatmul.mubr.f32.gmra.mrb[0].mxu0 %v1186
    %v1188 = vpop.f32.mrb[0].mxu0
    %v1189 = vadd.f32 %v1090, %v1188
    %v1190 = vpop.f32.mrb[0].mxu0
    %1191 = vmatprep.mubr.f32.mxu0 0.0
    %v1192 = vand.u32 %v715, 4294901760
    %1193 = vmatmul.mubr.f32.gmra.mrb[0].mxu0 %v1192
    %v1194 = vpop.f32.mrb[0].mxu0
    %v1195 = vadd.f32 %v1098, %v1194
    %v1196 = vpop.f32.mrb[0].mxu0
    %1197 = vmatprep.mubr.f32.mxu0 0.0
    %v1198 = vand.u32 %v718, 4294901760
    %1199 = vmatmul.mubr.f32.gmra.mrb[0].mxu0 %v1198
    %v1200 = vpop.f32.mrb[0].mxu0
    %v1201 = vadd.f32 %v1106, %v1200
    %v1202 = vpop.f32.mrb[0].mxu0
    %1203 = vdwg.mxu0
    %1204 = vmatprep.subr.mxu0 0.0
    %v1205 = vand.u32 %v45, 4294901760
    %1206 = vmatpush1.msra.mxu0 %v1205
    %1207 = vmatprep.subr.mxu0 0.0
    %v1208 = vand.u32 %v46, 4294901760
    %1209 = vmatpush1.msra.mxu0 %v1208
    %1210 = vmatprep.subr.mxu0 0.0
    %v1211 = vand.u32 %v47, 4294901760
    %1212 = vmatpush1.msra.mxu0 %v1211
    %1213 = vmatprep.subr.mxu0 0.0
    %v1214 = vand.u32 %v48, 4294901760
    %1215 = vmatpush1.msra.mxu0 %v1214
    %1216 = vmatprep.subr.mxu0 0.0
    %1217 = vmatpush1.msra.mxu0 0.0
    %1218 = vmatprep.subr.mxu0 0.0
    %1219 = vmatpush1.msra.mxu0 0.0
    %1220 = vmatprep.subr.mxu0 0.0
    %1221 = vmatpush1.msra.mxu0 0.0
    %1222 = vmatprep.subr.mxu0 0.0
    %1223 = vmatpush1.msra.mxu0 0.0
    %1224 = vmatprep.subr.mxu0 0.0
    %1225 = vmatpush1.msra.mxu0 0.0
    %1226 = vmatprep.subr.mxu0 0.0
    %1227 = vmatpush1.msra.mxu0 0.0
    %1228 = vmatprep.subr.mxu0 0.0
    %1229 = vmatpush1.msra.mxu0 0.0
    %1230 = vmatprep.subr.mxu0 0.0
    %1231 = vmatpush1.msra.mxu0 0.0
    %1232 = vmatprep.subr.mxu0 0.0
    %1233 = vmatpush1.msra.mxu0 0.0
    %1234 = vmatprep.subr.mxu0 0.0
    %1235 = vmatpush1.msra.mxu0 0.0
    %1236 = vmatprep.subr.mxu0 0.0
    %1237 = vmatpush1.msra.mxu0 0.0
    %1238 = vmatprep.subr.mxu0 0.0
    %1239 = vmatpush1.msra.mxu0 0.0
    %1240 = vmatprep.subr.mxu0 0.0
    %1241 = vmatpush1.msra.mxu0 0.0
    %1242 = vmatprep.subr.mxu0 0.0
    %1243 = vmatpush1.msra.mxu0 0.0
    %1244 = vmatprep.subr.mxu0 0.0
    %1245 = vmatpush1.msra.mxu0 0.0
    %1246 = vmatprep.subr.mxu0 0.0
    %1247 = vmatpush1.msra.mxu0 0.0
    %1248 = vmatprep.subr.mxu0 0.0
    %1249 = vmatpush1.msra.mxu0 0.0
    %1250 = vmatprep.subr.mxu0 0.0
    %1251 = vmatpush1.msra.mxu0 0.0
    %1252 = vmatprep.subr.mxu0 0.0
    %1253 = vmatpush1.msra.mxu0 0.0
    %1254 = vmatprep.subr.mxu0 0.0
    %1255 = vmatpush1.msra.mxu0 0.0
    %1256 = vmatprep.subr.mxu0 0.0
    %1257 = vmatpush1.msra.mxu0 0.0
    %1258 = vmatprep.subr.mxu0 0.0
    %1259 = vmatpush1.msra.mxu0 0.0
    %1260 = vmatprep.subr.mxu0 0.0
    %1261 = vmatpush1.msra.mxu0 0.0
    %1262 = vmatprep.subr.mxu0 0.0
    %1263 = vmatpush1.msra.mxu0 0.0
    %1264 = vmatprep.subr.mxu0 0.0
    %1265 = vmatpush1.msra.mxu0 0.0
    %1266 = vmatprep.subr.mxu0 0.0
    %1267 = vmatpush1.msra.mxu0 0.0
    %1268 = vmatprep.subr.mxu0 0.0
    %1269 = vmatpush1.msra.mxu0 0.0
    %1270 = vmatprep.subr.mxu0 0.0
    %1271 = vmatpush1.msra.mxu0 0.0
    %1272 = vmatprep.mubr.f32.mxu0 0.0
    %v1273 = vand.u32 %v712, 4294901760
    %1274 = vmatmul.mubr.f32.gmra.mrb[0].mxu0 %v1273
    %v1275 = vpop.f32.mrb[0].mxu0
    %v1276 = vadd.f32 %v1189, %v1275
    %v1277 = vpop.f32.mrb[0].mxu0
    %1278 = vmatprep.mubr.f32.mxu0 0.0
    %v1279 = vand.u32 %v715, 4294901760
    %1280 = vmatmul.mubr.f32.gmra.mrb[0].mxu0 %v1279
    %v1281 = vpop.f32.mrb[0].mxu0
    %v1282 = vadd.f32 %v1195, %v1281
    %v1283 = vpop.f32.mrb[0].mxu0
    %1284 = vmatprep.mubr.f32.mxu0 0.0
    %v1285 = vand.u32 %v718, 4294901760
    %1286 = vmatmul.mubr.f32.gmra.mrb[0].mxu0 %v1285
    %v1287 = vpop.f32.mrb[0].mxu0
    %v1288 = vadd.f32 %v1201, %v1287
    %v1289 = vpop.f32.mrb[0].mxu0
    %1290 = vdwg.mxu0
    %v1291 = vtanh.pop %v1276
    %v1292 = vtanh.pop %v1282
    %v1293 = vtanh.pop %v1288
    %1296 = vrot.lane.b32.xlu0 %v1292, 64
    %v1297 = vpop.permute.xlu0 %1296
    %1298 = vrot.lane.b32.xlu0 %v1293, 64
    %v1299 = vpop.permute.xlu0 %1298
    %1301 = vrot.lane.b32.xlu0 %v1291, 64
    %v1302 = vpop.permute.xlu0 %1301
    %1311 = vrot.lane.b32.xlu0 %v60, 64
    %v1312 = vpop.permute.xlu0 %1311
    %1313 = vrot.lane.b32.xlu0 %v61, 64
    %v1314 = vpop.permute.xlu0 %1313
    %1315 = vrot.lane.b32.xlu0 %v62, 64
    %v1316 = vpop.permute.xlu0 %1315
    %1317 = vrot.lane.b32.xlu0 %v63, 64
    %v1318 = vpop.permute.xlu0 %1317
    %1319 = vrot.lane.b32.xlu0 %v64, 64
    %v1320 = vpop.permute.xlu0 %1319
    %1321 = vrot.lane.b32.xlu0 %v65, 64
    %v1322 = vpop.permute.xlu0 %1321
    %1323 = vrot.lane.b32.xlu0 %v66, 64
    %v1324 = vpop.permute.xlu0 %1323
    %1325 = vrot.lane.b32.xlu0 %v67, 64
    %v1326 = vpop.permute.xlu0 %1325
    %v1328 = vcombine.high %v682, %v682
    %v1330 = vunpack.c.l.s4 1966171168
    %v1331 = vunpack.c.0.s8 %v1330
    %v1332 = vlaneseq
    %v1333 = vshrl.u32 %v1332, 7
    %v1334 = vsub.s32 %v1331, %v1333
    %v1335 = vrot.slane %v682, %v1334
    %v1337 = vunpack.c.l.s4 1966171168
    %v1338 = vunpack.c.0.s8 %v1337
    %v1339 = vlaneseq
    %v1340 = vshrl.u32 %v1339, 7
    %v1341 = vsub.s32 %v1338, %v1340
    %v1342 = vrot.slane %v1328, %v1341
    %v1343 = vcombine.high %v1335, %v1335
    %v1344 = vcombine.high %v1342, %v1342
    %v1346 = vunpack.c.l.s4 1966171168
    %v1347 = vunpack.c.0.s8 %v1346
    %v1348 = vlaneseq
    %v1349 = vshrl.u32 %v1348, 7
    %v1350 = vsub.s32 %v1347, %v1349
    %v1351 = vrot.slane %v1335, %v1350
    %v1353 = vunpack.c.l.s4 1966171168
    %v1354 = vunpack.c.0.s8 %v1353
    %v1355 = vlaneseq
    %v1356 = vshrl.u32 %v1355, 7
    %v1357 = vsub.s32 %v1354, %v1356
    %v1358 = vrot.slane %v1342, %v1357
    %v1360 = vunpack.c.l.s4 1966171168
    %v1361 = vunpack.c.0.s8 %v1360
    %v1362 = vlaneseq
    %v1363 = vshrl.u32 %v1362, 7
    %v1364 = vsub.s32 %v1361, %v1363
    %v1365 = vrot.slane %v1343, %v1364
    %v1367 = vunpack.c.l.s4 1966171168
    %v1368 = vunpack.c.0.s8 %v1367
    %v1369 = vlaneseq
    %v1370 = vshrl.u32 %v1369, 7
    %v1371 = vsub.s32 %v1368, %v1370
    %v1372 = vrot.slane %v1344, %v1371
    %v1373 = vcombine.high %v1351, %v1351
    %v1374 = vcombine.high %v1358, %v1358
    %v1375 = vcombine.high %v1365, %v1365
    %v1376 = vcombine.high %v1372, %v1372
    %v1377 = vlaneseq
    %v1378 = vshrl.u32 %v1377, 7
    %v1379 = vsub.s32 0, %v1378
    %v1380 = vrot.slane %v1351, %v1379
    %v1381 = vlaneseq
    %v1382 = vshrl.u32 %v1381, 7
    %v1383 = vsub.s32 0, %v1382
    %v1384 = vrot.slane %v1365, %v1383
    %v1385 = vlaneseq
    %v1386 = vshrl.u32 %v1385, 7
    %v1387 = vsub.s32 0, %v1386
    %v1388 = vrot.slane %v1373, %v1387
    %v1389 = vlaneseq
    %v1390 = vshrl.u32 %v1389, 7
    %v1391 = vsub.s32 0, %v1390
    %v1392 = vrot.slane %v1375, %v1391
    %v1393 = vlaneseq
    %v1394 = vshrl.u32 %v1393, 7
    %v1395 = vsub.s32 0, %v1394
    %v1396 = vrot.slane %v1358, %v1395
    %v1397 = vlaneseq
    %v1398 = vshrl.u32 %v1397, 7
    %v1399 = vsub.s32 0, %v1398
    %v1400 = vrot.slane %v1372, %v1399
    %v1401 = vlaneseq
    %v1402 = vshrl.u32 %v1401, 7
    %v1403 = vsub.s32 0, %v1402
    %v1404 = vrot.slane %v1374, %v1403
    %v1405 = vlaneseq
    %v1406 = vshrl.u32 %v1405, 7
    %v1407 = vsub.s32 0, %v1406
    %v1408 = vrot.slane %v1376, %v1407
    %1409 = vrot.lane.b32.xlu0 %v58, 64
    %v1410 = vpop.permute.xlu0 %1409
    %1411 = vrot.lane.b32.xlu0 %v59, 64
    %v1412 = vpop.permute.xlu0 %1411
    %1413 = vrot.lane.b32.xlu0 %v1297, 64
    %v1414 = vpop.permute.xlu0 %1413
    %1415 = vrot.lane.b32.xlu0 %v1299, 64
    %v1416 = vpop.permute.xlu0 %1415
    %1417 = vrot.lane.b32.xlu0 %v1302, 64
    %v1418 = vpop.permute.xlu0 %1417
    %1419 = vrot.lane.b32.xlu0 %v1312, 64
    %v1420 = vpop.permute.xlu0 %1419
    %1421 = vrot.lane.b32.xlu0 %v1314, 64
    %v1422 = vpop.permute.xlu0 %1421
    %1423 = vrot.lane.b32.xlu0 %v1316, 64
    %v1424 = vpop.permute.xlu0 %1423
    %1425 = vrot.lane.b32.xlu0 %v1318, 64
    %v1426 = vpop.permute.xlu0 %1425
    %1427 = vrot.lane.b32.xlu0 %v1320, 64
    %v1428 = vpop.permute.xlu0 %1427
    %1429 = vrot.lane.b32.xlu0 %v1322, 64
    %v1430 = vpop.permute.xlu0 %1429
    %1431 = vrot.lane.b32.xlu0 %v1324, 64
    %v1432 = vpop.permute.xlu0 %1431
    %1433 = vrot.lane.b32.xlu0 %v1326, 64
    %v1434 = vpop.permute.xlu0 %1433
    %1438 = vrot.lane.b32.xlu0 %v676, 96
    %v1439 = vpop.permute.xlu0 %1438
    %1440 = vrot.lane.b32.xlu0 %v682, 96
    %v1441 = vpop.permute.xlu0 %1440
    %1442 = vrot.lane.b32.xlu0 %v688, 96
    %v1443 = vpop.permute.xlu0 %1442
    %1444 = vrot.lane.b32.xlu0 %v694, 96
    %v1445 = vpop.permute.xlu0 %1444
    %1446 = vrot.lane.b32.xlu0 %v1380, 96
    %v1447 = vpop.permute.xlu0 %1446
    %1448 = vrot.lane.b32.xlu0 %v1384, 96
    %v1449 = vpop.permute.xlu0 %1448
    %1450 = vrot.lane.b32.xlu0 %v1388, 96
    %v1451 = vpop.permute.xlu0 %1450
    %1452 = vrot.lane.b32.xlu0 %v1392, 96
    %v1453 = vpop.permute.xlu0 %1452
    %1454 = vrot.lane.b32.xlu0 %v1396, 96
    %v1455 = vpop.permute.xlu0 %1454
    %1456 = vrot.lane.b32.xlu0 %v1400, 96
    %v1457 = vpop.permute.xlu0 %1456
    %1458 = vrot.lane.b32.xlu0 %v1404, 96
    %v1459 = vpop.permute.xlu0 %1458
    %1460 = vrot.lane.b32.xlu0 %v1408, 96
    %v1461 = vpop.permute.xlu0 %1460
    %vm1474 = vcmask 64512
    %v1475 = vsel %vm1474, %v1410, 0
    %v1477 = vsel %vm1474, %v1412, 0
    %v1479 = vsel %vm1474, %v1414, 0
    %v1481 = vsel %vm1474, %v1416, 0
    %v1483 = vsel %vm1474, %v1418, 0
    %v1485 = vsel %vm1474, %v1420, 0
    %v1487 = vsel %vm1474, %v1422, 0
    %v1489 = vsel %vm1474, %v1424, 0
    %v1491 = vsel %vm1474, %v1426, 0
    %v1493 = vsel %vm1474, %v1428, 0
    %v1495 = vsel %vm1474, %v1430, 0
    %v1497 = vsel %vm1474, %v1432, 0
    %v1499 = vsel %vm1474, %v1434, 0
    %1501 = vmatprep.subr.mxu0 0.0
    %v1502 = vand.u32 %v44, 4294901760
    %1503 = vmatpush1.msra.mxu0 %v1502
    %1504 = vmatprep.subr.mxu0 0.0
    %1505 = vmatpush1.msra.mxu0 0.0
    %1506 = vmatprep.subr.mxu0 0.0
    %1507 = vmatpush1.msra.mxu0 0.0
    %1508 = vmatprep.subr.mxu0 0.0
    %1509 = vmatpush1.msra.mxu0 0.0
    %1510 = vmatprep.subr.mxu0 0.0
    %1511 = vmatpush1.msra.mxu0 0.0
    %1512 = vmatprep.subr.mxu0 0.0
    %1513 = vmatpush1.msra.mxu0 0.0
    %1514 = vmatprep.subr.mxu0 0.0
    %1515 = vmatpush1.msra.mxu0 0.0
    %1516 = vmatprep.subr.mxu0 0.0
    %1517 = vmatpush1.msra.mxu0 0.0
    %1518 = vmatprep.subr.mxu0 0.0
    %1519 = vmatpush1.msra.mxu0 0.0
    %1520 = vmatprep.subr.mxu0 0.0
    %1521 = vmatpush1.msra.mxu0 0.0
    %1522 = vmatprep.subr.mxu0 0.0
    %1523 = vmatpush1.msra.mxu0 0.0
    %1524 = vmatprep.subr.mxu0 0.0
    %1525 = vmatpush1.msra.mxu0 0.0
    %1526 = vmatprep.subr.mxu0 0.0
    %1527 = vmatpush1.msra.mxu0 0.0
    %1528 = vmatprep.subr.mxu0 0.0
    %1529 = vmatpush1.msra.mxu0 0.0
    %1530 = vmatprep.subr.mxu0 0.0
    %1531 = vmatpush1.msra.mxu0 0.0
    %1532 = vmatprep.subr.mxu0 0.0
    %1533 = vmatpush1.msra.mxu0 0.0
    %1534 = vmatprep.subr.mxu0 0.0
    %1535 = vmatpush1.msra.mxu0 0.0
    %1536 = vmatprep.subr.mxu0 0.0
    %1537 = vmatpush1.msra.mxu0 0.0
    %1538 = vmatprep.subr.mxu0 0.0
    %1539 = vmatpush1.msra.mxu0 0.0
    %1540 = vmatprep.subr.mxu0 0.0
    %1541 = vmatpush1.msra.mxu0 0.0
    %1542 = vmatprep.subr.mxu0 0.0
    %1543 = vmatpush1.msra.mxu0 0.0
    %1544 = vmatprep.subr.mxu0 0.0
    %1545 = vmatpush1.msra.mxu0 0.0
    %1546 = vmatprep.subr.mxu0 0.0
    %1547 = vmatpush1.msra.mxu0 0.0
    %1548 = vmatprep.subr.mxu0 0.0
    %1549 = vmatpush1.msra.mxu0 0.0
    %1550 = vmatprep.subr.mxu0 0.0
    %1551 = vmatpush1.msra.mxu0 0.0
    %1552 = vmatprep.subr.mxu0 0.0
    %1553 = vmatpush1.msra.mxu0 0.0
    %1554 = vmatprep.subr.mxu0 0.0
    %1555 = vmatpush1.msra.mxu0 0.0
    %1556 = vmatprep.subr.mxu0 0.0
    %1557 = vmatpush1.msra.mxu0 0.0
    %1558 = vmatprep.subr.mxu0 0.0
    %1559 = vmatpush1.msra.mxu0 0.0
    %1560 = vmatprep.subr.mxu0 0.0
    %1561 = vmatpush1.msra.mxu0 0.0
    %1562 = vmatprep.subr.mxu0 0.0
    %1563 = vmatpush1.msra.mxu0 0.0
    %1564 = vmatprep.subr.mxu0 0.0
    %1565 = vmatpush1.msra.mxu0 0.0
    %1566 = vmatprep.mubr.f32.mxu0 0.0
    %v1567 = vand.u32 %v1475, 4294901760
    %v1568 = vsub.f32 %v1475, %v1567
    %v1569 = vand.u32 %v1568, 4294901760
    %v1570 = vsub.f32 %v1568, %v1569
    %v1571 = vand.u32 %v1570, 4294901760
    %1572 = vmatmul.mubr.f32.gmra.mrb[0].mxu0 %v1571
    %v1573 = vpop.f32.mrb[0].mxu0
    %v1574 = vadd.f32 %v1439, %v1573
    %v1575 = vpop.f32.mrb[0].mxu0
    %1576 = vmatprep.mubr.f32.mxu0 0.0
    %v1577 = vand.u32 %v1477, 4294901760
    %v1578 = vsub.f32 %v1477, %v1577
    %v1579 = vand.u32 %v1578, 4294901760
    %v1580 = vsub.f32 %v1578, %v1579
    %v1581 = vand.u32 %v1580, 4294901760
    %1582 = vmatmul.mubr.f32.gmra.mrb[0].mxu0 %v1581
    %v1583 = vpop.f32.mrb[0].mxu0
    %v1584 = vadd.f32 %v1441, %v1583
    %v1585 = vpop.f32.mrb[0].mxu0
    %1586 = vmatprep.mubr.f32.mxu0 0.0
    %v1587 = vand.u32 %v1479, 4294901760
    %v1588 = vsub.f32 %v1479, %v1587
    %v1589 = vand.u32 %v1588, 4294901760
    %v1590 = vsub.f32 %v1588, %v1589
    %v1591 = vand.u32 %v1590, 4294901760
    %1592 = vmatmul.mubr.f32.gmra.mrb[0].mxu0 %v1591
    %v1593 = vpop.f32.mrb[0].mxu0
    %v1594 = vadd.f32 %v1443, %v1593
    %v1595 = vpop.f32.mrb[0].mxu0
    %1596 = vmatprep.mubr.f32.mxu0 0.0
    %v1597 = vand.u32 %v1481, 4294901760
    %v1598 = vsub.f32 %v1481, %v1597
    %v1599 = vand.u32 %v1598, 4294901760
    %v1600 = vsub.f32 %v1598, %v1599
    %v1601 = vand.u32 %v1600, 4294901760
    %1602 = vmatmul.mubr.f32.gmra.mrb[0].mxu0 %v1601
    %v1603 = vpop.f32.mrb[0].mxu0
    %v1604 = vadd.f32 %v1445, %v1603
    %v1605 = vpop.f32.mrb[0].mxu0
    %1606 = vmatprep.mubr.f32.mxu0 0.0
    %v1607 = vand.u32 %v1483, 4294901760
    %v1608 = vsub.f32 %v1483, %v1607
    %v1609 = vand.u32 %v1608, 4294901760
    %v1610 = vsub.f32 %v1608, %v1609
    %v1611 = vand.u32 %v1610, 4294901760
    %1612 = vmatmul.mubr.f32.gmra.mrb[0].mxu0 %v1611
    %v1613 = vpop.f32.mrb[0].mxu0
    %v1614 = vadd.f32 %v1441, %v1613
    %v1615 = vpop.f32.mrb[0].mxu0
    %1616 = vmatprep.mubr.f32.mxu0 0.0
    %v1617 = vand.u32 %v1485, 4294901760
    %v1618 = vsub.f32 %v1485, %v1617
    %v1619 = vand.u32 %v1618, 4294901760
    %v1620 = vsub.f32 %v1618, %v1619
    %v1621 = vand.u32 %v1620, 4294901760
    %1622 = vmatmul.mubr.f32.gmra.mrb[0].mxu0 %v1621
    %v1623 = vpop.f32.mrb[0].mxu0
    %v1624 = vadd.f32 %v1447, %v1623
    %v1625 = vpop.f32.mrb[0].mxu0
    %1626 = vmatprep.mubr.f32.mxu0 0.0
    %v1627 = vand.u32 %v1487, 4294901760
    %v1628 = vsub.f32 %v1487, %v1627
    %v1629 = vand.u32 %v1628, 4294901760
    %v1630 = vsub.f32 %v1628, %v1629
    %v1631 = vand.u32 %v1630, 4294901760
    %1632 = vmatmul.mubr.f32.gmra.mrb[0].mxu0 %v1631
    %v1633 = vpop.f32.mrb[0].mxu0
    %v1634 = vadd.f32 %v1449, %v1633
    %v1635 = vpop.f32.mrb[0].mxu0
    %1636 = vmatprep.mubr.f32.mxu0 0.0
    %v1637 = vand.u32 %v1489, 4294901760
    %v1638 = vsub.f32 %v1489, %v1637
    %v1639 = vand.u32 %v1638, 4294901760
    %v1640 = vsub.f32 %v1638, %v1639
    %v1641 = vand.u32 %v1640, 4294901760
    %1642 = vmatmul.mubr.f32.gmra.mrb[0].mxu0 %v1641
    %v1643 = vpop.f32.mrb[0].mxu0
    %v1644 = vadd.f32 %v1451, %v1643
    %v1645 = vpop.f32.mrb[0].mxu0
    %1646 = vmatprep.mubr.f32.mxu0 0.0
    %v1647 = vand.u32 %v1491, 4294901760
    %v1648 = vsub.f32 %v1491, %v1647
    %v1649 = vand.u32 %v1648, 4294901760
    %v1650 = vsub.f32 %v1648, %v1649
    %v1651 = vand.u32 %v1650, 4294901760
    %1652 = vmatmul.mubr.f32.gmra.mrb[0].mxu0 %v1651
    %v1653 = vpop.f32.mrb[0].mxu0
    %v1654 = vadd.f32 %v1453, %v1653
    %v1655 = vpop.f32.mrb[0].mxu0
    %1656 = vmatprep.mubr.f32.mxu0 0.0
    %v1657 = vand.u32 %v1493, 4294901760
    %v1658 = vsub.f32 %v1493, %v1657
    %v1659 = vand.u32 %v1658, 4294901760
    %v1660 = vsub.f32 %v1658, %v1659
    %v1661 = vand.u32 %v1660, 4294901760
    %1662 = vmatmul.mubr.f32.gmra.mrb[0].mxu0 %v1661
    %v1663 = vpop.f32.mrb[0].mxu0
    %v1664 = vadd.f32 %v1455, %v1663
    %v1665 = vpop.f32.mrb[0].mxu0
    %1666 = vmatprep.mubr.f32.mxu0 0.0
    %v1667 = vand.u32 %v1495, 4294901760
    %v1668 = vsub.f32 %v1495, %v1667
    %v1669 = vand.u32 %v1668, 4294901760
    %v1670 = vsub.f32 %v1668, %v1669
    %v1671 = vand.u32 %v1670, 4294901760
    %1672 = vmatmul.mubr.f32.gmra.mrb[0].mxu0 %v1671
    %v1673 = vpop.f32.mrb[0].mxu0
    %v1674 = vadd.f32 %v1457, %v1673
    %v1675 = vpop.f32.mrb[0].mxu0
    %1676 = vmatprep.mubr.f32.mxu0 0.0
    %v1677 = vand.u32 %v1497, 4294901760
    %v1678 = vsub.f32 %v1497, %v1677
    %v1679 = vand.u32 %v1678, 4294901760
    %v1680 = vsub.f32 %v1678, %v1679
    %v1681 = vand.u32 %v1680, 4294901760
    %1682 = vmatmul.mubr.f32.gmra.mrb[0].mxu0 %v1681
    %v1683 = vpop.f32.mrb[0].mxu0
    %v1684 = vadd.f32 %v1459, %v1683
    %v1685 = vpop.f32.mrb[0].mxu0
    %1686 = vmatprep.mubr.f32.mxu0 0.0
    %v1687 = vand.u32 %v1499, 4294901760
    %v1688 = vsub.f32 %v1499, %v1687
    %v1689 = vand.u32 %v1688, 4294901760
    %v1690 = vsub.f32 %v1688, %v1689
    %v1691 = vand.u32 %v1690, 4294901760
    %1692 = vmatmul.mubr.f32.gmra.mrb[0].mxu0 %v1691
    %v1693 = vpop.f32.mrb[0].mxu0
    %v1694 = vadd.f32 %v1461, %v1693
    %v1695 = vpop.f32.mrb[0].mxu0
    %1696 = vdwg.mxu0
    %1697 = vmatprep.subr.mxu0 0.0
    %v1698 = vand.u32 %v44, 4294901760
    %v1699 = vsub.f32 %v44, %v1698
    %v1700 = vand.u32 %v1699, 4294901760
    %v1701 = vsub.f32 %v1699, %v1700
    %v1702 = vand.u32 %v1701, 4294901760
    %1703 = vmatpush1.msra.mxu0 %v1702
    %1704 = vmatprep.subr.mxu0 0.0
    %1705 = vmatpush1.msra.mxu0 0.0
    %1706 = vmatprep.subr.mxu0 0.0
    %1707 = vmatpush1.msra.mxu0 0.0
    %1708 = vmatprep.subr.mxu0 0.0
    %1709 = vmatpush1.msra.mxu0 0.0
    %1710 = vmatprep.subr.mxu0 0.0
    %1711 = vmatpush1.msra.mxu0 0.0
    %1712 = vmatprep.subr.mxu0 0.0
    %1713 = vmatpush1.msra.mxu0 0.0
    %1714 = vmatprep.subr.mxu0 0.0
    %1715 = vmatpush1.msra.mxu0 0.0
    %1716 = vmatprep.subr.mxu0 0.0
    %1717 = vmatpush1.msra.mxu0 0.0
    %1718 = vmatprep.subr.mxu0 0.0
    %1719 = vmatpush1.msra.mxu0 0.0
    %1720 = vmatprep.subr.mxu0 0.0
    %1721 = vmatpush1.msra.mxu0 0.0
    %1722 = vmatprep.subr.mxu0 0.0
    %1723 = vmatpush1.msra.mxu0 0.0
    %1724 = vmatprep.subr.mxu0 0.0
    %1725 = vmatpush1.msra.mxu0 0.0
    %1726 = vmatprep.subr.mxu0 0.0
    %1727 = vmatpush1.msra.mxu0 0.0
    %1728 = vmatprep.subr.mxu0 0.0
    %1729 = vmatpush1.msra.mxu0 0.0
    %1730 = vmatprep.subr.mxu0 0.0
    %1731 = vmatpush1.msra.mxu0 0.0
    %1732 = vmatprep.subr.mxu0 0.0
    %1733 = vmatpush1.msra.mxu0 0.0
    %1734 = vmatprep.subr.mxu0 0.0
    %1735 = vmatpush1.msra.mxu0 0.0
    %1736 = vmatprep.subr.mxu0 0.0
    %1737 = vmatpush1.msra.mxu0 0.0
    %1738 = vmatprep.subr.mxu0 0.0
    %1739 = vmatpush1.msra.mxu0 0.0
    %1740 = vmatprep.subr.mxu0 0.0
    %1741 = vmatpush1.msra.mxu0 0.0
    %1742 = vmatprep.subr.mxu0 0.0
    %1743 = vmatpush1.msra.mxu0 0.0
    %1744 = vmatprep.subr.mxu0 0.0
    %1745 = vmatpush1.msra.mxu0 0.0
    %1746 = vmatprep.subr.mxu0 0.0
    %1747 = vmatpush1.msra.mxu0 0.0
    %1748 = vmatprep.subr.mxu0 0.0
    %1749 = vmatpush1.msra.mxu0 0.0
    %1750 = vmatprep.subr.mxu0 0.0
    %1751 = vmatpush1.msra.mxu0 0.0
    %1752 = vmatprep.subr.mxu0 0.0
    %1753 = vmatpush1.msra.mxu0 0.0
    %1754 = vmatprep.subr.mxu0 0.0
    %1755 = vmatpush1.msra.mxu0 0.0
    %1756 = vmatprep.subr.mxu0 0.0
    %1757 = vmatpush1.msra.mxu0 0.0
    %1758 = vmatprep.subr.mxu0 0.0
    %1759 = vmatpush1.msra.mxu0 0.0
    %1760 = vmatprep.subr.mxu0 0.0
    %1761 = vmatpush1.msra.mxu0 0.0
    %1762 = vmatprep.subr.mxu0 0.0
    %1763 = vmatpush1.msra.mxu0 0.0
    %1764 = vmatprep.subr.mxu0 0.0
    %1765 = vmatpush1.msra.mxu0 0.0
    %1766 = vmatprep.mubr.f32.mxu0 0.0
    %v1767 = vand.u32 %v1475, 4294901760
    %1768 = vmatmul.mubr.f32.gmra.mrb[0].mxu0 %v1767
    %v1769 = vpop.f32.mrb[0].mxu0
    %v1770 = vadd.f32 %v1574, %v1769
    %v1771 = vpop.f32.mrb[0].mxu0
    %1772 = vmatprep.mubr.f32.mxu0 0.0
    %v1773 = vand.u32 %v1477, 4294901760
    %1774 = vmatmul.mubr.f32.gmra.mrb[0].mxu0 %v1773
    %v1775 = vpop.f32.mrb[0].mxu0
    %v1776 = vadd.f32 %v1584, %v1775
    %v1777 = vpop.f32.mrb[0].mxu0
    %1778 = vmatprep.mubr.f32.mxu0 0.0
    %v1779 = vand.u32 %v1479, 4294901760
    %1780 = vmatmul.mubr.f32.gmra.mrb[0].mxu0 %v1779
    %v1781 = vpop.f32.mrb[0].mxu0
    %v1782 = vadd.f32 %v1594, %v1781
    %v1783 = vpop.f32.mrb[0].mxu0
    %1784 = vmatprep.mubr.f32.mxu0 0.0
    %v1785 = vand.u32 %v1481, 4294901760
    %1786 = vmatmul.mubr.f32.gmra.mrb[0].mxu0 %v1785
    %v1787 = vpop.f32.mrb[0].mxu0
    %v1788 = vadd.f32 %v1604, %v1787
    %v1789 = vpop.f32.mrb[0].mxu0
    %1790 = vmatprep.mubr.f32.mxu0 0.0
    %v1791 = vand.u32 %v1483, 4294901760
    %1792 = vmatmul.mubr.f32.gmra.mrb[0].mxu0 %v1791
    %v1793 = vpop.f32.mrb[0].mxu0
    %v1794 = vadd.f32 %v1614, %v1793
    %v1795 = vpop.f32.mrb[0].mxu0
    %1796 = vmatprep.mubr.f32.mxu0 0.0
    %v1797 = vand.u32 %v1485, 4294901760
    %1798 = vmatmul.mubr.f32.gmra.mrb[0].mxu0 %v1797
    %v1799 = vpop.f32.mrb[0].mxu0
    %v1800 = vadd.f32 %v1624, %v1799
    %v1801 = vpop.f32.mrb[0].mxu0
    %1802 = vmatprep.mubr.f32.mxu0 0.0
    %v1803 = vand.u32 %v1487, 4294901760
    %1804 = vmatmul.mubr.f32.gmra.mrb[0].mxu0 %v1803
    %v1805 = vpop.f32.mrb[0].mxu0
    %v1806 = vadd.f32 %v1634, %v1805
    %v1807 = vpop.f32.mrb[0].mxu0
    %1808 = vmatprep.mubr.f32.mxu0 0.0
    %v1809 = vand.u32 %v1489, 4294901760
    %1810 = vmatmul.mubr.f32.gmra.mrb[0].mxu0 %v1809
    %v1811 = vpop.f32.mrb[0].mxu0
    %v1812 = vadd.f32 %v1644, %v1811
    %v1813 = vpop.f32.mrb[0].mxu0
    %1814 = vmatprep.mubr.f32.mxu0 0.0
    %v1815 = vand.u32 %v1491, 4294901760
    %1816 = vmatmul.mubr.f32.gmra.mrb[0].mxu0 %v1815
    %v1817 = vpop.f32.mrb[0].mxu0
    %v1818 = vadd.f32 %v1654, %v1817
    %v1819 = vpop.f32.mrb[0].mxu0
    %1820 = vmatprep.mubr.f32.mxu0 0.0
    %v1821 = vand.u32 %v1493, 4294901760
    %1822 = vmatmul.mubr.f32.gmra.mrb[0].mxu0 %v1821
    %v1823 = vpop.f32.mrb[0].mxu0
    %v1824 = vadd.f32 %v1664, %v1823
    %v1825 = vpop.f32.mrb[0].mxu0
    %1826 = vmatprep.mubr.f32.mxu0 0.0
    %v1827 = vand.u32 %v1495, 4294901760
    %1828 = vmatmul.mubr.f32.gmra.mrb[0].mxu0 %v1827
    %v1829 = vpop.f32.mrb[0].mxu0
    %v1830 = vadd.f32 %v1674, %v1829
    %v1831 = vpop.f32.mrb[0].mxu0
    %1832 = vmatprep.mubr.f32.mxu0 0.0
    %v1833 = vand.u32 %v1497, 4294901760
    %1834 = vmatmul.mubr.f32.gmra.mrb[0].mxu0 %v1833
    %v1835 = vpop.f32.mrb[0].mxu0
    %v1836 = vadd.f32 %v1684, %v1835
    %v1837 = vpop.f32.mrb[0].mxu0
    %1838 = vmatprep.mubr.f32.mxu0 0.0
    %v1839 = vand.u32 %v1499, 4294901760
    %1840 = vmatmul.mubr.f32.gmra.mrb[0].mxu0 %v1839
    %v1841 = vpop.f32.mrb[0].mxu0
    %v1842 = vadd.f32 %v1694, %v1841
    %v1843 = vpop.f32.mrb[0].mxu0
    %1844 = vdwg.mxu0
    %1845 = vmatprep.subr.mxu0 0.0
    %v1846 = vand.u32 %v44, 4294901760
    %v1847 = vsub.f32 %v44, %v1846
    %1848 = vmatpush1.msra.mxu0 %v1847
    %1849 = vmatprep.subr.mxu0 0.0
    %1850 = vmatpush1.msra.mxu0 0.0
    %1851 = vmatprep.subr.mxu0 0.0
    %1852 = vmatpush1.msra.mxu0 0.0
    %1853 = vmatprep.subr.mxu0 0.0
    %1854 = vmatpush1.msra.mxu0 0.0
    %1855 = vmatprep.subr.mxu0 0.0
    %1856 = vmatpush1.msra.mxu0 0.0
    %1857 = vmatprep.subr.mxu0 0.0
    %1858 = vmatpush1.msra.mxu0 0.0
    %1859 = vmatprep.subr.mxu0 0.0
    %1860 = vmatpush1.msra.mxu0 0.0
    %1861 = vmatprep.subr.mxu0 0.0
    %1862 = vmatpush1.msra.mxu0 0.0
    %1863 = vmatprep.subr.mxu0 0.0
    %1864 = vmatpush1.msra.mxu0 0.0
    %1865 = vmatprep.subr.mxu0 0.0
    %1866 = vmatpush1.msra.mxu0 0.0
    %1867 = vmatprep.subr.mxu0 0.0
    %1868 = vmatpush1.msra.mxu0 0.0
    %1869 = vmatprep.subr.mxu0 0.0
    %1870 = vmatpush1.msra.mxu0 0.0
    %1871 = vmatprep.subr.mxu0 0.0
    %1872 = vmatpush1.msra.mxu0 0.0
    %1873 = vmatprep.subr.mxu0 0.0
    %1874 = vmatpush1.msra.mxu0 0.0
    %1875 = vmatprep.subr.mxu0 0.0
    %1876 = vmatpush1.msra.mxu0 0.0
    %1877 = vmatprep.subr.mxu0 0.0
    %1878 = vmatpush1.msra.mxu0 0.0
    %1879 = vmatprep.subr.mxu0 0.0
    %1880 = vmatpush1.msra.mxu0 0.0
    %1881 = vmatprep.subr.mxu0 0.0
    %1882 = vmatpush1.msra.mxu0 0.0
    %1883 = vmatprep.subr.mxu0 0.0
    %1884 = vmatpush1.msra.mxu0 0.0
    %1885 = vmatprep.subr.mxu0 0.0
    %1886 = vmatpush1.msra.mxu0 0.0
    %1887 = vmatprep.subr.mxu0 0.0
    %1888 = vmatpush1.msra.mxu0 0.0
    %1889 = vmatprep.subr.mxu0 0.0
    %1890 = vmatpush1.msra.mxu0 0.0
    %1891 = vmatprep.subr.mxu0 0.0
    %1892 = vmatpush1.msra.mxu0 0.0
    %1893 = vmatprep.subr.mxu0 0.0
    %1894 = vmatpush1.msra.mxu0 0.0
    %1895 = vmatprep.subr.mxu0 0.0
    %1896 = vmatpush1.msra.mxu0 0.0
    %1897 = vmatprep.subr.mxu0 0.0
    %1898 = vmatpush1.msra.mxu0 0.0
    %1899 = vmatprep.subr.mxu0 0.0
    %1900 = vmatpush1.msra.mxu0 0.0
    %1901 = vmatprep.subr.mxu0 0.0
    %1902 = vmatpush1.msra.mxu0 0.0
    %1903 = vmatprep.subr.mxu0 0.0
    %1904 = vmatpush1.msra.mxu0 0.0
    %1905 = vmatprep.subr.mxu0 0.0
    %1906 = vmatpush1.msra.mxu0 0.0
    %1907 = vmatprep.subr.mxu0 0.0
    %1908 = vmatpush1.msra.mxu0 0.0
    %1909 = vmatprep.subr.mxu0 0.0
    %1910 = vmatpush1.msra.mxu0 0.0
    %1911 = vmatprep.mubr.f32.mxu0 0.0
    %v1912 = vand.u32 %v1475, 4294901760
    %v1913 = vsub.f32 %v1475, %v1912
    %1914 = vmatmul.mubr.f32.gmra.mrb[0].mxu0 %v1913
    %v1915 = vpop.f32.mrb[0].mxu0
    %v1916 = vadd.f32 %v1770, %v1915
    %v1917 = vpop.f32.mrb[0].mxu0
    %1918 = vmatprep.mubr.f32.mxu0 0.0
    %v1919 = vand.u32 %v1477, 4294901760
    %v1920 = vsub.f32 %v1477, %v1919
    %1921 = vmatmul.mubr.f32.gmra.mrb[0].mxu0 %v1920
    %v1922 = vpop.f32.mrb[0].mxu0
    %v1923 = vadd.f32 %v1776, %v1922
    %v1924 = vpop.f32.mrb[0].mxu0
    %1925 = vmatprep.mubr.f32.mxu0 0.0
    %v1926 = vand.u32 %v1479, 4294901760
    %v1927 = vsub.f32 %v1479, %v1926
    %1928 = vmatmul.mubr.f32.gmra.mrb[0].mxu0 %v1927
    %v1929 = vpop.f32.mrb[0].mxu0
    %v1930 = vadd.f32 %v1782, %v1929
    %v1931 = vpop.f32.mrb[0].mxu0
    %1932 = vmatprep.mubr.f32.mxu0 0.0
    %v1933 = vand.u32 %v1481, 4294901760
    %v1934 = vsub.f32 %v1481, %v1933
    %1935 = vmatmul.mubr.f32.gmra.mrb[0].mxu0 %v1934
    %v1936 = vpop.f32.mrb[0].mxu0
    %v1937 = vadd.f32 %v1788, %v1936
    %v1938 = vpop.f32.mrb[0].mxu0
    %1939 = vmatprep.mubr.f32.mxu0 0.0
    %v1940 = vand.u32 %v1483, 4294901760
    %v1941 = vsub.f32 %v1483, %v1940
    %1942 = vmatmul.mubr.f32.gmra.mrb[0].mxu0 %v1941
    %v1943 = vpop.f32.mrb[0].mxu0
    %v1944 = vadd.f32 %v1794, %v1943
    %v1945 = vpop.f32.mrb[0].mxu0
    %1946 = vmatprep.mubr.f32.mxu0 0.0
    %v1947 = vand.u32 %v1485, 4294901760
    %v1948 = vsub.f32 %v1485, %v1947
    %1949 = vmatmul.mubr.f32.gmra.mrb[0].mxu0 %v1948
    %v1950 = vpop.f32.mrb[0].mxu0
    %v1951 = vadd.f32 %v1800, %v1950
    %v1952 = vpop.f32.mrb[0].mxu0
    %1953 = vmatprep.mubr.f32.mxu0 0.0
    %v1954 = vand.u32 %v1487, 4294901760
    %v1955 = vsub.f32 %v1487, %v1954
    %1956 = vmatmul.mubr.f32.gmra.mrb[0].mxu0 %v1955
    %v1957 = vpop.f32.mrb[0].mxu0
    %v1958 = vadd.f32 %v1806, %v1957
    %v1959 = vpop.f32.mrb[0].mxu0
    %1960 = vmatprep.mubr.f32.mxu0 0.0
    %v1961 = vand.u32 %v1489, 4294901760
    %v1962 = vsub.f32 %v1489, %v1961
    %1963 = vmatmul.mubr.f32.gmra.mrb[0].mxu0 %v1962
    %v1964 = vpop.f32.mrb[0].mxu0
    %v1965 = vadd.f32 %v1812, %v1964
    %v1966 = vpop.f32.mrb[0].mxu0
    %1967 = vmatprep.mubr.f32.mxu0 0.0
    %v1968 = vand.u32 %v1491, 4294901760
    %v1969 = vsub.f32 %v1491, %v1968
    %1970 = vmatmul.mubr.f32.gmra.mrb[0].mxu0 %v1969
    %v1971 = vpop.f32.mrb[0].mxu0
    %v1972 = vadd.f32 %v1818, %v1971
    %v1973 = vpop.f32.mrb[0].mxu0
    %1974 = vmatprep.mubr.f32.mxu0 0.0
    %v1975 = vand.u32 %v1493, 4294901760
    %v1976 = vsub.f32 %v1493, %v1975
    %1977 = vmatmul.mubr.f32.gmra.mrb[0].mxu0 %v1976
    %v1978 = vpop.f32.mrb[0].mxu0
    %v1979 = vadd.f32 %v1824, %v1978
    %v1980 = vpop.f32.mrb[0].mxu0
    %1981 = vmatprep.mubr.f32.mxu0 0.0
    %v1982 = vand.u32 %v1495, 4294901760
    %v1983 = vsub.f32 %v1495, %v1982
    %1984 = vmatmul.mubr.f32.gmra.mrb[0].mxu0 %v1983
    %v1985 = vpop.f32.mrb[0].mxu0
    %v1986 = vadd.f32 %v1830, %v1985
    %v1987 = vpop.f32.mrb[0].mxu0
    %1988 = vmatprep.mubr.f32.mxu0 0.0
    %v1989 = vand.u32 %v1497, 4294901760
    %v1990 = vsub.f32 %v1497, %v1989
    %1991 = vmatmul.mubr.f32.gmra.mrb[0].mxu0 %v1990
    %v1992 = vpop.f32.mrb[0].mxu0
    %v1993 = vadd.f32 %v1836, %v1992
    %v1994 = vpop.f32.mrb[0].mxu0
    %1995 = vmatprep.mubr.f32.mxu0 0.0
    %v1996 = vand.u32 %v1499, 4294901760
    %v1997 = vsub.f32 %v1499, %v1996
    %1998 = vmatmul.mubr.f32.gmra.mrb[0].mxu0 %v1997
    %v1999 = vpop.f32.mrb[0].mxu0
    %v2000 = vadd.f32 %v1842, %v1999
    %v2001 = vpop.f32.mrb[0].mxu0
    %2002 = vdwg.mxu0
    %2003 = vmatprep.subr.mxu0 0.0
    %v2004 = vand.u32 %v44, 4294901760
    %2005 = vmatpush1.msra.mxu0 %v2004
    %2006 = vmatprep.subr.mxu0 0.0
    %2007 = vmatpush1.msra.mxu0 0.0
    %2008 = vmatprep.subr.mxu0 0.0
    %2009 = vmatpush1.msra.mxu0 0.0
    %2010 = vmatprep.subr.mxu0 0.0
    %2011 = vmatpush1.msra.mxu0 0.0
    %2012 = vmatprep.subr.mxu0 0.0
    %2013 = vmatpush1.msra.mxu0 0.0
    %2014 = vmatprep.subr.mxu0 0.0
    %2015 = vmatpush1.msra.mxu0 0.0
    %2016 = vmatprep.subr.mxu0 0.0
    %2017 = vmatpush1.msra.mxu0 0.0
    %2018 = vmatprep.subr.mxu0 0.0
    %2019 = vmatpush1.msra.mxu0 0.0
    %2020 = vmatprep.subr.mxu0 0.0
    %2021 = vmatpush1.msra.mxu0 0.0
    %2022 = vmatprep.subr.mxu0 0.0
    %2023 = vmatpush1.msra.mxu0 0.0
    %2024 = vmatprep.subr.mxu0 0.0
    %2025 = vmatpush1.msra.mxu0 0.0
    %2026 = vmatprep.subr.mxu0 0.0
    %2027 = vmatpush1.msra.mxu0 0.0
    %2028 = vmatprep.subr.mxu0 0.0
    %2029 = vmatpush1.msra.mxu0 0.0
    %2030 = vmatprep.subr.mxu0 0.0
    %2031 = vmatpush1.msra.mxu0 0.0
    %2032 = vmatprep.subr.mxu0 0.0
    %2033 = vmatpush1.msra.mxu0 0.0
    %2034 = vmatprep.subr.mxu0 0.0
    %2035 = vmatpush1.msra.mxu0 0.0
    %2036 = vmatprep.subr.mxu0 0.0
    %2037 = vmatpush1.msra.mxu0 0.0
    %2038 = vmatprep.subr.mxu0 0.0
    %2039 = vmatpush1.msra.mxu0 0.0
    %2040 = vmatprep.subr.mxu0 0.0
    %2041 = vmatpush1.msra.mxu0 0.0
    %2042 = vmatprep.subr.mxu0 0.0
    %2043 = vmatpush1.msra.mxu0 0.0
    %2044 = vmatprep.subr.mxu0 0.0
    %2045 = vmatpush1.msra.mxu0 0.0
    %2046 = vmatprep.subr.mxu0 0.0
    %2047 = vmatpush1.msra.mxu0 0.0
    %2048 = vmatprep.subr.mxu0 0.0
    %2049 = vmatpush1.msra.mxu0 0.0
    %2050 = vmatprep.subr.mxu0 0.0
    %2051 = vmatpush1.msra.mxu0 0.0
    %2052 = vmatprep.subr.mxu0 0.0
    %2053 = vmatpush1.msra.mxu0 0.0
    %2054 = vmatprep.subr.mxu0 0.0
    %2055 = vmatpush1.msra.mxu0 0.0
    %2056 = vmatprep.subr.mxu0 0.0
    %2057 = vmatpush1.msra.mxu0 0.0
    %2058 = vmatprep.subr.mxu0 0.0
    %2059 = vmatpush1.msra.mxu0 0.0
    %2060 = vmatprep.subr.mxu0 0.0
    %2061 = vmatpush1.msra.mxu0 0.0
    %2062 = vmatprep.subr.mxu0 0.0
    %2063 = vmatpush1.msra.mxu0 0.0
    %2064 = vmatprep.subr.mxu0 0.0
    %2065 = vmatpush1.msra.mxu0 0.0
    %2066 = vmatprep.subr.mxu0 0.0
    %2067 = vmatpush1.msra.mxu0 0.0
    %2068 = vmatprep.mubr.f32.mxu0 0.0
    %v2069 = vand.u32 %v1475, 4294901760
    %v2070 = vsub.f32 %v1475, %v2069
    %v2071 = vand.u32 %v2070, 4294901760
    %2072 = vmatmul.mubr.f32.gmra.mrb[0].mxu0 %v2071
    %v2073 = vpop.f32.mrb[0].mxu0
    %v2074 = vadd.f32 %v1916, %v2073
    %v2075 = vpop.f32.mrb[0].mxu0
    %2076 = vmatprep.mubr.f32.mxu0 0.0
    %v2077 = vand.u32 %v1477, 4294901760
    %v2078 = vsub.f32 %v1477, %v2077
    %v2079 = vand.u32 %v2078, 4294901760
    %2080 = vmatmul.mubr.f32.gmra.mrb[0].mxu0 %v2079
    %v2081 = vpop.f32.mrb[0].mxu0
    %v2082 = vadd.f32 %v1923, %v2081
    %v2083 = vpop.f32.mrb[0].mxu0
    %2084 = vmatprep.mubr.f32.mxu0 0.0
    %v2085 = vand.u32 %v1479, 4294901760
    %v2086 = vsub.f32 %v1479, %v2085
    %v2087 = vand.u32 %v2086, 4294901760
    %2088 = vmatmul.mubr.f32.gmra.mrb[0].mxu0 %v2087
    %v2089 = vpop.f32.mrb[0].mxu0
    %v2090 = vadd.f32 %v1930, %v2089
    %v2091 = vpop.f32.mrb[0].mxu0
    %2092 = vmatprep.mubr.f32.mxu0 0.0
    %v2093 = vand.u32 %v1481, 4294901760
    %v2094 = vsub.f32 %v1481, %v2093
    %v2095 = vand.u32 %v2094, 4294901760
    %2096 = vmatmul.mubr.f32.gmra.mrb[0].mxu0 %v2095
    %v2097 = vpop.f32.mrb[0].mxu0
    %v2098 = vadd.f32 %v1937, %v2097
    %v2099 = vpop.f32.mrb[0].mxu0
    %2100 = vmatprep.mubr.f32.mxu0 0.0
    %v2101 = vand.u32 %v1483, 4294901760
    %v2102 = vsub.f32 %v1483, %v2101
    %v2103 = vand.u32 %v2102, 4294901760
    %2104 = vmatmul.mubr.f32.gmra.mrb[0].mxu0 %v2103
    %v2105 = vpop.f32.mrb[0].mxu0
    %v2106 = vadd.f32 %v1944, %v2105
    %v2107 = vpop.f32.mrb[0].mxu0
    %2108 = vmatprep.mubr.f32.mxu0 0.0
    %v2109 = vand.u32 %v1485, 4294901760
    %v2110 = vsub.f32 %v1485, %v2109
    %v2111 = vand.u32 %v2110, 4294901760
    %2112 = vmatmul.mubr.f32.gmra.mrb[0].mxu0 %v2111
    %v2113 = vpop.f32.mrb[0].mxu0
    %v2114 = vadd.f32 %v1951, %v2113
    %v2115 = vpop.f32.mrb[0].mxu0
    %2116 = vmatprep.mubr.f32.mxu0 0.0
    %v2117 = vand.u32 %v1487, 4294901760
    %v2118 = vsub.f32 %v1487, %v2117
    %v2119 = vand.u32 %v2118, 4294901760
    %2120 = vmatmul.mubr.f32.gmra.mrb[0].mxu0 %v2119
    %v2121 = vpop.f32.mrb[0].mxu0
    %v2122 = vadd.f32 %v1958, %v2121
    %v2123 = vpop.f32.mrb[0].mxu0
    %2124 = vmatprep.mubr.f32.mxu0 0.0
    %v2125 = vand.u32 %v1489, 4294901760
    %v2126 = vsub.f32 %v1489, %v2125
    %v2127 = vand.u32 %v2126, 4294901760
    %2128 = vmatmul.mubr.f32.gmra.mrb[0].mxu0 %v2127
    %v2129 = vpop.f32.mrb[0].mxu0
    %v2130 = vadd.f32 %v1965, %v2129
    %v2131 = vpop.f32.mrb[0].mxu0
    %2132 = vmatprep.mubr.f32.mxu0 0.0
    %v2133 = vand.u32 %v1491, 4294901760
    %v2134 = vsub.f32 %v1491, %v2133
    %v2135 = vand.u32 %v2134, 4294901760
    %2136 = vmatmul.mubr.f32.gmra.mrb[0].mxu0 %v2135
    %v2137 = vpop.f32.mrb[0].mxu0
    %v2138 = vadd.f32 %v1972, %v2137
    %v2139 = vpop.f32.mrb[0].mxu0
    %2140 = vmatprep.mubr.f32.mxu0 0.0
    %v2141 = vand.u32 %v1493, 4294901760
    %v2142 = vsub.f32 %v1493, %v2141
    %v2143 = vand.u32 %v2142, 4294901760
    %2144 = vmatmul.mubr.f32.gmra.mrb[0].mxu0 %v2143
    %v2145 = vpop.f32.mrb[0].mxu0
    %v2146 = vadd.f32 %v1979, %v2145
    %v2147 = vpop.f32.mrb[0].mxu0
    %2148 = vmatprep.mubr.f32.mxu0 0.0
    %v2149 = vand.u32 %v1495, 4294901760
    %v2150 = vsub.f32 %v1495, %v2149
    %v2151 = vand.u32 %v2150, 4294901760
    %2152 = vmatmul.mubr.f32.gmra.mrb[0].mxu0 %v2151
    %v2153 = vpop.f32.mrb[0].mxu0
    %v2154 = vadd.f32 %v1986, %v2153
    %v2155 = vpop.f32.mrb[0].mxu0
    %2156 = vmatprep.mubr.f32.mxu0 0.0
    %v2157 = vand.u32 %v1497, 4294901760
    %v2158 = vsub.f32 %v1497, %v2157
    %v2159 = vand.u32 %v2158, 4294901760
    %2160 = vmatmul.mubr.f32.gmra.mrb[0].mxu0 %v2159
    %v2161 = vpop.f32.mrb[0].mxu0
    %v2162 = vadd.f32 %v1993, %v2161
    %v2163 = vpop.f32.mrb[0].mxu0
    %2164 = vmatprep.mubr.f32.mxu0 0.0
    %v2165 = vand.u32 %v1499, 4294901760
    %v2166 = vsub.f32 %v1499, %v2165
    %v2167 = vand.u32 %v2166, 4294901760
    %2168 = vmatmul.mubr.f32.gmra.mrb[0].mxu0 %v2167
    %v2169 = vpop.f32.mrb[0].mxu0
    %v2170 = vadd.f32 %v2000, %v2169
    %v2171 = vpop.f32.mrb[0].mxu0
    %2172 = vdwg.mxu0
    %2173 = vmatprep.subr.mxu0 0.0
    %v2174 = vand.u32 %v44, 4294901760
    %v2175 = vsub.f32 %v44, %v2174
    %v2176 = vand.u32 %v2175, 4294901760
    %2177 = vmatpush1.msra.mxu0 %v2176
    %2178 = vmatprep.subr.mxu0 0.0
    %2179 = vmatpush1.msra.mxu0 0.0
    %2180 = vmatprep.subr.mxu0 0.0
    %2181 = vmatpush1.msra.mxu0 0.0
    %2182 = vmatprep.subr.mxu0 0.0
    %2183 = vmatpush1.msra.mxu0 0.0
    %2184 = vmatprep.subr.mxu0 0.0
    %2185 = vmatpush1.msra.mxu0 0.0
    %2186 = vmatprep.subr.mxu0 0.0
    %2187 = vmatpush1.msra.mxu0 0.0
    %2188 = vmatprep.subr.mxu0 0.0
    %2189 = vmatpush1.msra.mxu0 0.0
    %2190 = vmatprep.subr.mxu0 0.0
    %2191 = vmatpush1.msra.mxu0 0.0
    %2192 = vmatprep.subr.mxu0 0.0
    %2193 = vmatpush1.msra.mxu0 0.0
    %2194 = vmatprep.subr.mxu0 0.0
    %2195 = vmatpush1.msra.mxu0 0.0
    %2196 = vmatprep.subr.mxu0 0.0
    %2197 = vmatpush1.msra.mxu0 0.0
    %2198 = vmatprep.subr.mxu0 0.0
    %2199 = vmatpush1.msra.mxu0 0.0
    %2200 = vmatprep.subr.mxu0 0.0
    %2201 = vmatpush1.msra.mxu0 0.0
    %2202 = vmatprep.subr.mxu0 0.0
    %2203 = vmatpush1.msra.mxu0 0.0
    %2204 = vmatprep.subr.mxu0 0.0
    %2205 = vmatpush1.msra.mxu0 0.0
    %2206 = vmatprep.subr.mxu0 0.0
    %2207 = vmatpush1.msra.mxu0 0.0
    %2208 = vmatprep.subr.mxu0 0.0
    %2209 = vmatpush1.msra.mxu0 0.0
    %2210 = vmatprep.subr.mxu0 0.0
    %2211 = vmatpush1.msra.mxu0 0.0
    %2212 = vmatprep.subr.mxu0 0.0
    %2213 = vmatpush1.msra.mxu0 0.0
    %2214 = vmatprep.subr.mxu0 0.0
    %2215 = vmatpush1.msra.mxu0 0.0
    %2216 = vmatprep.subr.mxu0 0.0
    %2217 = vmatpush1.msra.mxu0 0.0
    %2218 = vmatprep.subr.mxu0 0.0
    %2219 = vmatpush1.msra.mxu0 0.0
    %2220 = vmatprep.subr.mxu0 0.0
    %2221 = vmatpush1.msra.mxu0 0.0
    %2222 = vmatprep.subr.mxu0 0.0
    %2223 = vmatpush1.msra.mxu0 0.0
    %2224 = vmatprep.subr.mxu0 0.0
    %2225 = vmatpush1.msra.mxu0 0.0
    %2226 = vmatprep.subr.mxu0 0.0
    %2227 = vmatpush1.msra.mxu0 0.0
    %2228 = vmatprep.subr.mxu0 0.0
    %2229 = vmatpush1.msra.mxu0 0.0
    %2230 = vmatprep.subr.mxu0 0.0
    %2231 = vmatpush1.msra.mxu0 0.0
    %2232 = vmatprep.subr.mxu0 0.0
    %2233 = vmatpush1.msra.mxu0 0.0
    %2234 = vmatprep.subr.mxu0 0.0
    %2235 = vmatpush1.msra.mxu0 0.0
    %2236 = vmatprep.subr.mxu0 0.0
    %2237 = vmatpush1.msra.mxu0 0.0
    %2238 = vmatprep.subr.mxu0 0.0
    %2239 = vmatpush1.msra.mxu0 0.0
    %2240 = vmatprep.mubr.f32.mxu0 0.0
    %v2241 = vand.u32 %v1475, 4294901760
    %2242 = vmatmul.mubr.f32.gmra.mrb[0].mxu0 %v2241
    %v2243 = vpop.f32.mrb[0].mxu0
    %v2244 = vadd.f32 %v2074, %v2243
    %v2245 = vpop.f32.mrb[0].mxu0
    %2246 = vmatprep.mubr.f32.mxu0 0.0
    %v2247 = vand.u32 %v1477, 4294901760
    %2248 = vmatmul.mubr.f32.gmra.mrb[0].mxu0 %v2247
    %v2249 = vpop.f32.mrb[0].mxu0
    %v2250 = vadd.f32 %v2082, %v2249
    %v2251 = vpop.f32.mrb[0].mxu0
    %2252 = vmatprep.mubr.f32.mxu0 0.0
    %v2253 = vand.u32 %v1479, 4294901760
    %2254 = vmatmul.mubr.f32.gmra.mrb[0].mxu0 %v2253
    %v2255 = vpop.f32.mrb[0].mxu0
    %v2256 = vadd.f32 %v2090, %v2255
    %v2257 = vpop.f32.mrb[0].mxu0
    %2258 = vmatprep.mubr.f32.mxu0 0.0
    %v2259 = vand.u32 %v1481, 4294901760
    %2260 = vmatmul.mubr.f32.gmra.mrb[0].mxu0 %v2259
    %v2261 = vpop.f32.mrb[0].mxu0
    %v2262 = vadd.f32 %v2098, %v2261
    %v2263 = vpop.f32.mrb[0].mxu0
    %2264 = vmatprep.mubr.f32.mxu0 0.0
    %v2265 = vand.u32 %v1483, 4294901760
    %2266 = vmatmul.mubr.f32.gmra.mrb[0].mxu0 %v2265
    %v2267 = vpop.f32.mrb[0].mxu0
    %v2268 = vadd.f32 %v2106, %v2267
    %v2269 = vpop.f32.mrb[0].mxu0
    %2270 = vmatprep.mubr.f32.mxu0 0.0
    %v2271 = vand.u32 %v1485, 4294901760
    %2272 = vmatmul.mubr.f32.gmra.mrb[0].mxu0 %v2271
    %v2273 = vpop.f32.mrb[0].mxu0
    %v2274 = vadd.f32 %v2114, %v2273
    %v2275 = vpop.f32.mrb[0].mxu0
    %2276 = vmatprep.mubr.f32.mxu0 0.0
    %v2277 = vand.u32 %v1487, 4294901760
    %2278 = vmatmul.mubr.f32.gmra.mrb[0].mxu0 %v2277
    %v2279 = vpop.f32.mrb[0].mxu0
    %v2280 = vadd.f32 %v2122, %v2279
    %v2281 = vpop.f32.mrb[0].mxu0
    %2282 = vmatprep.mubr.f32.mxu0 0.0
    %v2283 = vand.u32 %v1489, 4294901760
    %2284 = vmatmul.mubr.f32.gmra.mrb[0].mxu0 %v2283
    %v2285 = vpop.f32.mrb[0].mxu0
    %v2286 = vadd.f32 %v2130, %v2285
    %v2287 = vpop.f32.mrb[0].mxu0
    %2288 = vmatprep.mubr.f32.mxu0 0.0
    %v2289 = vand.u32 %v1491, 4294901760
    %2290 = vmatmul.mubr.f32.gmra.mrb[0].mxu0 %v2289
    %v2291 = vpop.f32.mrb[0].mxu0
    %v2292 = vadd.f32 %v2138, %v2291
    %v2293 = vpop.f32.mrb[0].mxu0
    %2294 = vmatprep.mubr.f32.mxu0 0.0
    %v2295 = vand.u32 %v1493, 4294901760
    %2296 = vmatmul.mubr.f32.gmra.mrb[0].mxu0 %v2295
    %v2297 = vpop.f32.mrb[0].mxu0
    %v2298 = vadd.f32 %v2146, %v2297
    %v2299 = vpop.f32.mrb[0].mxu0
    %2300 = vmatprep.mubr.f32.mxu0 0.0
    %v2301 = vand.u32 %v1495, 4294901760
    %2302 = vmatmul.mubr.f32.gmra.mrb[0].mxu0 %v2301
    %v2303 = vpop.f32.mrb[0].mxu0
    %v2304 = vadd.f32 %v2154, %v2303
    %v2305 = vpop.f32.mrb[0].mxu0
    %2306 = vmatprep.mubr.f32.mxu0 0.0
    %v2307 = vand.u32 %v1497, 4294901760
    %2308 = vmatmul.mubr.f32.gmra.mrb[0].mxu0 %v2307
    %v2309 = vpop.f32.mrb[0].mxu0
    %v2310 = vadd.f32 %v2162, %v2309
    %v2311 = vpop.f32.mrb[0].mxu0
    %2312 = vmatprep.mubr.f32.mxu0 0.0
    %v2313 = vand.u32 %v1499, 4294901760
    %2314 = vmatmul.mubr.f32.gmra.mrb[0].mxu0 %v2313
    %v2315 = vpop.f32.mrb[0].mxu0
    %v2316 = vadd.f32 %v2170, %v2315
    %v2317 = vpop.f32.mrb[0].mxu0
    %2318 = vdwg.mxu0
    %2319 = vmatprep.subr.mxu0 0.0
    %v2320 = vand.u32 %v44, 4294901760
    %2321 = vmatpush1.msra.mxu0 %v2320
    %2322 = vmatprep.subr.mxu0 0.0
    %2323 = vmatpush1.msra.mxu0 0.0
    %2324 = vmatprep.subr.mxu0 0.0
    %2325 = vmatpush1.msra.mxu0 0.0
    %2326 = vmatprep.subr.mxu0 0.0
    %2327 = vmatpush1.msra.mxu0 0.0
    %2328 = vmatprep.subr.mxu0 0.0
    %2329 = vmatpush1.msra.mxu0 0.0
    %2330 = vmatprep.subr.mxu0 0.0
    %2331 = vmatpush1.msra.mxu0 0.0
    %2332 = vmatprep.subr.mxu0 0.0
    %2333 = vmatpush1.msra.mxu0 0.0
    %2334 = vmatprep.subr.mxu0 0.0
    %2335 = vmatpush1.msra.mxu0 0.0
    %2336 = vmatprep.subr.mxu0 0.0
    %2337 = vmatpush1.msra.mxu0 0.0
    %2338 = vmatprep.subr.mxu0 0.0
    %2339 = vmatpush1.msra.mxu0 0.0
    %2340 = vmatprep.subr.mxu0 0.0
    %2341 = vmatpush1.msra.mxu0 0.0
    %2342 = vmatprep.subr.mxu0 0.0
    %2343 = vmatpush1.msra.mxu0 0.0
    %2344 = vmatprep.subr.mxu0 0.0
    %2345 = vmatpush1.msra.mxu0 0.0
    %2346 = vmatprep.subr.mxu0 0.0
    %2347 = vmatpush1.msra.mxu0 0.0
    %2348 = vmatprep.subr.mxu0 0.0
    %2349 = vmatpush1.msra.mxu0 0.0
    %2350 = vmatprep.subr.mxu0 0.0
    %2351 = vmatpush1.msra.mxu0 0.0
    %2352 = vmatprep.subr.mxu0 0.0
    %2353 = vmatpush1.msra.mxu0 0.0
    %2354 = vmatprep.subr.mxu0 0.0
    %2355 = vmatpush1.msra.mxu0 0.0
    %2356 = vmatprep.subr.mxu0 0.0
    %2357 = vmatpush1.msra.mxu0 0.0
    %2358 = vmatprep.subr.mxu0 0.0
    %2359 = vmatpush1.msra.mxu0 0.0
    %2360 = vmatprep.subr.mxu0 0.0
    %2361 = vmatpush1.msra.mxu0 0.0
    %2362 = vmatprep.subr.mxu0 0.0
    %2363 = vmatpush1.msra.mxu0 0.0
    %2364 = vmatprep.subr.mxu0 0.0
    %2365 = vmatpush1.msra.mxu0 0.0
    %2366 = vmatprep.subr.mxu0 0.0
    %2367 = vmatpush1.msra.mxu0 0.0
    %2368 = vmatprep.subr.mxu0 0.0
    %2369 = vmatpush1.msra.mxu0 0.0
    %2370 = vmatprep.subr.mxu0 0.0
    %2371 = vmatpush1.msra.mxu0 0.0
    %2372 = vmatprep.subr.mxu0 0.0
    %2373 = vmatpush1.msra.mxu0 0.0
    %2374 = vmatprep.subr.mxu0 0.0
    %2375 = vmatpush1.msra.mxu0 0.0
    %2376 = vmatprep.subr.mxu0 0.0
    %2377 = vmatpush1.msra.mxu0 0.0
    %2378 = vmatprep.subr.mxu0 0.0
    %2379 = vmatpush1.msra.mxu0 0.0
    %2380 = vmatprep.subr.mxu0 0.0
    %2381 = vmatpush1.msra.mxu0 0.0
    %2382 = vmatprep.subr.mxu0 0.0
    %2383 = vmatpush1.msra.mxu0 0.0
    %2384 = vmatprep.mubr.f32.mxu0 0.0
    %v2385 = vand.u32 %v1475, 4294901760
    %2386 = vmatmul.mubr.f32.gmra.mrb[0].mxu0 %v2385
    %v2387 = vpop.f32.mrb[0].mxu0
    %v2388 = vadd.f32 %v2244, %v2387
    %v2389 = vpop.f32.mrb[0].mxu0
    %2390 = vmatprep.mubr.f32.mxu0 0.0
    %v2391 = vand.u32 %v1477, 4294901760
    %2392 = vmatmul.mubr.f32.gmra.mrb[0].mxu0 %v2391
    %v2393 = vpop.f32.mrb[0].mxu0
    %v2394 = vadd.f32 %v2250, %v2393
    %v2395 = vpop.f32.mrb[0].mxu0
    %2396 = vmatprep.mubr.f32.mxu0 0.0
    %v2397 = vand.u32 %v1479, 4294901760
    %2398 = vmatmul.mubr.f32.gmra.mrb[0].mxu0 %v2397
    %v2399 = vpop.f32.mrb[0].mxu0
    %v2400 = vadd.f32 %v2256, %v2399
    %v2401 = vpop.f32.mrb[0].mxu0
    %2402 = vmatprep.mubr.f32.mxu0 0.0
    %v2403 = vand.u32 %v1481, 4294901760
    %2404 = vmatmul.mubr.f32.gmra.mrb[0].mxu0 %v2403
    %v2405 = vpop.f32.mrb[0].mxu0
    %v2406 = vadd.f32 %v2262, %v2405
    %v2407 = vpop.f32.mrb[0].mxu0
    %2408 = vmatprep.mubr.f32.mxu0 0.0
    %v2409 = vand.u32 %v1483, 4294901760
    %2410 = vmatmul.mubr.f32.gmra.mrb[0].mxu0 %v2409
    %v2411 = vpop.f32.mrb[0].mxu0
    %v2412 = vadd.f32 %v2268, %v2411
    %v2413 = vpop.f32.mrb[0].mxu0
    %2414 = vmatprep.mubr.f32.mxu0 0.0
    %v2415 = vand.u32 %v1485, 4294901760
    %2416 = vmatmul.mubr.f32.gmra.mrb[0].mxu0 %v2415
    %v2417 = vpop.f32.mrb[0].mxu0
    %v2418 = vadd.f32 %v2274, %v2417
    %v2419 = vpop.f32.mrb[0].mxu0
    %2420 = vmatprep.mubr.f32.mxu0 0.0
    %v2421 = vand.u32 %v1487, 4294901760
    %2422 = vmatmul.mubr.f32.gmra.mrb[0].mxu0 %v2421
    %v2423 = vpop.f32.mrb[0].mxu0
    %v2424 = vadd.f32 %v2280, %v2423
    %v2425 = vpop.f32.mrb[0].mxu0
    %2426 = vmatprep.mubr.f32.mxu0 0.0
    %v2427 = vand.u32 %v1489, 4294901760
    %2428 = vmatmul.mubr.f32.gmra.mrb[0].mxu0 %v2427
    %v2429 = vpop.f32.mrb[0].mxu0
    %v2430 = vadd.f32 %v2286, %v2429
    %v2431 = vpop.f32.mrb[0].mxu0
    %2432 = vmatprep.mubr.f32.mxu0 0.0
    %v2433 = vand.u32 %v1491, 4294901760
    %2434 = vmatmul.mubr.f32.gmra.mrb[0].mxu0 %v2433
    %v2435 = vpop.f32.mrb[0].mxu0
    %v2436 = vadd.f32 %v2292, %v2435
    %v2437 = vpop.f32.mrb[0].mxu0
    %2438 = vmatprep.mubr.f32.mxu0 0.0
    %v2439 = vand.u32 %v1493, 4294901760
    %2440 = vmatmul.mubr.f32.gmra.mrb[0].mxu0 %v2439
    %v2441 = vpop.f32.mrb[0].mxu0
    %v2442 = vadd.f32 %v2298, %v2441
    %v2443 = vpop.f32.mrb[0].mxu0
    %2444 = vmatprep.mubr.f32.mxu0 0.0
    %v2445 = vand.u32 %v1495, 4294901760
    %2446 = vmatmul.mubr.f32.gmra.mrb[0].mxu0 %v2445
    %v2447 = vpop.f32.mrb[0].mxu0
    %v2448 = vadd.f32 %v2304, %v2447
    %v2449 = vpop.f32.mrb[0].mxu0
    %2450 = vmatprep.mubr.f32.mxu0 0.0
    %v2451 = vand.u32 %v1497, 4294901760
    %2452 = vmatmul.mubr.f32.gmra.mrb[0].mxu0 %v2451
    %v2453 = vpop.f32.mrb[0].mxu0
    %v2454 = vadd.f32 %v2310, %v2453
    %v2455 = vpop.f32.mrb[0].mxu0
    %2456 = vmatprep.mubr.f32.mxu0 0.0
    %v2457 = vand.u32 %v1499, 4294901760
    %2458 = vmatmul.mubr.f32.gmra.mrb[0].mxu0 %v2457
    %v2459 = vpop.f32.mrb[0].mxu0
    %v2460 = vadd.f32 %v2316, %v2459
    %v2461 = vpop.f32.mrb[0].mxu0
    %2462 = vdwg.mxu0
    %v2463 = vlaneseq
    %v2464 = vshrl.u32 %v2463, 7
    %v2465 = vsub.s32 2, %v2464
    %v2466 = vrot.slane %v57, %v2465
    %v2467 = vadd.f32 %v2388, %v2466
    %v2468 = vadd.f32 %v2394, %v2466
    %v2469 = vadd.f32 %v2400, %v2466
    %v2470 = vadd.f32 %v2406, %v2466
    %v2471 = vadd.f32 %v2412, %v2466
    %v2472 = vadd.f32 %v2418, %v2466
    %v2473 = vadd.f32 %v2424, %v2466
    %v2474 = vadd.f32 %v2430, %v2466
    %v2475 = vadd.f32 %v2436, %v2466
    %v2476 = vadd.f32 %v2442, %v2466
    %v2477 = vadd.f32 %v2448, %v2466
    %v2478 = vadd.f32 %v2454, %v2466
    %v2479 = vadd.f32 %v2460, %v2466
    %v2480 = vmax.f32 %v2467, 0.0
    %v2481 = vmax.f32 %v2468, 0.0
    %v2482 = vmax.f32 %v2469, 0.0
    %v2483 = vmax.f32 %v2470, 0.0
    %v2484 = vmax.f32 %v2471, 0.0
    %v2485 = vmax.f32 %v2472, 0.0
    %v2486 = vmax.f32 %v2473, 0.0
    %v2487 = vmax.f32 %v2474, 0.0
    %v2488 = vmax.f32 %v2475, 0.0
    %v2489 = vmax.f32 %v2476, 0.0
    %v2490 = vmax.f32 %v2477, 0.0
    %v2491 = vmax.f32 %v2478, 0.0
    %v2492 = vmax.f32 %v2479, 0.0
    %v2493 = vlaneseq
    %v2494 = vshrl.u32 %v2493, 7
    %v2495 = vsub.s32 3, %v2494
    %v2496 = vrot.slane %v57, %v2495
    %vm2497 = vcmask 523264
    %v2499 = vsel %vm2497, %v2480, 0
    %v2502 = vsel %vm2497, %v2481, 0
    %v2505 = vsel %vm2497, %v2482, 0
    %v2508 = vsel %vm2497, %v2483, 0
    %v2511 = vsel %vm2497, %v2484, 0
    %v2514 = vsel %vm2497, %v2485, 0
    %v2517 = vsel %vm2497, %v2486, 0
    %v2520 = vsel %vm2497, %v2487, 0
    %v2523 = vsel %vm2497, %v2488, 0
    %v2526 = vsel %vm2497, %v2489, 0
    %v2529 = vsel %vm2497, %v2490, 0
    %v2532 = vsel %vm2497, %v2491, 0
    %v2535 = vsel %vm2497, %v2492, 0
    %2537 = vmatprep.subr.mxu0 0.0
    %v2538 = vand.u32 %v49, 4294901760
    %2539 = vmatpush1.msra.mxu0 %v2538
    %2540 = vmatprep.subr.mxu0 0.0
    %v2541 = vand.u32 %v50, 4294901760
    %2542 = vmatpush1.msra.mxu0 %v2541
    %2543 = vmatprep.subr.mxu0 0.0
    %v2544 = vand.u32 %v51, 4294901760
    %2545 = vmatpush1.msra.mxu0 %v2544
    %2546 = vmatprep.subr.mxu0 0.0
    %v2547 = vand.u32 %v52, 4294901760
    %2548 = vmatpush1.msra.mxu0 %v2547
    %2549 = vmatprep.subr.mxu0 0.0
    %v2550 = vand.u32 %v53, 4294901760
    %2551 = vmatpush1.msra.mxu0 %v2550
    %2552 = vmatprep.subr.mxu0 0.0
    %v2553 = vand.u32 %v54, 4294901760
    %2554 = vmatpush1.msra.mxu0 %v2553
    %2555 = vmatprep.subr.mxu0 0.0
    %v2556 = vand.u32 %v55, 4294901760
    %2557 = vmatpush1.msra.mxu0 %v2556
    %2558 = vmatprep.subr.mxu0 0.0
    %v2559 = vand.u32 %v56, 4294901760
    %2560 = vmatpush1.msra.mxu0 %v2559
    %2561 = vmatprep.subr.mxu0 0.0
    %2562 = vmatpush1.msra.mxu0 0.0
    %2563 = vmatprep.subr.mxu0 0.0
    %2564 = vmatpush1.msra.mxu0 0.0
    %2565 = vmatprep.subr.mxu0 0.0
    %2566 = vmatpush1.msra.mxu0 0.0
    %2567 = vmatprep.subr.mxu0 0.0
    %2568 = vmatpush1.msra.mxu0 0.0
    %2569 = vmatprep.subr.mxu0 0.0
    %2570 = vmatpush1.msra.mxu0 0.0
    %2571 = vmatprep.subr.mxu0 0.0
    %2572 = vmatpush1.msra.mxu0 0.0
    %2573 = vmatprep.subr.mxu0 0.0
    %2574 = vmatpush1.msra.mxu0 0.0
    %2575 = vmatprep.subr.mxu0 0.0
    %2576 = vmatpush1.msra.mxu0 0.0
    %2577 = vmatprep.subr.mxu0 0.0
    %2578 = vmatpush1.msra.mxu0 0.0
    %2579 = vmatprep.subr.mxu0 0.0
    %2580 = vmatpush1.msra.mxu0 0.0
    %2581 = vmatprep.subr.mxu0 0.0
    %2582 = vmatpush1.msra.mxu0 0.0
    %2583 = vmatprep.subr.mxu0 0.0
    %2584 = vmatpush1.msra.mxu0 0.0
    %2585 = vmatprep.subr.mxu0 0.0
    %2586 = vmatpush1.msra.mxu0 0.0
    %2587 = vmatprep.subr.mxu0 0.0
    %2588 = vmatpush1.msra.mxu0 0.0
    %2589 = vmatprep.subr.mxu0 0.0
    %2590 = vmatpush1.msra.mxu0 0.0
    %2591 = vmatprep.subr.mxu0 0.0
    %2592 = vmatpush1.msra.mxu0 0.0
    %2593 = vmatprep.subr.mxu0 0.0
    %2594 = vmatpush1.msra.mxu0 0.0
    %2595 = vmatprep.subr.mxu0 0.0
    %2596 = vmatpush1.msra.mxu0 0.0
    %2597 = vmatprep.subr.mxu0 0.0
    %2598 = vmatpush1.msra.mxu0 0.0
    %2599 = vmatprep.subr.mxu0 0.0
    %2600 = vmatpush1.msra.mxu0 0.0
    %2601 = vmatprep.subr.mxu0 0.0
    %2602 = vmatpush1.msra.mxu0 0.0
    %2603 = vmatprep.subr.mxu0 0.0
    %2604 = vmatpush1.msra.mxu0 0.0
    %2605 = vmatprep.subr.mxu0 0.0
    %2606 = vmatpush1.msra.mxu0 0.0
    %2607 = vmatprep.subr.mxu0 0.0
    %2608 = vmatpush1.msra.mxu0 0.0
    %2609 = vmatprep.mubr.f32.mxu0 0.0
    %v2610 = vand.u32 %v2499, 4294901760
    %v2611 = vsub.f32 %v2499, %v2610
    %v2612 = vand.u32 %v2611, 4294901760
    %v2613 = vsub.f32 %v2611, %v2612
    %v2614 = vand.u32 %v2613, 4294901760
    %2615 = vmatmul.mubr.f32.gmra.mrb[0].mxu0 %v2614
    %v2616 = vpop.f32.mrb[0].mxu0
    %v2617 = vadd.f32 %v2496, %v2616
    %v2618 = vpop.f32.mrb[0].mxu0
    %2619 = vmatprep.mubr.f32.mxu0 0.0
    %v2620 = vand.u32 %v2502, 4294901760
    %v2621 = vsub.f32 %v2502, %v2620
    %v2622 = vand.u32 %v2621, 4294901760
    %v2623 = vsub.f32 %v2621, %v2622
    %v2624 = vand.u32 %v2623, 4294901760
    %2625 = vmatmul.mubr.f32.gmra.mrb[0].mxu0 %v2624
    %v2626 = vpop.f32.mrb[0].mxu0
    %v2627 = vadd.f32 %v2496, %v2626
    %v2628 = vpop.f32.mrb[0].mxu0
    %2629 = vmatprep.mubr.f32.mxu0 0.0
    %v2630 = vand.u32 %v2505, 4294901760
    %v2631 = vsub.f32 %v2505, %v2630
    %v2632 = vand.u32 %v2631, 4294901760
    %v2633 = vsub.f32 %v2631, %v2632
    %v2634 = vand.u32 %v2633, 4294901760
    %2635 = vmatmul.mubr.f32.gmra.mrb[0].mxu0 %v2634
    %v2636 = vpop.f32.mrb[0].mxu0
    %v2637 = vadd.f32 %v2496, %v2636
    %v2638 = vpop.f32.mrb[0].mxu0
    %2639 = vmatprep.mubr.f32.mxu0 0.0
    %v2640 = vand.u32 %v2508, 4294901760
    %v2641 = vsub.f32 %v2508, %v2640
    %v2642 = vand.u32 %v2641, 4294901760
    %v2643 = vsub.f32 %v2641, %v2642
    %v2644 = vand.u32 %v2643, 4294901760
    %2645 = vmatmul.mubr.f32.gmra.mrb[0].mxu0 %v2644
    %v2646 = vpop.f32.mrb[0].mxu0
    %v2647 = vadd.f32 %v2496, %v2646
    %v2648 = vpop.f32.mrb[0].mxu0
    %2649 = vmatprep.mubr.f32.mxu0 0.0
    %v2650 = vand.u32 %v2511, 4294901760
    %v2651 = vsub.f32 %v2511, %v2650
    %v2652 = vand.u32 %v2651, 4294901760
    %v2653 = vsub.f32 %v2651, %v2652
    %v2654 = vand.u32 %v2653, 4294901760
    %2655 = vmatmul.mubr.f32.gmra.mrb[0].mxu0 %v2654
    %v2656 = vpop.f32.mrb[0].mxu0
    %v2657 = vadd.f32 %v2496, %v2656
    %v2658 = vpop.f32.mrb[0].mxu0
    %2659 = vmatprep.mubr.f32.mxu0 0.0
    %v2660 = vand.u32 %v2514, 4294901760
    %v2661 = vsub.f32 %v2514, %v2660
    %v2662 = vand.u32 %v2661, 4294901760
    %v2663 = vsub.f32 %v2661, %v2662
    %v2664 = vand.u32 %v2663, 4294901760
    %2665 = vmatmul.mubr.f32.gmra.mrb[0].mxu0 %v2664
    %v2666 = vpop.f32.mrb[0].mxu0
    %v2667 = vadd.f32 %v2496, %v2666
    %v2668 = vpop.f32.mrb[0].mxu0
    %2669 = vmatprep.mubr.f32.mxu0 0.0
    %v2670 = vand.u32 %v2517, 4294901760
    %v2671 = vsub.f32 %v2517, %v2670
    %v2672 = vand.u32 %v2671, 4294901760
    %v2673 = vsub.f32 %v2671, %v2672
    %v2674 = vand.u32 %v2673, 4294901760
    %2675 = vmatmul.mubr.f32.gmra.mrb[0].mxu0 %v2674
    %v2676 = vpop.f32.mrb[0].mxu0
    %v2677 = vadd.f32 %v2496, %v2676
    %v2678 = vpop.f32.mrb[0].mxu0
    %2679 = vmatprep.mubr.f32.mxu0 0.0
    %v2680 = vand.u32 %v2520, 4294901760
    %v2681 = vsub.f32 %v2520, %v2680
    %v2682 = vand.u32 %v2681, 4294901760
    %v2683 = vsub.f32 %v2681, %v2682
    %v2684 = vand.u32 %v2683, 4294901760
    %2685 = vmatmul.mubr.f32.gmra.mrb[0].mxu0 %v2684
    %v2686 = vpop.f32.mrb[0].mxu0
    %v2687 = vadd.f32 %v2496, %v2686
    %v2688 = vpop.f32.mrb[0].mxu0
    %2689 = vmatprep.mubr.f32.mxu0 0.0
    %v2690 = vand.u32 %v2523, 4294901760
    %v2691 = vsub.f32 %v2523, %v2690
    %v2692 = vand.u32 %v2691, 4294901760
    %v2693 = vsub.f32 %v2691, %v2692
    %v2694 = vand.u32 %v2693, 4294901760
    %2695 = vmatmul.mubr.f32.gmra.mrb[0].mxu0 %v2694
    %v2696 = vpop.f32.mrb[0].mxu0
    %v2697 = vadd.f32 %v2496, %v2696
    %v2698 = vpop.f32.mrb[0].mxu0
    %2699 = vmatprep.mubr.f32.mxu0 0.0
    %v2700 = vand.u32 %v2526, 4294901760
    %v2701 = vsub.f32 %v2526, %v2700
    %v2702 = vand.u32 %v2701, 4294901760
    %v2703 = vsub.f32 %v2701, %v2702
    %v2704 = vand.u32 %v2703, 4294901760
    %2705 = vmatmul.mubr.f32.gmra.mrb[0].mxu0 %v2704
    %v2706 = vpop.f32.mrb[0].mxu0
    %v2707 = vadd.f32 %v2496, %v2706
    %v2708 = vpop.f32.mrb[0].mxu0
    %2709 = vmatprep.mubr.f32.mxu0 0.0
    %v2710 = vand.u32 %v2529, 4294901760
    %v2711 = vsub.f32 %v2529, %v2710
    %v2712 = vand.u32 %v2711, 4294901760
    %v2713 = vsub.f32 %v2711, %v2712
    %v2714 = vand.u32 %v2713, 4294901760
    %2715 = vmatmul.mubr.f32.gmra.mrb[0].mxu0 %v2714
    %v2716 = vpop.f32.mrb[0].mxu0
    %v2717 = vadd.f32 %v2496, %v2716
    %v2718 = vpop.f32.mrb[0].mxu0
    %2719 = vmatprep.mubr.f32.mxu0 0.0
    %v2720 = vand.u32 %v2532, 4294901760
    %v2721 = vsub.f32 %v2532, %v2720
    %v2722 = vand.u32 %v2721, 4294901760
    %v2723 = vsub.f32 %v2721, %v2722
    %v2724 = vand.u32 %v2723, 4294901760
    %2725 = vmatmul.mubr.f32.gmra.mrb[0].mxu0 %v2724
    %v2726 = vpop.f32.mrb[0].mxu0
    %v2727 = vadd.f32 %v2496, %v2726
    %v2728 = vpop.f32.mrb[0].mxu0
    %2729 = vmatprep.mubr.f32.mxu0 0.0
    %v2730 = vand.u32 %v2535, 4294901760
    %v2731 = vsub.f32 %v2535, %v2730
    %v2732 = vand.u32 %v2731, 4294901760
    %v2733 = vsub.f32 %v2731, %v2732
    %v2734 = vand.u32 %v2733, 4294901760
    %2735 = vmatmul.mubr.f32.gmra.mrb[0].mxu0 %v2734
    %v2736 = vpop.f32.mrb[0].mxu0
    %v2737 = vadd.f32 %v2496, %v2736
    %v2738 = vpop.f32.mrb[0].mxu0
    %2739 = vdwg.mxu0
    %2740 = vmatprep.subr.mxu0 0.0
    %v2741 = vand.u32 %v49, 4294901760
    %v2742 = vsub.f32 %v49, %v2741
    %v2743 = vand.u32 %v2742, 4294901760
    %v2744 = vsub.f32 %v2742, %v2743
    %v2745 = vand.u32 %v2744, 4294901760
    %2746 = vmatpush1.msra.mxu0 %v2745
    %2747 = vmatprep.subr.mxu0 0.0
    %v2748 = vand.u32 %v50, 4294901760
    %v2749 = vsub.f32 %v50, %v2748
    %v2750 = vand.u32 %v2749, 4294901760
    %v2751 = vsub.f32 %v2749, %v2750
    %v2752 = vand.u32 %v2751, 4294901760
    %2753 = vmatpush1.msra.mxu0 %v2752
    %2754 = vmatprep.subr.mxu0 0.0
    %v2755 = vand.u32 %v51, 4294901760
    %v2756 = vsub.f32 %v51, %v2755
    %v2757 = vand.u32 %v2756, 4294901760
    %v2758 = vsub.f32 %v2756, %v2757
    %v2759 = vand.u32 %v2758, 4294901760
    %2760 = vmatpush1.msra.mxu0 %v2759
    %2761 = vmatprep.subr.mxu0 0.0
    %v2762 = vand.u32 %v52, 4294901760
    %v2763 = vsub.f32 %v52, %v2762
    %v2764 = vand.u32 %v2763, 4294901760
    %v2765 = vsub.f32 %v2763, %v2764
    %v2766 = vand.u32 %v2765, 4294901760
    %2767 = vmatpush1.msra.mxu0 %v2766
    %2768 = vmatprep.subr.mxu0 0.0
    %v2769 = vand.u32 %v53, 4294901760
    %v2770 = vsub.f32 %v53, %v2769
    %v2771 = vand.u32 %v2770, 4294901760
    %v2772 = vsub.f32 %v2770, %v2771
    %v2773 = vand.u32 %v2772, 4294901760
    %2774 = vmatpush1.msra.mxu0 %v2773
    %2775 = vmatprep.subr.mxu0 0.0
    %v2776 = vand.u32 %v54, 4294901760
    %v2777 = vsub.f32 %v54, %v2776
    %v2778 = vand.u32 %v2777, 4294901760
    %v2779 = vsub.f32 %v2777, %v2778
    %v2780 = vand.u32 %v2779, 4294901760
    %2781 = vmatpush1.msra.mxu0 %v2780
    %2782 = vmatprep.subr.mxu0 0.0
    %v2783 = vand.u32 %v55, 4294901760
    %v2784 = vsub.f32 %v55, %v2783
    %v2785 = vand.u32 %v2784, 4294901760
    %v2786 = vsub.f32 %v2784, %v2785
    %v2787 = vand.u32 %v2786, 4294901760
    %2788 = vmatpush1.msra.mxu0 %v2787
    %2789 = vmatprep.subr.mxu0 0.0
    %v2790 = vand.u32 %v56, 4294901760
    %v2791 = vsub.f32 %v56, %v2790
    %v2792 = vand.u32 %v2791, 4294901760
    %v2793 = vsub.f32 %v2791, %v2792
    %v2794 = vand.u32 %v2793, 4294901760
    %2795 = vmatpush1.msra.mxu0 %v2794
    %2796 = vmatprep.subr.mxu0 0.0
    %2797 = vmatpush1.msra.mxu0 0.0
    %2798 = vmatprep.subr.mxu0 0.0
    %2799 = vmatpush1.msra.mxu0 0.0
    %2800 = vmatprep.subr.mxu0 0.0
    %2801 = vmatpush1.msra.mxu0 0.0
    %2802 = vmatprep.subr.mxu0 0.0
    %2803 = vmatpush1.msra.mxu0 0.0
    %2804 = vmatprep.subr.mxu0 0.0
    %2805 = vmatpush1.msra.mxu0 0.0
    %2806 = vmatprep.subr.mxu0 0.0
    %2807 = vmatpush1.msra.mxu0 0.0
    %2808 = vmatprep.subr.mxu0 0.0
    %2809 = vmatpush1.msra.mxu0 0.0
    %2810 = vmatprep.subr.mxu0 0.0
    %2811 = vmatpush1.msra.mxu0 0.0
    %2812 = vmatprep.subr.mxu0 0.0
    %2813 = vmatpush1.msra.mxu0 0.0
    %2814 = vmatprep.subr.mxu0 0.0
    %2815 = vmatpush1.msra.mxu0 0.0
    %2816 = vmatprep.subr.mxu0 0.0
    %2817 = vmatpush1.msra.mxu0 0.0
    %2818 = vmatprep.subr.mxu0 0.0
    %2819 = vmatpush1.msra.mxu0 0.0
    %2820 = vmatprep.subr.mxu0 0.0
    %2821 = vmatpush1.msra.mxu0 0.0
    %2822 = vmatprep.subr.mxu0 0.0
    %2823 = vmatpush1.msra.mxu0 0.0
    %2824 = vmatprep.subr.mxu0 0.0
    %2825 = vmatpush1.msra.mxu0 0.0
    %2826 = vmatprep.subr.mxu0 0.0
    %2827 = vmatpush1.msra.mxu0 0.0
    %2828 = vmatprep.subr.mxu0 0.0
    %2829 = vmatpush1.msra.mxu0 0.0
    %2830 = vmatprep.subr.mxu0 0.0
    %2831 = vmatpush1.msra.mxu0 0.0
    %2832 = vmatprep.subr.mxu0 0.0
    %2833 = vmatpush1.msra.mxu0 0.0
    %2834 = vmatprep.subr.mxu0 0.0
    %2835 = vmatpush1.msra.mxu0 0.0
    %2836 = vmatprep.subr.mxu0 0.0
    %2837 = vmatpush1.msra.mxu0 0.0
    %2838 = vmatprep.subr.mxu0 0.0
    %2839 = vmatpush1.msra.mxu0 0.0
    %2840 = vmatprep.subr.mxu0 0.0
    %2841 = vmatpush1.msra.mxu0 0.0
    %2842 = vmatprep.subr.mxu0 0.0
    %2843 = vmatpush1.msra.mxu0 0.0
    %2844 = vmatprep.mubr.f32.mxu0 0.0
    %v2845 = vand.u32 %v2499, 4294901760
    %2846 = vmatmul.mubr.f32.gmra.mrb[0].mxu0 %v2845
    %v2847 = vpop.f32.mrb[0].mxu0
    %v2848 = vadd.f32 %v2617, %v2847
    %v2849 = vpop.f32.mrb[0].mxu0
    %2850 = vmatprep.mubr.f32.mxu0 0.0
    %v2851 = vand.u32 %v2502, 4294901760
    %2852 = vmatmul.mubr.f32.gmra.mrb[0].mxu0 %v2851
    %v2853 = vpop.f32.mrb[0].mxu0
    %v2854 = vadd.f32 %v2627, %v2853
    %v2855 = vpop.f32.mrb[0].mxu0
    %2856 = vmatprep.mubr.f32.mxu0 0.0
    %v2857 = vand.u32 %v2505, 4294901760
    %2858 = vmatmul.mubr.f32.gmra.mrb[0].mxu0 %v2857
    %v2859 = vpop.f32.mrb[0].mxu0
    %v2860 = vadd.f32 %v2637, %v2859
    %v2861 = vpop.f32.mrb[0].mxu0
    %2862 = vmatprep.mubr.f32.mxu0 0.0
    %v2863 = vand.u32 %v2508, 4294901760
    %2864 = vmatmul.mubr.f32.gmra.mrb[0].mxu0 %v2863
    %v2865 = vpop.f32.mrb[0].mxu0
    %v2866 = vadd.f32 %v2647, %v2865
    %v2867 = vpop.f32.mrb[0].mxu0
    %2868 = vmatprep.mubr.f32.mxu0 0.0
    %v2869 = vand.u32 %v2511, 4294901760
    %2870 = vmatmul.mubr.f32.gmra.mrb[0].mxu0 %v2869
    %v2871 = vpop.f32.mrb[0].mxu0
    %v2872 = vadd.f32 %v2657, %v2871
    %v2873 = vpop.f32.mrb[0].mxu0
    %2874 = vmatprep.mubr.f32.mxu0 0.0
    %v2875 = vand.u32 %v2514, 4294901760
    %2876 = vmatmul.mubr.f32.gmra.mrb[0].mxu0 %v2875
    %v2877 = vpop.f32.mrb[0].mxu0
    %v2878 = vadd.f32 %v2667, %v2877
    %v2879 = vpop.f32.mrb[0].mxu0
    %2880 = vmatprep.mubr.f32.mxu0 0.0
    %v2881 = vand.u32 %v2517, 4294901760
    %2882 = vmatmul.mubr.f32.gmra.mrb[0].mxu0 %v2881
    %v2883 = vpop.f32.mrb[0].mxu0
    %v2884 = vadd.f32 %v2677, %v2883
    %v2885 = vpop.f32.mrb[0].mxu0
    %2886 = vmatprep.mubr.f32.mxu0 0.0
    %v2887 = vand.u32 %v2520, 4294901760
    %2888 = vmatmul.mubr.f32.gmra.mrb[0].mxu0 %v2887
    %v2889 = vpop.f32.mrb[0].mxu0
    %v2890 = vadd.f32 %v2687, %v2889
    %v2891 = vpop.f32.mrb[0].mxu0
    %2892 = vmatprep.mubr.f32.mxu0 0.0
    %v2893 = vand.u32 %v2523, 4294901760
    %2894 = vmatmul.mubr.f32.gmra.mrb[0].mxu0 %v2893
    %v2895 = vpop.f32.mrb[0].mxu0
    %v2896 = vadd.f32 %v2697, %v2895
    %v2897 = vpop.f32.mrb[0].mxu0
    %2898 = vmatprep.mubr.f32.mxu0 0.0
    %v2899 = vand.u32 %v2526, 4294901760
    %2900 = vmatmul.mubr.f32.gmra.mrb[0].mxu0 %v2899
    %v2901 = vpop.f32.mrb[0].mxu0
    %v2902 = vadd.f32 %v2707, %v2901
    %v2903 = vpop.f32.mrb[0].mxu0
    %2904 = vmatprep.mubr.f32.mxu0 0.0
    %v2905 = vand.u32 %v2529, 4294901760
    %2906 = vmatmul.mubr.f32.gmra.mrb[0].mxu0 %v2905
    %v2907 = vpop.f32.mrb[0].mxu0
    %v2908 = vadd.f32 %v2717, %v2907
    %v2909 = vpop.f32.mrb[0].mxu0
    %2910 = vmatprep.mubr.f32.mxu0 0.0
    %v2911 = vand.u32 %v2532, 4294901760
    %2912 = vmatmul.mubr.f32.gmra.mrb[0].mxu0 %v2911
    %v2913 = vpop.f32.mrb[0].mxu0
    %v2914 = vadd.f32 %v2727, %v2913
    %v2915 = vpop.f32.mrb[0].mxu0
    %2916 = vmatprep.mubr.f32.mxu0 0.0
    %v2917 = vand.u32 %v2535, 4294901760
    %2918 = vmatmul.mubr.f32.gmra.mrb[0].mxu0 %v2917
    %v2919 = vpop.f32.mrb[0].mxu0
    %v2920 = vadd.f32 %v2737, %v2919
    %v2921 = vpop.f32.mrb[0].mxu0
    %2922 = vdwg.mxu0
    %2923 = vmatprep.subr.mxu0 0.0
    %v2924 = vand.u32 %v49, 4294901760
    %v2925 = vsub.f32 %v49, %v2924
    %2926 = vmatpush1.msra.mxu0 %v2925
    %2927 = vmatprep.subr.mxu0 0.0
    %v2928 = vand.u32 %v50, 4294901760
    %v2929 = vsub.f32 %v50, %v2928
    %2930 = vmatpush1.msra.mxu0 %v2929
    %2931 = vmatprep.subr.mxu0 0.0
    %v2932 = vand.u32 %v51, 4294901760
    %v2933 = vsub.f32 %v51, %v2932
    %2934 = vmatpush1.msra.mxu0 %v2933
    %2935 = vmatprep.subr.mxu0 0.0
    %v2936 = vand.u32 %v52, 4294901760
    %v2937 = vsub.f32 %v52, %v2936
    %2938 = vmatpush1.msra.mxu0 %v2937
    %2939 = vmatprep.subr.mxu0 0.0
    %v2940 = vand.u32 %v53, 4294901760
    %v2941 = vsub.f32 %v53, %v2940
    %2942 = vmatpush1.msra.mxu0 %v2941
    %2943 = vmatprep.subr.mxu0 0.0
    %v2944 = vand.u32 %v54, 4294901760
    %v2945 = vsub.f32 %v54, %v2944
    %2946 = vmatpush1.msra.mxu0 %v2945
    %2947 = vmatprep.subr.mxu0 0.0
    %v2948 = vand.u32 %v55, 4294901760
    %v2949 = vsub.f32 %v55, %v2948
    %2950 = vmatpush1.msra.mxu0 %v2949
    %2951 = vmatprep.subr.mxu0 0.0
    %v2952 = vand.u32 %v56, 4294901760
    %v2953 = vsub.f32 %v56, %v2952
    %2954 = vmatpush1.msra.mxu0 %v2953
    %2955 = vmatprep.subr.mxu0 0.0
    %2956 = vmatpush1.msra.mxu0 0.0
    %2957 = vmatprep.subr.mxu0 0.0
    %2958 = vmatpush1.msra.mxu0 0.0
    %2959 = vmatprep.subr.mxu0 0.0
    %2960 = vmatpush1.msra.mxu0 0.0
    %2961 = vmatprep.subr.mxu0 0.0
    %2962 = vmatpush1.msra.mxu0 0.0
    %2963 = vmatprep.subr.mxu0 0.0
    %2964 = vmatpush1.msra.mxu0 0.0
    %2965 = vmatprep.subr.mxu0 0.0
    %2966 = vmatpush1.msra.mxu0 0.0
    %2967 = vmatprep.subr.mxu0 0.0
    %2968 = vmatpush1.msra.mxu0 0.0
    %2969 = vmatprep.subr.mxu0 0.0
    %2970 = vmatpush1.msra.mxu0 0.0
    %2971 = vmatprep.subr.mxu0 0.0
    %2972 = vmatpush1.msra.mxu0 0.0
    %2973 = vmatprep.subr.mxu0 0.0
    %2974 = vmatpush1.msra.mxu0 0.0
    %2975 = vmatprep.subr.mxu0 0.0
    %2976 = vmatpush1.msra.mxu0 0.0
    %2977 = vmatprep.subr.mxu0 0.0
    %2978 = vmatpush1.msra.mxu0 0.0
    %2979 = vmatprep.subr.mxu0 0.0
    %2980 = vmatpush1.msra.mxu0 0.0
    %2981 = vmatprep.subr.mxu0 0.0
    %2982 = vmatpush1.msra.mxu0 0.0
    %2983 = vmatprep.subr.mxu0 0.0
    %2984 = vmatpush1.msra.mxu0 0.0
    %2985 = vmatprep.subr.mxu0 0.0
    %2986 = vmatpush1.msra.mxu0 0.0
    %2987 = vmatprep.subr.mxu0 0.0
    %2988 = vmatpush1.msra.mxu0 0.0
    %2989 = vmatprep.subr.mxu0 0.0
    %2990 = vmatpush1.msra.mxu0 0.0
    %2991 = vmatprep.subr.mxu0 0.0
    %2992 = vmatpush1.msra.mxu0 0.0
    %2993 = vmatprep.subr.mxu0 0.0
    %2994 = vmatpush1.msra.mxu0 0.0
    %2995 = vmatprep.subr.mxu0 0.0
    %2996 = vmatpush1.msra.mxu0 0.0
    %2997 = vmatprep.subr.mxu0 0.0
    %2998 = vmatpush1.msra.mxu0 0.0
    %2999 = vmatprep.subr.mxu0 0.0
    %3000 = vmatpush1.msra.mxu0 0.0
    %3001 = vmatprep.subr.mxu0 0.0
    %3002 = vmatpush1.msra.mxu0 0.0
    %3003 = vmatprep.mubr.f32.mxu0 0.0
    %v3004 = vand.u32 %v2499, 4294901760
    %v3005 = vsub.f32 %v2499, %v3004
    %3006 = vmatmul.mubr.f32.gmra.mrb[0].mxu0 %v3005
    %v3007 = vpop.f32.mrb[0].mxu0
    %v3008 = vadd.f32 %v2848, %v3007
    %v3009 = vpop.f32.mrb[0].mxu0
    %3010 = vmatprep.mubr.f32.mxu0 0.0
    %v3011 = vand.u32 %v2502, 4294901760
    %v3012 = vsub.f32 %v2502, %v3011
    %3013 = vmatmul.mubr.f32.gmra.mrb[0].mxu0 %v3012
    %v3014 = vpop.f32.mrb[0].mxu0
    %v3015 = vadd.f32 %v2854, %v3014
    %v3016 = vpop.f32.mrb[0].mxu0
    %3017 = vmatprep.mubr.f32.mxu0 0.0
    %v3018 = vand.u32 %v2505, 4294901760
    %v3019 = vsub.f32 %v2505, %v3018
    %3020 = vmatmul.mubr.f32.gmra.mrb[0].mxu0 %v3019
    %v3021 = vpop.f32.mrb[0].mxu0
    %v3022 = vadd.f32 %v2860, %v3021
    %v3023 = vpop.f32.mrb[0].mxu0
    %3024 = vmatprep.mubr.f32.mxu0 0.0
    %v3025 = vand.u32 %v2508, 4294901760
    %v3026 = vsub.f32 %v2508, %v3025
    %3027 = vmatmul.mubr.f32.gmra.mrb[0].mxu0 %v3026
    %v3028 = vpop.f32.mrb[0].mxu0
    %v3029 = vadd.f32 %v2866, %v3028
    %v3030 = vpop.f32.mrb[0].mxu0
    %3031 = vmatprep.mubr.f32.mxu0 0.0
    %v3032 = vand.u32 %v2511, 4294901760
    %v3033 = vsub.f32 %v2511, %v3032
    %3034 = vmatmul.mubr.f32.gmra.mrb[0].mxu0 %v3033
    %v3035 = vpop.f32.mrb[0].mxu0
    %v3036 = vadd.f32 %v2872, %v3035
    %v3037 = vpop.f32.mrb[0].mxu0
    %3038 = vmatprep.mubr.f32.mxu0 0.0
    %v3039 = vand.u32 %v2514, 4294901760
    %v3040 = vsub.f32 %v2514, %v3039
    %3041 = vmatmul.mubr.f32.gmra.mrb[0].mxu0 %v3040
    %v3042 = vpop.f32.mrb[0].mxu0
    %v3043 = vadd.f32 %v2878, %v3042
    %v3044 = vpop.f32.mrb[0].mxu0
    %3045 = vmatprep.mubr.f32.mxu0 0.0
    %v3046 = vand.u32 %v2517, 4294901760
    %v3047 = vsub.f32 %v2517, %v3046
    %3048 = vmatmul.mubr.f32.gmra.mrb[0].mxu0 %v3047
    %v3049 = vpop.f32.mrb[0].mxu0
    %v3050 = vadd.f32 %v2884, %v3049
    %v3051 = vpop.f32.mrb[0].mxu0
    %3052 = vmatprep.mubr.f32.mxu0 0.0
    %v3053 = vand.u32 %v2520, 4294901760
    %v3054 = vsub.f32 %v2520, %v3053
    %3055 = vmatmul.mubr.f32.gmra.mrb[0].mxu0 %v3054
    %v3056 = vpop.f32.mrb[0].mxu0
    %v3057 = vadd.f32 %v2890, %v3056
    %v3058 = vpop.f32.mrb[0].mxu0
    %3059 = vmatprep.mubr.f32.mxu0 0.0
    %v3060 = vand.u32 %v2523, 4294901760
    %v3061 = vsub.f32 %v2523, %v3060
    %3062 = vmatmul.mubr.f32.gmra.mrb[0].mxu0 %v3061
    %v3063 = vpop.f32.mrb[0].mxu0
    %v3064 = vadd.f32 %v2896, %v3063
    %v3065 = vpop.f32.mrb[0].mxu0
    %3066 = vmatprep.mubr.f32.mxu0 0.0
    %v3067 = vand.u32 %v2526, 4294901760
    %v3068 = vsub.f32 %v2526, %v3067
    %3069 = vmatmul.mubr.f32.gmra.mrb[0].mxu0 %v3068
    %v3070 = vpop.f32.mrb[0].mxu0
    %v3071 = vadd.f32 %v2902, %v3070
    %v3072 = vpop.f32.mrb[0].mxu0
    %3073 = vmatprep.mubr.f32.mxu0 0.0
    %v3074 = vand.u32 %v2529, 4294901760
    %v3075 = vsub.f32 %v2529, %v3074
    %3076 = vmatmul.mubr.f32.gmra.mrb[0].mxu0 %v3075
    %v3077 = vpop.f32.mrb[0].mxu0
    %v3078 = vadd.f32 %v2908, %v3077
    %v3079 = vpop.f32.mrb[0].mxu0
    %3080 = vmatprep.mubr.f32.mxu0 0.0
    %v3081 = vand.u32 %v2532, 4294901760
    %v3082 = vsub.f32 %v2532, %v3081
    %3083 = vmatmul.mubr.f32.gmra.mrb[0].mxu0 %v3082
    %v3084 = vpop.f32.mrb[0].mxu0
    %v3085 = vadd.f32 %v2914, %v3084
    %v3086 = vpop.f32.mrb[0].mxu0
    %3087 = vmatprep.mubr.f32.mxu0 0.0
    %v3088 = vand.u32 %v2535, 4294901760
    %v3089 = vsub.f32 %v2535, %v3088
    %3090 = vmatmul.mubr.f32.gmra.mrb[0].mxu0 %v3089
    %v3091 = vpop.f32.mrb[0].mxu0
    %v3092 = vadd.f32 %v2920, %v3091
    %v3093 = vpop.f32.mrb[0].mxu0
    %3094 = vdwg.mxu0
    %3095 = vmatprep.subr.mxu0 0.0
    %v3096 = vand.u32 %v49, 4294901760
    %3097 = vmatpush1.msra.mxu0 %v3096
    %3098 = vmatprep.subr.mxu0 0.0
    %v3099 = vand.u32 %v50, 4294901760
    %3100 = vmatpush1.msra.mxu0 %v3099
    %3101 = vmatprep.subr.mxu0 0.0
    %v3102 = vand.u32 %v51, 4294901760
    %3103 = vmatpush1.msra.mxu0 %v3102
    %3104 = vmatprep.subr.mxu0 0.0
    %v3105 = vand.u32 %v52, 4294901760
    %3106 = vmatpush1.msra.mxu0 %v3105
    %3107 = vmatprep.subr.mxu0 0.0
    %v3108 = vand.u32 %v53, 4294901760
    %3109 = vmatpush1.msra.mxu0 %v3108
    %3110 = vmatprep.subr.mxu0 0.0
    %v3111 = vand.u32 %v54, 4294901760
    %3112 = vmatpush1.msra.mxu0 %v3111
    %3113 = vmatprep.subr.mxu0 0.0
    %v3114 = vand.u32 %v55, 4294901760
    %3115 = vmatpush1.msra.mxu0 %v3114
    %3116 = vmatprep.subr.mxu0 0.0
    %v3117 = vand.u32 %v56, 4294901760
    %3118 = vmatpush1.msra.mxu0 %v3117
    %3119 = vmatprep.subr.mxu0 0.0
    %3120 = vmatpush1.msra.mxu0 0.0
    %3121 = vmatprep.subr.mxu0 0.0
    %3122 = vmatpush1.msra.mxu0 0.0
    %3123 = vmatprep.subr.mxu0 0.0
    %3124 = vmatpush1.msra.mxu0 0.0
    %3125 = vmatprep.subr.mxu0 0.0
    %3126 = vmatpush1.msra.mxu0 0.0
    %3127 = vmatprep.subr.mxu0 0.0
    %3128 = vmatpush1.msra.mxu0 0.0
    %3129 = vmatprep.subr.mxu0 0.0
    %3130 = vmatpush1.msra.mxu0 0.0
    %3131 = vmatprep.subr.mxu0 0.0
    %3132 = vmatpush1.msra.mxu0 0.0
    %3133 = vmatprep.subr.mxu0 0.0
    %3134 = vmatpush1.msra.mxu0 0.0
    %3135 = vmatprep.subr.mxu0 0.0
    %3136 = vmatpush1.msra.mxu0 0.0
    %3137 = vmatprep.subr.mxu0 0.0
    %3138 = vmatpush1.msra.mxu0 0.0
    %3139 = vmatprep.subr.mxu0 0.0
    %3140 = vmatpush1.msra.mxu0 0.0
    %3141 = vmatprep.subr.mxu0 0.0
    %3142 = vmatpush1.msra.mxu0 0.0
    %3143 = vmatprep.subr.mxu0 0.0
    %3144 = vmatpush1.msra.mxu0 0.0
    %3145 = vmatprep.subr.mxu0 0.0
    %3146 = vmatpush1.msra.mxu0 0.0
    %3147 = vmatprep.subr.mxu0 0.0
    %3148 = vmatpush1.msra.mxu0 0.0
    %3149 = vmatprep.subr.mxu0 0.0
    %3150 = vmatpush1.msra.mxu0 0.0
    %3151 = vmatprep.subr.mxu0 0.0
    %3152 = vmatpush1.msra.mxu0 0.0
    %3153 = vmatprep.subr.mxu0 0.0
    %3154 = vmatpush1.msra.mxu0 0.0
    %3155 = vmatprep.subr.mxu0 0.0
    %3156 = vmatpush1.msra.mxu0 0.0
    %3157 = vmatprep.subr.mxu0 0.0
    %3158 = vmatpush1.msra.mxu0 0.0
    %3159 = vmatprep.subr.mxu0 0.0
    %3160 = vmatpush1.msra.mxu0 0.0
    %3161 = vmatprep.subr.mxu0 0.0
    %3162 = vmatpush1.msra.mxu0 0.0
    %3163 = vmatprep.subr.mxu0 0.0
    %3164 = vmatpush1.msra.mxu0 0.0
    %3165 = vmatprep.subr.mxu0 0.0
    %3166 = vmatpush1.msra.mxu0 0.0
    %3167 = vmatprep.mubr.f32.mxu0 0.0
    %v3168 = vand.u32 %v2499, 4294901760
    %v3169 = vsub.f32 %v2499, %v3168
    %v3170 = vand.u32 %v3169, 4294901760
    %3171 = vmatmul.mubr.f32.gmra.mrb[0].mxu0 %v3170
    %v3172 = vpop.f32.mrb[0].mxu0
    %v3173 = vadd.f32 %v3008, %v3172
    %v3174 = vpop.f32.mrb[0].mxu0
    %3175 = vmatprep.mubr.f32.mxu0 0.0
    %v3176 = vand.u32 %v2502, 4294901760
    %v3177 = vsub.f32 %v2502, %v3176
    %v3178 = vand.u32 %v3177, 4294901760
    %3179 = vmatmul.mubr.f32.gmra.mrb[0].mxu0 %v3178
    %v3180 = vpop.f32.mrb[0].mxu0
    %v3181 = vadd.f32 %v3015, %v3180
    %v3182 = vpop.f32.mrb[0].mxu0
    %3183 = vmatprep.mubr.f32.mxu0 0.0
    %v3184 = vand.u32 %v2505, 4294901760
    %v3185 = vsub.f32 %v2505, %v3184
    %v3186 = vand.u32 %v3185, 4294901760
    %3187 = vmatmul.mubr.f32.gmra.mrb[0].mxu0 %v3186
    %v3188 = vpop.f32.mrb[0].mxu0
    %v3189 = vadd.f32 %v3022, %v3188
    %v3190 = vpop.f32.mrb[0].mxu0
    %3191 = vmatprep.mubr.f32.mxu0 0.0
    %v3192 = vand.u32 %v2508, 4294901760
    %v3193 = vsub.f32 %v2508, %v3192
    %v3194 = vand.u32 %v3193, 4294901760
    %3195 = vmatmul.mubr.f32.gmra.mrb[0].mxu0 %v3194
    %v3196 = vpop.f32.mrb[0].mxu0
    %v3197 = vadd.f32 %v3029, %v3196
    %v3198 = vpop.f32.mrb[0].mxu0
    %3199 = vmatprep.mubr.f32.mxu0 0.0
    %v3200 = vand.u32 %v2511, 4294901760
    %v3201 = vsub.f32 %v2511, %v3200
    %v3202 = vand.u32 %v3201, 4294901760
    %3203 = vmatmul.mubr.f32.gmra.mrb[0].mxu0 %v3202
    %v3204 = vpop.f32.mrb[0].mxu0
    %v3205 = vadd.f32 %v3036, %v3204
    %v3206 = vpop.f32.mrb[0].mxu0
    %3207 = vmatprep.mubr.f32.mxu0 0.0
    %v3208 = vand.u32 %v2514, 4294901760
    %v3209 = vsub.f32 %v2514, %v3208
    %v3210 = vand.u32 %v3209, 4294901760
    %3211 = vmatmul.mubr.f32.gmra.mrb[0].mxu0 %v3210
    %v3212 = vpop.f32.mrb[0].mxu0
    %v3213 = vadd.f32 %v3043, %v3212
    %v3214 = vpop.f32.mrb[0].mxu0
    %3215 = vmatprep.mubr.f32.mxu0 0.0
    %v3216 = vand.u32 %v2517, 4294901760
    %v3217 = vsub.f32 %v2517, %v3216
    %v3218 = vand.u32 %v3217, 4294901760
    %3219 = vmatmul.mubr.f32.gmra.mrb[0].mxu0 %v3218
    %v3220 = vpop.f32.mrb[0].mxu0
    %v3221 = vadd.f32 %v3050, %v3220
    %v3222 = vpop.f32.mrb[0].mxu0
    %3223 = vmatprep.mubr.f32.mxu0 0.0
    %v3224 = vand.u32 %v2520, 4294901760
    %v3225 = vsub.f32 %v2520, %v3224
    %v3226 = vand.u32 %v3225, 4294901760
    %3227 = vmatmul.mubr.f32.gmra.mrb[0].mxu0 %v3226
    %v3228 = vpop.f32.mrb[0].mxu0
    %v3229 = vadd.f32 %v3057, %v3228
    %v3230 = vpop.f32.mrb[0].mxu0
    %3231 = vmatprep.mubr.f32.mxu0 0.0
    %v3232 = vand.u32 %v2523, 4294901760
    %v3233 = vsub.f32 %v2523, %v3232
    %v3234 = vand.u32 %v3233, 4294901760
    %3235 = vmatmul.mubr.f32.gmra.mrb[0].mxu0 %v3234
    %v3236 = vpop.f32.mrb[0].mxu0
    %v3237 = vadd.f32 %v3064, %v3236
    %v3238 = vpop.f32.mrb[0].mxu0
    %3239 = vmatprep.mubr.f32.mxu0 0.0
    %v3240 = vand.u32 %v2526, 4294901760
    %v3241 = vsub.f32 %v2526, %v3240
    %v3242 = vand.u32 %v3241, 4294901760
    %3243 = vmatmul.mubr.f32.gmra.mrb[0].mxu0 %v3242
    %v3244 = vpop.f32.mrb[0].mxu0
    %v3245 = vadd.f32 %v3071, %v3244
    %v3246 = vpop.f32.mrb[0].mxu0
    %3247 = vmatprep.mubr.f32.mxu0 0.0
    %v3248 = vand.u32 %v2529, 4294901760
    %v3249 = vsub.f32 %v2529, %v3248
    %v3250 = vand.u32 %v3249, 4294901760
    %3251 = vmatmul.mubr.f32.gmra.mrb[0].mxu0 %v3250
    %v3252 = vpop.f32.mrb[0].mxu0
    %v3253 = vadd.f32 %v3078, %v3252
    %v3254 = vpop.f32.mrb[0].mxu0
    %3255 = vmatprep.mubr.f32.mxu0 0.0
    %v3256 = vand.u32 %v2532, 4294901760
    %v3257 = vsub.f32 %v2532, %v3256
    %v3258 = vand.u32 %v3257, 4294901760
    %3259 = vmatmul.mubr.f32.gmra.mrb[0].mxu0 %v3258
    %v3260 = vpop.f32.mrb[0].mxu0
    %v3261 = vadd.f32 %v3085, %v3260
    %v3262 = vpop.f32.mrb[0].mxu0
    %3263 = vmatprep.mubr.f32.mxu0 0.0
    %v3264 = vand.u32 %v2535, 4294901760
    %v3265 = vsub.f32 %v2535, %v3264
    %v3266 = vand.u32 %v3265, 4294901760
    %3267 = vmatmul.mubr.f32.gmra.mrb[0].mxu0 %v3266
    %v3268 = vpop.f32.mrb[0].mxu0
    %v3269 = vadd.f32 %v3092, %v3268
    %v3270 = vpop.f32.mrb[0].mxu0
    %3271 = vdwg.mxu0
    %3272 = vmatprep.subr.mxu0 0.0
    %v3273 = vand.u32 %v49, 4294901760
    %v3274 = vsub.f32 %v49, %v3273
    %v3275 = vand.u32 %v3274, 4294901760
    %3276 = vmatpush1.msra.mxu0 %v3275
    %3277 = vmatprep.subr.mxu0 0.0
    %v3278 = vand.u32 %v50, 4294901760
    %v3279 = vsub.f32 %v50, %v3278
    %v3280 = vand.u32 %v3279, 4294901760
    %3281 = vmatpush1.msra.mxu0 %v3280
    %3282 = vmatprep.subr.mxu0 0.0
    %v3283 = vand.u32 %v51, 4294901760
    %v3284 = vsub.f32 %v51, %v3283
    %v3285 = vand.u32 %v3284, 4294901760
    %3286 = vmatpush1.msra.mxu0 %v3285
    %3287 = vmatprep.subr.mxu0 0.0
    %v3288 = vand.u32 %v52, 4294901760
    %v3289 = vsub.f32 %v52, %v3288
    %v3290 = vand.u32 %v3289, 4294901760
    %3291 = vmatpush1.msra.mxu0 %v3290
    %3292 = vmatprep.subr.mxu0 0.0
    %v3293 = vand.u32 %v53, 4294901760
    %v3294 = vsub.f32 %v53, %v3293
    %v3295 = vand.u32 %v3294, 4294901760
    %3296 = vmatpush1.msra.mxu0 %v3295
    %3297 = vmatprep.subr.mxu0 0.0
    %v3298 = vand.u32 %v54, 4294901760
    %v3299 = vsub.f32 %v54, %v3298
    %v3300 = vand.u32 %v3299, 4294901760
    %3301 = vmatpush1.msra.mxu0 %v3300
    %3302 = vmatprep.subr.mxu0 0.0
    %v3303 = vand.u32 %v55, 4294901760
    %v3304 = vsub.f32 %v55, %v3303
    %v3305 = vand.u32 %v3304, 4294901760
    %3306 = vmatpush1.msra.mxu0 %v3305
    %3307 = vmatprep.subr.mxu0 0.0
    %v3308 = vand.u32 %v56, 4294901760
    %v3309 = vsub.f32 %v56, %v3308
    %v3310 = vand.u32 %v3309, 4294901760
    %3311 = vmatpush1.msra.mxu0 %v3310
    %3312 = vmatprep.subr.mxu0 0.0
    %3313 = vmatpush1.msra.mxu0 0.0
    %3314 = vmatprep.subr.mxu0 0.0
    %3315 = vmatpush1.msra.mxu0 0.0
    %3316 = vmatprep.subr.mxu0 0.0
    %3317 = vmatpush1.msra.mxu0 0.0
    %3318 = vmatprep.subr.mxu0 0.0
    %3319 = vmatpush1.msra.mxu0 0.0
    %3320 = vmatprep.subr.mxu0 0.0
    %3321 = vmatpush1.msra.mxu0 0.0
    %3322 = vmatprep.subr.mxu0 0.0
    %3323 = vmatpush1.msra.mxu0 0.0
    %3324 = vmatprep.subr.mxu0 0.0
    %3325 = vmatpush1.msra.mxu0 0.0
    %3326 = vmatprep.subr.mxu0 0.0
    %3327 = vmatpush1.msra.mxu0 0.0
    %3328 = vmatprep.subr.mxu0 0.0
    %3329 = vmatpush1.msra.mxu0 0.0
    %3330 = vmatprep.subr.mxu0 0.0
    %3331 = vmatpush1.msra.mxu0 0.0
    %3332 = vmatprep.subr.mxu0 0.0
    %3333 = vmatpush1.msra.mxu0 0.0
    %3334 = vmatprep.subr.mxu0 0.0
    %3335 = vmatpush1.msra.mxu0 0.0
    %3336 = vmatprep.subr.mxu0 0.0
    %3337 = vmatpush1.msra.mxu0 0.0
    %3338 = vmatprep.subr.mxu0 0.0
    %3339 = vmatpush1.msra.mxu0 0.0
    %3340 = vmatprep.subr.mxu0 0.0
    %3341 = vmatpush1.msra.mxu0 0.0
    %3342 = vmatprep.subr.mxu0 0.0
    %3343 = vmatpush1.msra.mxu0 0.0
    %3344 = vmatprep.subr.mxu0 0.0
    %3345 = vmatpush1.msra.mxu0 0.0
    %3346 = vmatprep.subr.mxu0 0.0
    %3347 = vmatpush1.msra.mxu0 0.0
    %3348 = vmatprep.subr.mxu0 0.0
    %3349 = vmatpush1.msra.mxu0 0.0
    %3350 = vmatprep.subr.mxu0 0.0
    %3351 = vmatpush1.msra.mxu0 0.0
    %3352 = vmatprep.subr.mxu0 0.0
    %3353 = vmatpush1.msra.mxu0 0.0
    %3354 = vmatprep.subr.mxu0 0.0
    %3355 = vmatpush1.msra.mxu0 0.0
    %3356 = vmatprep.subr.mxu0 0.0
    %3357 = vmatpush1.msra.mxu0 0.0
    %3358 = vmatprep.subr.mxu0 0.0
    %3359 = vmatpush1.msra.mxu0 0.0
    %3360 = vmatprep.mubr.f32.mxu0 0.0
    %v3361 = vand.u32 %v2499, 4294901760
    %3362 = vmatmul.mubr.f32.gmra.mrb[0].mxu0 %v3361
    %v3363 = vpop.f32.mrb[0].mxu0
    %v3364 = vadd.f32 %v3173, %v3363
    %v3365 = vpop.f32.mrb[0].mxu0
    %3366 = vmatprep.mubr.f32.mxu0 0.0
    %v3367 = vand.u32 %v2502, 4294901760
    %3368 = vmatmul.mubr.f32.gmra.mrb[0].mxu0 %v3367
    %v3369 = vpop.f32.mrb[0].mxu0
    %v3370 = vadd.f32 %v3181, %v3369
    %v3371 = vpop.f32.mrb[0].mxu0
    %3372 = vmatprep.mubr.f32.mxu0 0.0
    %v3373 = vand.u32 %v2505, 4294901760
    %3374 = vmatmul.mubr.f32.gmra.mrb[0].mxu0 %v3373
    %v3375 = vpop.f32.mrb[0].mxu0
    %v3376 = vadd.f32 %v3189, %v3375
    %v3377 = vpop.f32.mrb[0].mxu0
    %3378 = vmatprep.mubr.f32.mxu0 0.0
    %v3379 = vand.u32 %v2508, 4294901760
    %3380 = vmatmul.mubr.f32.gmra.mrb[0].mxu0 %v3379
    %v3381 = vpop.f32.mrb[0].mxu0
    %v3382 = vadd.f32 %v3197, %v3381
    %v3383 = vpop.f32.mrb[0].mxu0
    %3384 = vmatprep.mubr.f32.mxu0 0.0
    %v3385 = vand.u32 %v2511, 4294901760
    %3386 = vmatmul.mubr.f32.gmra.mrb[0].mxu0 %v3385
    %v3387 = vpop.f32.mrb[0].mxu0
    %v3388 = vadd.f32 %v3205, %v3387
    %v3389 = vpop.f32.mrb[0].mxu0
    %3390 = vmatprep.mubr.f32.mxu0 0.0
    %v3391 = vand.u32 %v2514, 4294901760
    %3392 = vmatmul.mubr.f32.gmra.mrb[0].mxu0 %v3391
    %v3393 = vpop.f32.mrb[0].mxu0
    %v3394 = vadd.f32 %v3213, %v3393
    %v3395 = vpop.f32.mrb[0].mxu0
    %3396 = vmatprep.mubr.f32.mxu0 0.0
    %v3397 = vand.u32 %v2517, 4294901760
    %3398 = vmatmul.mubr.f32.gmra.mrb[0].mxu0 %v3397
    %v3399 = vpop.f32.mrb[0].mxu0
    %v3400 = vadd.f32 %v3221, %v3399
    %v3401 = vpop.f32.mrb[0].mxu0
    %3402 = vmatprep.mubr.f32.mxu0 0.0
    %v3403 = vand.u32 %v2520, 4294901760
    %3404 = vmatmul.mubr.f32.gmra.mrb[0].mxu0 %v3403
    %v3405 = vpop.f32.mrb[0].mxu0
    %v3406 = vadd.f32 %v3229, %v3405
    %v3407 = vpop.f32.mrb[0].mxu0
    %3408 = vmatprep.mubr.f32.mxu0 0.0
    %v3409 = vand.u32 %v2523, 4294901760
    %3410 = vmatmul.mubr.f32.gmra.mrb[0].mxu0 %v3409
    %v3411 = vpop.f32.mrb[0].mxu0
    %v3412 = vadd.f32 %v3237, %v3411
    %v3413 = vpop.f32.mrb[0].mxu0
    %3414 = vmatprep.mubr.f32.mxu0 0.0
    %v3415 = vand.u32 %v2526, 4294901760
    %3416 = vmatmul.mubr.f32.gmra.mrb[0].mxu0 %v3415
    %v3417 = vpop.f32.mrb[0].mxu0
    %v3418 = vadd.f32 %v3245, %v3417
    %v3419 = vpop.f32.mrb[0].mxu0
    %3420 = vmatprep.mubr.f32.mxu0 0.0
    %v3421 = vand.u32 %v2529, 4294901760
    %3422 = vmatmul.mubr.f32.gmra.mrb[0].mxu0 %v3421
    %v3423 = vpop.f32.mrb[0].mxu0
    %v3424 = vadd.f32 %v3253, %v3423
    %v3425 = vpop.f32.mrb[0].mxu0
    %3426 = vmatprep.mubr.f32.mxu0 0.0
    %v3427 = vand.u32 %v2532, 4294901760
    %3428 = vmatmul.mubr.f32.gmra.mrb[0].mxu0 %v3427
    %v3429 = vpop.f32.mrb[0].mxu0
    %v3430 = vadd.f32 %v3261, %v3429
    %v3431 = vpop.f32.mrb[0].mxu0
    %3432 = vmatprep.mubr.f32.mxu0 0.0
    %v3433 = vand.u32 %v2535, 4294901760
    %3434 = vmatmul.mubr.f32.gmra.mrb[0].mxu0 %v3433
    %v3435 = vpop.f32.mrb[0].mxu0
    %v3436 = vadd.f32 %v3269, %v3435
    %v3437 = vpop.f32.mrb[0].mxu0
    %3438 = vdwg.mxu0
    %3439 = vmatprep.subr.mxu0 0.0
    %v3440 = vand.u32 %v49, 4294901760
    %3441 = vmatpush1.msra.mxu0 %v3440
    %3442 = vmatprep.subr.mxu0 0.0
    %v3443 = vand.u32 %v50, 4294901760
    %3444 = vmatpush1.msra.mxu0 %v3443
    %3445 = vmatprep.subr.mxu0 0.0
    %v3446 = vand.u32 %v51, 4294901760
    %3447 = vmatpush1.msra.mxu0 %v3446
    %3448 = vmatprep.subr.mxu0 0.0
    %v3449 = vand.u32 %v52, 4294901760
    %3450 = vmatpush1.msra.mxu0 %v3449
    %3451 = vmatprep.subr.mxu0 0.0
    %v3452 = vand.u32 %v53, 4294901760
    %3453 = vmatpush1.msra.mxu0 %v3452
    %3454 = vmatprep.subr.mxu0 0.0
    %v3455 = vand.u32 %v54, 4294901760
    %3456 = vmatpush1.msra.mxu0 %v3455
    %3457 = vmatprep.subr.mxu0 0.0
    %v3458 = vand.u32 %v55, 4294901760
    %3459 = vmatpush1.msra.mxu0 %v3458
    %3460 = vmatprep.subr.mxu0 0.0
    %v3461 = vand.u32 %v56, 4294901760
    %3462 = vmatpush1.msra.mxu0 %v3461
    %3463 = vmatprep.subr.mxu0 0.0
    %3464 = vmatpush1.msra.mxu0 0.0
    %3465 = vmatprep.subr.mxu0 0.0
    %3466 = vmatpush1.msra.mxu0 0.0
    %3467 = vmatprep.subr.mxu0 0.0
    %3468 = vmatpush1.msra.mxu0 0.0
    %3469 = vmatprep.subr.mxu0 0.0
    %3470 = vmatpush1.msra.mxu0 0.0
    %3471 = vmatprep.subr.mxu0 0.0
    %3472 = vmatpush1.msra.mxu0 0.0
    %3473 = vmatprep.subr.mxu0 0.0
    %3474 = vmatpush1.msra.mxu0 0.0
    %3475 = vmatprep.subr.mxu0 0.0
    %3476 = vmatpush1.msra.mxu0 0.0
    %3477 = vmatprep.subr.mxu0 0.0
    %3478 = vmatpush1.msra.mxu0 0.0
    %3479 = vmatprep.subr.mxu0 0.0
    %3480 = vmatpush1.msra.mxu0 0.0
    %3481 = vmatprep.subr.mxu0 0.0
    %3482 = vmatpush1.msra.mxu0 0.0
    %3483 = vmatprep.subr.mxu0 0.0
    %3484 = vmatpush1.msra.mxu0 0.0
    %3485 = vmatprep.subr.mxu0 0.0
    %3486 = vmatpush1.msra.mxu0 0.0
    %3487 = vmatprep.subr.mxu0 0.0
    %3488 = vmatpush1.msra.mxu0 0.0
    %3489 = vmatprep.subr.mxu0 0.0
    %3490 = vmatpush1.msra.mxu0 0.0
    %3491 = vmatprep.subr.mxu0 0.0
    %3492 = vmatpush1.msra.mxu0 0.0
    %3493 = vmatprep.subr.mxu0 0.0
    %3494 = vmatpush1.msra.mxu0 0.0
    %3495 = vmatprep.subr.mxu0 0.0
    %3496 = vmatpush1.msra.mxu0 0.0
    %3497 = vmatprep.subr.mxu0 0.0
    %3498 = vmatpush1.msra.mxu0 0.0
    %3499 = vmatprep.subr.mxu0 0.0
    %3500 = vmatpush1.msra.mxu0 0.0
    %3501 = vmatprep.subr.mxu0 0.0
    %3502 = vmatpush1.msra.mxu0 0.0
    %3503 = vmatprep.subr.mxu0 0.0
    %3504 = vmatpush1.msra.mxu0 0.0
    %3505 = vmatprep.subr.mxu0 0.0
    %3506 = vmatpush1.msra.mxu0 0.0
    %3507 = vmatprep.subr.mxu0 0.0
    %3508 = vmatpush1.msra.mxu0 0.0
    %3509 = vmatprep.subr.mxu0 0.0
    %3510 = vmatpush1.msra.mxu0 0.0
    %3511 = vmatprep.mubr.f32.mxu0 0.0
    %v3512 = vand.u32 %v2499, 4294901760
    %3513 = vmatmul.mubr.f32.gmra.mrb[0].mxu0 %v3512
    %v3514 = vpop.f32.mrb[0].mxu0
    %v3515 = vadd.f32 %v3364, %v3514
    %v3516 = vpop.f32.mrb[0].mxu0
    %3517 = vmatprep.mubr.f32.mxu0 0.0
    %v3518 = vand.u32 %v2502, 4294901760
    %3519 = vmatmul.mubr.f32.gmra.mrb[0].mxu0 %v3518
    %v3520 = vpop.f32.mrb[0].mxu0
    %v3521 = vadd.f32 %v3370, %v3520
    %v3522 = vpop.f32.mrb[0].mxu0
    %3523 = vmatprep.mubr.f32.mxu0 0.0
    %v3524 = vand.u32 %v2505, 4294901760
    %3525 = vmatmul.mubr.f32.gmra.mrb[0].mxu0 %v3524
    %v3526 = vpop.f32.mrb[0].mxu0
    %v3527 = vadd.f32 %v3376, %v3526
    %v3528 = vpop.f32.mrb[0].mxu0
    %3529 = vmatprep.mubr.f32.mxu0 0.0
    %v3530 = vand.u32 %v2508, 4294901760
    %3531 = vmatmul.mubr.f32.gmra.mrb[0].mxu0 %v3530
    %v3532 = vpop.f32.mrb[0].mxu0
    %v3533 = vadd.f32 %v3382, %v3532
    %v3534 = vpop.f32.mrb[0].mxu0
    %3535 = vmatprep.mubr.f32.mxu0 0.0
    %v3536 = vand.u32 %v2511, 4294901760
    %3537 = vmatmul.mubr.f32.gmra.mrb[0].mxu0 %v3536
    %v3538 = vpop.f32.mrb[0].mxu0
    %v3539 = vadd.f32 %v3388, %v3538
    %v3540 = vpop.f32.mrb[0].mxu0
    %3541 = vmatprep.mubr.f32.mxu0 0.0
    %v3542 = vand.u32 %v2514, 4294901760
    %3543 = vmatmul.mubr.f32.gmra.mrb[0].mxu0 %v3542
    %v3544 = vpop.f32.mrb[0].mxu0
    %v3545 = vadd.f32 %v3394, %v3544
    %v3546 = vpop.f32.mrb[0].mxu0
    %3547 = vmatprep.mubr.f32.mxu0 0.0
    %v3548 = vand.u32 %v2517, 4294901760
    %3549 = vmatmul.mubr.f32.gmra.mrb[0].mxu0 %v3548
    %v3550 = vpop.f32.mrb[0].mxu0
    %v3551 = vadd.f32 %v3400, %v3550
    %v3552 = vpop.f32.mrb[0].mxu0
    %3553 = vmatprep.mubr.f32.mxu0 0.0
    %v3554 = vand.u32 %v2520, 4294901760
    %3555 = vmatmul.mubr.f32.gmra.mrb[0].mxu0 %v3554
    %v3556 = vpop.f32.mrb[0].mxu0
    %v3557 = vadd.f32 %v3406, %v3556
    %v3558 = vpop.f32.mrb[0].mxu0
    %3559 = vmatprep.mubr.f32.mxu0 0.0
    %v3560 = vand.u32 %v2523, 4294901760
    %3561 = vmatmul.mubr.f32.gmra.mrb[0].mxu0 %v3560
    %v3562 = vpop.f32.mrb[0].mxu0
    %v3563 = vadd.f32 %v3412, %v3562
    %v3564 = vpop.f32.mrb[0].mxu0
    %3565 = vmatprep.mubr.f32.mxu0 0.0
    %v3566 = vand.u32 %v2526, 4294901760
    %3567 = vmatmul.mubr.f32.gmra.mrb[0].mxu0 %v3566
    %v3568 = vpop.f32.mrb[0].mxu0
    %v3569 = vadd.f32 %v3418, %v3568
    %v3570 = vpop.f32.mrb[0].mxu0
    %3571 = vmatprep.mubr.f32.mxu0 0.0
    %v3572 = vand.u32 %v2529, 4294901760
    %3573 = vmatmul.mubr.f32.gmra.mrb[0].mxu0 %v3572
    %v3574 = vpop.f32.mrb[0].mxu0
    %v3575 = vadd.f32 %v3424, %v3574
    %v3576 = vpop.f32.mrb[0].mxu0
    %3577 = vmatprep.mubr.f32.mxu0 0.0
    %v3578 = vand.u32 %v2532, 4294901760
    %3579 = vmatmul.mubr.f32.gmra.mrb[0].mxu0 %v3578
    %v3580 = vpop.f32.mrb[0].mxu0
    %v3581 = vadd.f32 %v3430, %v3580
    %v3582 = vpop.f32.mrb[0].mxu0
    %3583 = vmatprep.mubr.f32.mxu0 0.0
    %v3584 = vand.u32 %v2535, 4294901760
    %3585 = vmatmul.mubr.f32.gmra.mrb[0].mxu0 %v3584
    %v3586 = vpop.f32.mrb[0].mxu0
    %v3587 = vadd.f32 %v3436, %v3586
    %v3588 = vpop.f32.mrb[0].mxu0
    %3589 = vdwg.mxu0
    %3592 = vrot.lane.b32.xlu0 %v3527, 127
    %v3593 = vpop.permute.xlu0 %3592
    %3594 = vrot.lane.b32.xlu0 %v3533, 127
    %v3595 = vpop.permute.xlu0 %3594
    %v3598 = vmin.f32 %v3527, %v3593
    %v3599 = vmin.f32 %v3533, %v3595
    %v3600 = vsub.f32 1.0, %v58
    %v3601 = vsub.f32 1.0, %v59
    %v3602 = vmul.f32 %v3600, 0.99
    %v3603 = vmul.f32 %v3601, 0.99
    %3606 = vrot.lane.b32.xlu0 %v3598, 73
    %v3607 = vpop.permute.xlu0 %3606
    %3608 = vrot.lane.b32.xlu0 %v3599, 73
    %v3609 = vpop.permute.xlu0 %3608
    %v3612 = vmul.f32 %v3602, %v3607
    %v3613 = vmul.f32 %v3603, %v3609
    %3616 = vrot.lane.b32.xlu0 %v3612, 127
    %v3617 = vpop.permute.xlu0 %3616
    %3618 = vrot.lane.b32.xlu0 %v3613, 127
    %v3619 = vpop.permute.xlu0 %3618
    %v3622 = vadd.f32 %v58, %v3617
    %v3623 = vadd.f32 %v59, %v3619
    %3625 = vset.pattern.permute.xlu0 72
    %3626 = vperm.xlu0 %3625, %v3622
    %v3627 = vpop.permute.xlu0 %3626
    %3630 = vset.pattern.permute.xlu0 72
    %3631 = vperm.xlu0 %3630, %v3623
    %v3632 = vpop.permute.xlu0 %3631
    %v3634 = vsub.f32 %v3515, %v3627
    %v3635 = vsub.f32 %v3521, %v3632
    %v3636 = vmul.f32 %v3634, %v3634
    %v3637 = vmul.f32 %v3635, %v3635
    %vm3638 = vcmask 15360
    %v3639 = vsel %vm3638, %v3636, 0.0
    %3640 = vadd.xlane.f32.xlu0 %v3639
    %v3641 = vpop.xlane.xlu0 %3640
    %v3642 = vrot.slane %v3641, 4
    %v3643 = vadd.f32 %v3641, %v3642
    %v3644 = vrot.slane %v3643, 2
    %v3645 = vadd.f32 %v3643, %v3644
    %v3646 = vrot.slane %v3645, 1
    %v3647 = vadd.f32 %v3645, %v3646
    %s3648 = vtos %v3647
    %s3649 = smul.f32 %s3648, 0.125
    %v3650 = vsel %vm3638, %v3637, 0.0
    %3651 = vadd.xlane.f32.xlu0 %v3650
    %v3652 = vpop.xlane.xlu0 %3651
    %v3653 = vrot.slane %v3652, 4
    %v3654 = vadd.f32 %v3652, %v3653
    %v3655 = vrot.slane %v3654, 2
    %v3656 = vadd.f32 %v3654, %v3655
    %v3657 = vrot.slane %v3656, 1
    %v3658 = vadd.f32 %v3656, %v3657
    %s3659 = vtos %v3658
    %s3660 = smul.f32 %s3659, 0.125
    %s3661 = sadd.f32 %s3649, %s3660
    %v3662 = vsel %vm3638, %v3545, -inf
    %v3663 = vrot.slane %v3662, 4
    %v3664 = vmax.f32 %v3662, %v3663
    %v3665 = vrot.slane %v3664, 2
    %v3666 = vmax.f32 %v3664, %v3665
    %v3667 = vrot.slane %v3666, 1
    %v3668 = vmax.f32 %v3666, %v3667
    %v3669 = vsel %vm3638, %v3551, -inf
    %v3670 = vrot.slane %v3669, 4
    %v3671 = vmax.f32 %v3669, %v3670
    %v3672 = vrot.slane %v3671, 2
    %v3673 = vmax.f32 %v3671, %v3672
    %v3674 = vrot.slane %v3673, 1
    %v3675 = vmax.f32 %v3673, %v3674
    %v3676 = vsel %vm3638, %v3557, -inf
    %v3677 = vrot.slane %v3676, 4
    %v3678 = vmax.f32 %v3676, %v3677
    %v3679 = vrot.slane %v3678, 2
    %v3680 = vmax.f32 %v3678, %v3679
    %v3681 = vrot.slane %v3680, 1
    %v3682 = vmax.f32 %v3680, %v3681
    %v3683 = vsel %vm3638, %v3563, -inf
    %v3684 = vrot.slane %v3683, 4
    %v3685 = vmax.f32 %v3683, %v3684
    %v3686 = vrot.slane %v3685, 2
    %v3687 = vmax.f32 %v3685, %v3686
    %v3688 = vrot.slane %v3687, 1
    %v3689 = vmax.f32 %v3687, %v3688
    %v3690 = vsel %vm3638, %v3569, -inf
    %v3691 = vrot.slane %v3690, 4
    %v3692 = vmax.f32 %v3690, %v3691
    %v3693 = vrot.slane %v3692, 2
    %v3694 = vmax.f32 %v3692, %v3693
    %v3695 = vrot.slane %v3694, 1
    %v3696 = vmax.f32 %v3694, %v3695
    %v3697 = vsel %vm3638, %v3575, -inf
    %v3698 = vrot.slane %v3697, 4
    %v3699 = vmax.f32 %v3697, %v3698
    %v3700 = vrot.slane %v3699, 2
    %v3701 = vmax.f32 %v3699, %v3700
    %v3702 = vrot.slane %v3701, 1
    %v3703 = vmax.f32 %v3701, %v3702
    %v3704 = vsel %vm3638, %v3581, -inf
    %v3705 = vrot.slane %v3704, 4
    %v3706 = vmax.f32 %v3704, %v3705
    %v3707 = vrot.slane %v3706, 2
    %v3708 = vmax.f32 %v3706, %v3707
    %v3709 = vrot.slane %v3708, 1
    %v3710 = vmax.f32 %v3708, %v3709
    %v3711 = vsel %vm3638, %v3587, -inf
    %v3712 = vrot.slane %v3711, 4
    %v3713 = vmax.f32 %v3711, %v3712
    %v3714 = vrot.slane %v3713, 2
    %v3715 = vmax.f32 %v3713, %v3714
    %v3716 = vrot.slane %v3715, 1
    %v3717 = vmax.f32 %v3715, %v3716
    %v3719 = vrot.slane %v3539, 1
    %v3720 = vrot.slane %v3539, 2
    %v3721 = vrot.slane %v3539, 3
    %v3722 = vrot.slane %v3539, 4
    %v3723 = vrot.slane %v3539, 5
    %v3724 = vrot.slane %v3539, 6
    %v3725 = vrot.slane %v3539, 7
    %v3734 = vmax.f32 %v3668, %v3539
    %v3735 = vmax.f32 %v3675, %v3719
    %v3736 = vmax.f32 %v3682, %v3720
    %v3737 = vmax.f32 %v3689, %v3721
    %v3738 = vmax.f32 %v3696, %v3722
    %v3739 = vmax.f32 %v3703, %v3723
    %v3740 = vmax.f32 %v3710, %v3724
    %v3741 = vmax.f32 %v3717, %v3725
    %v3742 = vlaneseq
    %v3743 = vshrl.u32 %v3742, 7
    %v3744 = vsub.s32 0, %v3743
    %v3745 = vrot.slane %v3734, %v3744
    %v3746 = vlaneseq
    %v3747 = vshrl.u32 %v3746, 7
    %v3748 = vsub.s32 0, %v3747
    %v3749 = vrot.slane %v3735, %v3748
    %v3750 = vlaneseq
    %v3751 = vshrl.u32 %v3750, 7
    %v3752 = vsub.s32 0, %v3751
    %v3753 = vrot.slane %v3736, %v3752
    %v3754 = vlaneseq
    %v3755 = vshrl.u32 %v3754, 7
    %v3756 = vsub.s32 0, %v3755
    %v3757 = vrot.slane %v3737, %v3756
    %v3758 = vlaneseq
    %v3759 = vshrl.u32 %v3758, 7
    %v3760 = vsub.s32 0, %v3759
    %v3761 = vrot.slane %v3738, %v3760
    %v3762 = vlaneseq
    %v3763 = vshrl.u32 %v3762, 7
    %v3764 = vsub.s32 0, %v3763
    %v3765 = vrot.slane %v3739, %v3764
    %v3766 = vlaneseq
    %v3767 = vshrl.u32 %v3766, 7
    %v3768 = vsub.s32 0, %v3767
    %v3769 = vrot.slane %v3740, %v3768
    %v3770 = vlaneseq
    %v3771 = vshrl.u32 %v3770, 7
    %v3772 = vsub.s32 0, %v3771
    %v3773 = vrot.slane %v3741, %v3772
    %v3774 = vsub.f32 %v3545, %v3745
    %v3775 = vsub.f32 %v3551, %v3749
    %v3776 = vsub.f32 %v3557, %v3753
    %v3777 = vsub.f32 %v3563, %v3757
    %v3778 = vsub.f32 %v3569, %v3761
    %v3779 = vsub.f32 %v3575, %v3765
    %v3780 = vsub.f32 %v3581, %v3769
    %v3781 = vsub.f32 %v3587, %v3773
    %v3782 = vmul.f32 %v3774, 1.442695
    %v3783 = vpow.pop %v3782
    %v3784 = vmul.f32 %v3775, 1.442695
    %v3785 = vpow.pop %v3784
    %v3786 = vmul.f32 %v3776, 1.442695
    %v3787 = vpow.pop %v3786
    %v3788 = vmul.f32 %v3777, 1.442695
    %v3789 = vpow.pop %v3788
    %v3790 = vmul.f32 %v3778, 1.442695
    %v3791 = vpow.pop %v3790
    %v3792 = vmul.f32 %v3779, 1.442695
    %v3793 = vpow.pop %v3792
    %v3794 = vmul.f32 %v3780, 1.442695
    %v3795 = vpow.pop %v3794
    %v3796 = vmul.f32 %v3781, 1.442695
    %v3797 = vpow.pop %v3796
    %v3798 = vsel %vm3638, %v3783, 0.0
    %v3799 = vrot.slane %v3798, 4
    %v3800 = vadd.f32 %v3798, %v3799
    %v3801 = vrot.slane %v3800, 2
    %v3802 = vadd.f32 %v3800, %v3801
    %v3803 = vrot.slane %v3802, 1
    %v3804 = vadd.f32 %v3802, %v3803
    %v3805 = vsel %vm3638, %v3785, 0.0
    %v3806 = vrot.slane %v3805, 4
    %v3807 = vadd.f32 %v3805, %v3806
    %v3808 = vrot.slane %v3807, 2
    %v3809 = vadd.f32 %v3807, %v3808
    %v3810 = vrot.slane %v3809, 1
    %v3811 = vadd.f32 %v3809, %v3810
    %v3812 = vsel %vm3638, %v3787, 0.0
    %v3813 = vrot.slane %v3812, 4
    %v3814 = vadd.f32 %v3812, %v3813
    %v3815 = vrot.slane %v3814, 2
    %v3816 = vadd.f32 %v3814, %v3815
    %v3817 = vrot.slane %v3816, 1
    %v3818 = vadd.f32 %v3816, %v3817
    %v3819 = vsel %vm3638, %v3789, 0.0
    %v3820 = vrot.slane %v3819, 4
    %v3821 = vadd.f32 %v3819, %v3820
    %v3822 = vrot.slane %v3821, 2
    %v3823 = vadd.f32 %v3821, %v3822
    %v3824 = vrot.slane %v3823, 1
    %v3825 = vadd.f32 %v3823, %v3824
    %v3826 = vsel %vm3638, %v3791, 0.0
    %v3827 = vrot.slane %v3826, 4
    %v3828 = vadd.f32 %v3826, %v3827
    %v3829 = vrot.slane %v3828, 2
    %v3830 = vadd.f32 %v3828, %v3829
    %v3831 = vrot.slane %v3830, 1
    %v3832 = vadd.f32 %v3830, %v3831
    %v3833 = vsel %vm3638, %v3793, 0.0
    %v3834 = vrot.slane %v3833, 4
    %v3835 = vadd.f32 %v3833, %v3834
    %v3836 = vrot.slane %v3835, 2
    %v3837 = vadd.f32 %v3835, %v3836
    %v3838 = vrot.slane %v3837, 1
    %v3839 = vadd.f32 %v3837, %v3838
    %v3840 = vsel %vm3638, %v3795, 0.0
    %v3841 = vrot.slane %v3840, 4
    %v3842 = vadd.f32 %v3840, %v3841
    %v3843 = vrot.slane %v3842, 2
    %v3844 = vadd.f32 %v3842, %v3843
    %v3845 = vrot.slane %v3844, 1
    %v3846 = vadd.f32 %v3844, %v3845
    %v3847 = vsel %vm3638, %v3797, 0.0
    %v3848 = vrot.slane %v3847, 4
    %v3849 = vadd.f32 %v3847, %v3848
    %v3850 = vrot.slane %v3849, 2
    %v3851 = vadd.f32 %v3849, %v3850
    %v3852 = vrot.slane %v3851, 1
    %v3853 = vadd.f32 %v3851, %v3852
    %v3862 = vrot.slane %v3735, 7
    %vm3863 = vcmask 1041409
    %v3864 = vsel %vm3863, %v3862, %v3734
    %v3865 = vrot.slane %v3736, 6
    %vm3866 = vcmask 1042434
    %v3867 = vsel %vm3866, %v3865, %v3864
    %v3868 = vrot.slane %v3737, 5
    %vm3869 = vcmask 1043459
    %v3870 = vsel %vm3869, %v3868, %v3867
    %v3871 = vrot.slane %v3738, 4
    %vm3872 = vcmask 1044484
    %v3873 = vsel %vm3872, %v3871, %v3870
    %v3874 = vrot.slane %v3739, 3
    %vm3875 = vcmask 1045509
    %v3876 = vsel %vm3875, %v3874, %v3873
    %v3877 = vrot.slane %v3740, 2
    %vm3878 = vcmask 1046534
    %v3879 = vsel %vm3878, %v3877, %v3876
    %v3880 = vrot.slane %v3741, 1
    %vm3881 = vcmask 1047559
    %v3882 = vsel %vm3881, %v3880, %v3879
    %v3884 = vsub.f32 %v3539, %v3882
    %v3885 = vmul.f32 %v3884, 1.442695
    %v3886 = vpow.pop %v3885
    %v3888 = vrot.slane %v3886, 1
    %v3889 = vrot.slane %v3886, 2
    %v3890 = vrot.slane %v3886, 3
    %v3891 = vrot.slane %v3886, 4
    %v3892 = vrot.slane %v3886, 5
    %v3893 = vrot.slane %v3886, 6
    %v3894 = vrot.slane %v3886, 7
    %v3903 = vadd.f32 %v3804, %v3886
    %v3904 = vadd.f32 %v3811, %v3888
    %v3905 = vadd.f32 %v3818, %v3889
    %v3906 = vadd.f32 %v3825, %v3890
    %v3907 = vadd.f32 %v3832, %v3891
    %v3908 = vadd.f32 %v3839, %v3892
    %v3909 = vadd.f32 %v3846, %v3893
    %v3910 = vadd.f32 %v3853, %v3894
    %v3911 = vlog2.pop %v3903
    %v3912 = vmul.f32 %v3911, 0.6931472
    %v3913 = vlog2.pop %v3904
    %v3914 = vmul.f32 %v3913, 0.6931472
    %v3915 = vlog2.pop %v3905
    %v3916 = vmul.f32 %v3915, 0.6931472
    %v3917 = vlog2.pop %v3906
    %v3918 = vmul.f32 %v3917, 0.6931472
    %v3919 = vlog2.pop %v3907
    %v3920 = vmul.f32 %v3919, 0.6931472
    %v3921 = vlog2.pop %v3908
    %v3922 = vmul.f32 %v3921, 0.6931472
    %v3923 = vlog2.pop %v3909
    %v3924 = vmul.f32 %v3923, 0.6931472
    %v3925 = vlog2.pop %v3910
    %v3926 = vmul.f32 %v3925, 0.6931472
    %v3927 = vadd.f32 %v3734, %v3912
    %v3928 = vadd.f32 %v3735, %v3914
    %v3929 = vadd.f32 %v3736, %v3916
    %v3930 = vadd.f32 %v3737, %v3918
    %v3931 = vadd.f32 %v3738, %v3920
    %v3932 = vadd.f32 %v3739, %v3922
    %v3933 = vadd.f32 %v3740, %v3924
    %v3934 = vadd.f32 %v3741, %v3926
    %v3943 = vrot.slane %v3928, 7
    %v3944 = vsel %vm3863, %v3943, %v3927
    %v3945 = vrot.slane %v3929, 6
    %v3946 = vsel %vm3866, %v3945, %v3944
    %v3947 = vrot.slane %v3930, 5
    %v3948 = vsel %vm3869, %v3947, %v3946
    %v3949 = vrot.slane %v3931, 4
    %v3950 = vsel %vm3872, %v3949, %v3948
    %v3951 = vrot.slane %v3932, 3
    %v3952 = vsel %vm3875, %v3951, %v3950
    %v3953 = vrot.slane %v3933, 2
    %v3954 = vsel %vm3878, %v3953, %v3952
    %v3955 = vrot.slane %v3934, 1
    %v3956 = vsel %vm3881, %v3955, %v3954
    %v3958 = vsel %vm3638, %v3956, 0.0
    %3959 = vadd.xlane.f32.xlu0 %v3958
    %v3960 = vpop.xlane.xlu0 %3959
    %v3961 = vrot.slane %v3960, 4
    %v3962 = vadd.f32 %v3960, %v3961
    %v3963 = vrot.slane %v3962, 2
    %v3964 = vadd.f32 %v3962, %v3963
    %v3965 = vrot.slane %v3964, 1
    %v3966 = vadd.f32 %v3964, %v3965
    %s3967 = vtos %v3966
    %v3968 = vsel %vm3638, %v3521, 0.0
    %3969 = vadd.xlane.f32.xlu0 %v3968
    %v3970 = vpop.xlane.xlu0 %3969
    %v3971 = vrot.slane %v3970, 4
    %v3972 = vadd.f32 %v3970, %v3971
    %v3973 = vrot.slane %v3972, 2
    %v3974 = vadd.f32 %v3972, %v3973
    %v3975 = vrot.slane %v3974, 1
    %v3976 = vadd.f32 %v3974, %v3975
    %s3977 = vtos %v3976
    %s3978 = ssub.f32 %s3967, %s3977
    %v3979 = vrcp.pop 8.0
    %s3980 = vtos %v3979
    %s3981 = smul.f32 %s3978, %s3980
    %s3982 = sadd.f32 %s3661, %s3981
    %s3983 = scalar_lea.smem [#allocation7], 0
    %3984 = sst [smem:[%s3983]] %s3982
    %s3985 = scalar_lea.smem [#allocation7], 1
    %3986 = sst [smem:[%s3985]] %s3661
    %s3987 = scalar_lea.smem [#allocation7], 2
    %3988 = sst [smem:[%s3987]] %s3981
    // Predicated region
    $region18: #{tpu_custom_call.1} parent=1 // pred_check
      _
    $region19: #{tpu_custom_call.1} parent=1 // pred_check_branch
      %3990 = sbr.rel (0) target = $region21
    $region20: #{tpu_custom_call.1} parent=1 // pred_region
      %s3992 = ssub.s32 16, 16
      %3993 = vsyncadd [#allocation4], %s3992
      %3996 = dma.smem_to_hbm [#allocation7], 16, %s2, [#allocation4]
    $region21: #{tpu_custom_call.1} parent=1 // pred_fallthru
      _
    // Predicated region
    $region22: #{tpu_custom_call.1} parent=1 // pred_check
      _
    $region23: #{tpu_custom_call.1} parent=1 // pred_check_branch
      %3998 = sbr.rel (0) target = $region25
    $region24: #{tpu_custom_call.1} parent=1 // pred_region
      %3999 = dma.done [#allocation4], 16
    $region25: #{tpu_custom_call.1} parent=1 // pred_fallthru
      _
    %4000 = sfence
    %4001 = vsyncpa [#allocation3], 1
    %4002 = vsyncpa [#allocation6], 1
    %4003 = vsyncpa [#allocation4], 1

</llo_original>
